<compile_context>
chip_gen: v5e
topology: v5e:2x2
jax: 0.10.0
libtpu: 0.0.40
codegen_flags: <defaults>
</compile_context>

<pallas_src>
import functools

import jax
import jax.numpy as jnp
from jax.experimental import pallas as pl
from jax.experimental.pallas import tpu as pltpu

K_SIZE = 3            # GMMConv kernel_size
P_DIM = 2             # pseudo-coordinate dim (polar)
IN_CHANNELS = 4
NUM_FEATURES = (8, 16, 32, 32)
EPS = 1e-15


def _vmem():
    return pl.BlockSpec(memory_space=pltpu.MemorySpace.VMEM)


def _pad_to(n, m=16):
    return ((n + m - 1) // m) * m


# ---------------------------------------------------------------------------
# Fully fused forward kernel.
#
# Per layer l (operands pre-baked, see bake_conv_layer):
#   acc   = sum_k A_k @ (x @ g_k)          (A_k = scatter∘diag(w_k)∘gather)
#   acc   = acc * inv_deg                  (f32 mean-agg normalization)
#   y     = relu(acc + x @ root + bias)
#   x     = row-block max of (hexm @ y)    (merged hex pooling, 7 blocks)
# Head: per-graph max / (pre-normalized) mean pool, fc+ReLU, fc2.
# ---------------------------------------------------------------------------
def _fused_monet_kernel(*refs, k_size):
    (x_ref, oh_ref, ohm_ref,
     fcw_max_ref, fcw_mean_ref, fcb_ref, fc2w_ref, fc2b_ref) = refs[:8]
    out_ref = refs[-1]
    n_layers = (len(refs) - 9) // 6

    x = x_ref[...]                                      # [N0_pad, Fin0] f32

    for l in range(n_layers):
        a_ref, g_ref, root_ref, bias_ref, invdeg_ref, hex_ref = \
            refs[8 + 6 * l: 8 + 6 * (l + 1)]
        lpad = hex_ref.shape[0] // 7                    # padded output nodes

        x_bf = x.astype(jnp.bfloat16)

        # sum_k A_k @ (x @ g_k) as consecutive accumulating dots
        xg0 = jnp.dot(x_bf, g_ref[0], preferred_element_type=jnp.float32)
        acc = jnp.dot(a_ref[0], xg0.astype(jnp.bfloat16),
                      preferred_element_type=jnp.float32)
        for k in range(1, k_size):
            xgk = jnp.dot(x_bf, g_ref[k], preferred_element_type=jnp.float32)
            acc = acc + jnp.dot(a_ref[k], xgk.astype(jnp.bfloat16),
                                preferred_element_type=jnp.float32)
        # mean aggregation: f32 reciprocal degree (one VPU multiply)
        acc = acc * invdeg_ref[...]
        acc = acc + jnp.dot(x_bf, root_ref[...],
                            preferred_element_type=jnp.float32)
        y = jnp.maximum(acc + bias_ref[...], 0.0)       # [N_pad, Fout]

        # merged hex pooling: one MXU push stream, 6-op VPU max tree
        h = jnp.dot(hex_ref[...], y.astype(jnp.bfloat16),
                    preferred_element_type=jnp.float32)  # [7*L_pad, Fout]
        m01 = jnp.maximum(h[0 * lpad:1 * lpad], h[1 * lpad:2 * lpad])
        m23 = jnp.maximum(h[2 * lpad:3 * lpad], h[3 * lpad:4 * lpad])
        m45 = jnp.maximum(h[4 * lpad:5 * lpad], h[5 * lpad:6 * lpad])
        x = jnp.maximum(jnp.maximum(m01, m23),
                        jnp.maximum(m45, h[6 * lpad:7 * lpad]))  # [L_pad, Fout]

    # ---- head: global max / mean pool over `batch`, fc+ReLU, fc2 -----------
    oh = oh_ref[...]                                    # [B, Lf_pad] (0/1)
    x_mean = jnp.dot(ohm_ref[...], x,
                     preferred_element_type=jnp.float32)        # counts pre-folded
    neg = jnp.float32(-3.0e38)
    masked = jnp.where(oh[:, :, None] > 0.5, x[None, :, :], neg)
    x_max = jnp.max(masked, axis=1)                     # [B, F]
    h = (jnp.dot(x_max, fcw_max_ref[...], preferred_element_type=jnp.float32)
         + jnp.dot(x_mean, fcw_mean_ref[...], preferred_element_type=jnp.float32)
         + fcb_ref[...])
    h = jnp.maximum(h, 0.0)
    out_ref[...] = (jnp.dot(h, fc2w_ref[...], preferred_element_type=jnp.float32)
                    + fc2b_ref[...])


# ---------------------------------------------------------------------------
# One-time baking of static connectivity + params into matmul-ready operands
# ---------------------------------------------------------------------------
def bake_conv_layer(src, tgt, pseudo, hexa, n, n_pad, l_out, l_pad, p):
    # Gaussian mixture weights  w(u) = exp(-0.5 sum_d (u-mu)^2/(eps+sigma^2))
    diff = pseudo[:, None, :] - p['mu'][None, :, :]                  # [E, K, 2]
    sig2 = p['sigma'] * p['sigma']                                   # [K, 2]
    w = jnp.exp(jnp.sum(-0.5 * diff * diff / (EPS + sig2[None, :, :]),
                        axis=2))                                     # [E, K] f32

    # Pre-composed adjacencies  A_k[n, m] = sum_{e: tgt=n, src=m} w[e, k]
    # (composed exactly in f32, single bf16 rounding at the end)
    a = jnp.stack([
        jnp.zeros((n_pad, n_pad), jnp.float32).at[tgt, src].add(w[:, k])
        for k in range(K_SIZE)
    ]).astype(jnp.bfloat16)                                          # [K,Np,Np]

    # f32 reciprocal in-degree (mean aggregation), kept out of bf16
    deg = jnp.zeros((n_pad,), jnp.float32).at[tgt].add(1.0)
    inv_deg = (1.0 / jnp.maximum(deg, 1.0)).reshape(n_pad, 1)        # [Np, 1]

    # merged hex pooling one-hot matrix [7*L_pad, N_pad]
    rows = hexa[:l_out]                                              # [L, 7]
    idx = jnp.arange(n_pad, dtype=rows.dtype)
    oneh = (rows[:, :, None] == idx[None, None, :]).astype(jnp.float32)
    hexm = jnp.zeros((7, l_pad, n_pad), jnp.float32)
    hexm = hexm.at[:, :l_out, :].set(jnp.transpose(oneh, (1, 0, 2)))
    hexm = hexm.reshape(7 * l_pad, n_pad).astype(jnp.bfloat16)

    # g as [K, Fin, Fout] so the K transforms need no lane slicing
    fin = p['g'].shape[0]
    g = jnp.transpose(p['g'].reshape(fin, K_SIZE, -1), (1, 0, 2))
    return dict(a=a, g=g.astype(jnp.bfloat16),
                root=p['root'].astype(jnp.bfloat16),
                bias=p['bias'].astype(jnp.float32),
                inv_deg=inv_deg, hexm=hexm)


def bake_model(params, e0_src, e0_tgt, pseudo6, edges, hexes, node_counts):
    pads = [_pad_to(n) for n in node_counts]
    conv_edges = [(e0_src, e0_tgt, pseudo6)] + [edges[i] for i in range(1, 4)]
    layers = []
    for i in range(4):
        src, tgt, pseudo = conv_edges[i]
        layers.append(bake_conv_layer(src, tgt, pseudo, hexes[i],
                                      node_counts[i], pads[i],
                                      node_counts[i + 1], pads[i + 1],
                                      params[f'conv{i + 1}']))
    f3 = NUM_FEATURES[3]
    head = dict(fcw_max=params['fc_w'][:f3],      # first half multiplies x_max
                fcw_mean=params['fc_w'][f3:],     # second half multiplies x_mean
                fcb=params['fc_b'],
                fc2w=params['fc2_w'],
                fc2b=params['fc2_b'])
    return layers, head


# ---------------------------------------------------------------------------
# Full forward pass (mirrors monet_polar_regression.forward), one pallas_call
# ---------------------------------------------------------------------------
@functools.partial(jax.jit, static_argnames=('num_graphs', 'n_final'))
def monet_polar_regression_forward(x, batch, layers, head, num_graphs, n_final):
    # pad the input feature matrix to the baked node padding
    n0_pad = layers[0]['inv_deg'].shape[0]
    x_pad = jnp.zeros((n0_pad, x.shape[1]), jnp.float32).at[:x.shape[0], :].set(x)

    # per-graph one-hot over the (padded) coarsest level; counts folded in
    lpad_f = layers[-1]['hexm'].shape[0] // 7
    b_pad = jnp.full((lpad_f,), -1, jnp.int32).at[:n_final].set(
        batch[:n_final].astype(jnp.int32))
    gids = jnp.arange(num_graphs, dtype=jnp.int32)
    oh = (b_pad[None, :] == gids[:, None]).astype(jnp.float32)       # [B, Lf_pad]
    counts = jnp.maximum(jnp.sum(oh, axis=1, keepdims=True), 1.0)
    oh_mean = oh / counts

    inputs = [x_pad, oh, oh_mean, head['fcw_max'], head['fcw_mean'],
              head['fcb'], head['fc2w'], head['fc2b']]
    for lyr in layers:
        inputs += [lyr['a'], lyr['g'], lyr['root'], lyr['bias'],
                   lyr['inv_deg'], lyr['hexm']]

    kern = functools.partial(_fused_monet_kernel, k_size=K_SIZE)
    out = pl.pallas_call(
        kern,
        out_shape=jax.ShapeDtypeStruct((num_graphs, 1), jnp.float32),
        in_specs=[_vmem()] * len(inputs),
        out_specs=_vmem(),
        compiler_params=pltpu.CompilerParams(vmem_limit_bytes=32 * 1024 * 1024),
    )(*inputs)
    return out[:, 0]                                   # .squeeze(1)


# ---------------------------------------------------------------------------
# Deterministic synthetic graph hierarchy + parameters
# (the original module loads icosphere connectivity from .npy files)
# ---------------------------------------------------------------------------
def build_synthetic_graph(key):
    # node counts satisfy the icosphere recursion N_{l+1} = (N_l + 6) / 4
    node_counts = [258, 66, 18, 6, 3]
    edges, hexes = [], []
    for lvl in range(4):
        n = node_counts[lvl]
        e = 6 * n
        key, k1, k2, k3, k4 = jax.random.split(key, 5)
        src = jax.random.randint(k1, (e,), 0, n, dtype=jnp.int32)
        tgt = jax.random.randint(k2, (e,), 0, n, dtype=jnp.int32)
        pseudo = jax.random.uniform(k3, (e, P_DIM), dtype=jnp.float32)
        hexa = jax.random.randint(k4, (n, 7), 0, n, dtype=jnp.int32)
        edges.append((src, tgt, pseudo))
        hexes.append(hexa)
    return node_counts, edges, hexes


def init_params(key):
    feats = [IN_CHANNELS] + list(NUM_FEATURES)
    params = {}
    for i in range(4):
        fin, fout = feats[i], feats[i + 1]
        key, kg, kr, km, ks = jax.random.split(key, 5)
        params[f'conv{i + 1}'] = dict(
            g=jax.random.normal(kg, (fin, K_SIZE * fout), jnp.float32) / jnp.sqrt(fin),
            root=jax.random.normal(kr, (fin, fout), jnp.float32) / jnp.sqrt(fin),
            bias=jnp.zeros((1, fout), jnp.float32),
            mu=jax.random.uniform(km, (K_SIZE, P_DIM), jnp.float32),
            sigma=jax.random.uniform(ks, (K_SIZE, P_DIM), jnp.float32,
                                     minval=0.5, maxval=1.5),
        )
    f3 = NUM_FEATURES[3]
    key, k1, k2, k3, k4 = jax.random.split(key, 5)
    # fc: Linear(2*f3, f3); fc2: Linear(f3, 1) — stored as [in, out]
    params['fc_w'] = jax.random.normal(k1, (2 * f3, f3), jnp.float32) / jnp.sqrt(2.0 * f3)
    params['fc_b'] = jax.random.normal(k2, (1, f3), jnp.float32) * 0.01
    params['fc2_w'] = jax.random.normal(k3, (f3, 1), jnp.float32) / jnp.sqrt(1.0 * f3)
    params['fc2_b'] = jax.random.normal(k4, (1, 1), jnp.float32) * 0.01
    return params


if __name__ == "__main__":
    key = jax.random.PRNGKey(0)
    key, kx, kg, kp = jax.random.split(key, 4)

    node_counts, edges, hexes = build_synthetic_graph(kg)
    params = init_params(kp)

    x = jax.random.normal(kx, (node_counts[0], IN_CHANNELS), jnp.float32)
    e = jnp.stack([edges[0][0], edges[0][1]], axis=0)        # [2, E0] edge_index
    pseudo6 = edges[0][2]                                    # [E0, 2] polar pseudo coords
    batch = jnp.zeros((node_counts[0],), dtype=jnp.int32)    # single-graph batch vector

    # one-time baking of static connectivity + params into matmul-ready operands
    layers, head = bake_model(params, e[0], e[1], pseudo6, edges, hexes, node_counts)

    out = monet_polar_regression_forward(x, batch, layers, head,
                                         num_graphs=1, n_final=node_counts[4])
    out = jax.block_until_ready(out)
    assert out.shape == (1,) and out.dtype == jnp.float32
    print("KERNEL_OK")
</pallas_src>

<mosaic_0001>
module attributes {stable_mosaic.version = 11 : i64} {
  func.func @_fused_monet_kernel(%arg0: memref<272x4xf32, #tpu.memory_space<vmem>>, %arg1: memref<1x16xf32, #tpu.memory_space<vmem>>, %arg2: memref<1x16xf32, #tpu.memory_space<vmem>>, %arg3: memref<32x32xf32, #tpu.memory_space<vmem>>, %arg4: memref<32x32xf32, #tpu.memory_space<vmem>>, %arg5: memref<1x32xf32, #tpu.memory_space<vmem>>, %arg6: memref<32x1xf32, #tpu.memory_space<vmem>>, %arg7: memref<1x1xf32, #tpu.memory_space<vmem>>, %arg8: memref<3x272x272xbf16, #tpu.memory_space<vmem>>, %arg9: memref<3x4x8xbf16, #tpu.memory_space<vmem>>, %arg10: memref<4x8xbf16, #tpu.memory_space<vmem>>, %arg11: memref<1x8xf32, #tpu.memory_space<vmem>>, %arg12: memref<272x1xf32, #tpu.memory_space<vmem>>, %arg13: memref<560x272xbf16, #tpu.memory_space<vmem>>, %arg14: memref<3x80x80xbf16, #tpu.memory_space<vmem>>, %arg15: memref<3x8x16xbf16, #tpu.memory_space<vmem>>, %arg16: memref<8x16xbf16, #tpu.memory_space<vmem>>, %arg17: memref<1x16xf32, #tpu.memory_space<vmem>>, %arg18: memref<80x1xf32, #tpu.memory_space<vmem>>, %arg19: memref<224x80xbf16, #tpu.memory_space<vmem>>, %arg20: memref<3x32x32xbf16, #tpu.memory_space<vmem>>, %arg21: memref<3x16x32xbf16, #tpu.memory_space<vmem>>, %arg22: memref<16x32xbf16, #tpu.memory_space<vmem>>, %arg23: memref<1x32xf32, #tpu.memory_space<vmem>>, %arg24: memref<32x1xf32, #tpu.memory_space<vmem>>, %arg25: memref<112x32xbf16, #tpu.memory_space<vmem>>, %arg26: memref<3x16x16xbf16, #tpu.memory_space<vmem>>, %arg27: memref<3x32x32xbf16, #tpu.memory_space<vmem>>, %arg28: memref<32x32xbf16, #tpu.memory_space<vmem>>, %arg29: memref<1x32xf32, #tpu.memory_space<vmem>>, %arg30: memref<16x1xf32, #tpu.memory_space<vmem>>, %arg31: memref<112x16xbf16, #tpu.memory_space<vmem>>, %arg32: memref<1x1xf32, #tpu.memory_space<vmem>>) attributes {dimension_semantics = [], scalar_prefetch = 0 : i64, scratch_operands = 0 : i64, tpu.core_type = #tpu.core_type<tc>} {
    %c0 = arith.constant 0 : index
    %c0_0 = arith.constant 0 : index
    %0 = vector.load %arg0[%c0, %c0_0] : memref<272x4xf32, #tpu.memory_space<vmem>>, vector<272x4xf32>
    %1 = arith.truncf %0 : vector<272x4xf32> to vector<272x4xbf16>
    %c0_1 = arith.constant 0 : index
    %c0_2 = arith.constant 0 : index
    %c0_3 = arith.constant 0 : index
    %2 = vector.load %arg9[%c0_1, %c0_2, %c0_3] : memref<3x4x8xbf16, #tpu.memory_space<vmem>>, vector<1x4x8xbf16>
    %3 = vector.shape_cast %2 : vector<1x4x8xbf16> to vector<4x8xbf16>
    %cst = arith.constant dense<0.000000e+00> : vector<272x8xf32>
    %4 = tpu.matmul %1, %3, %cst {dimension_numbers = #tpu.dot_dimension_numbers<[1], [0], [0], [1], [0, 0, 1, 1], [], []>} : vector<272x4xbf16>, vector<4x8xbf16>, vector<272x8xf32> -> vector<272x8xf32>
    %c0_4 = arith.constant 0 : index
    %c0_5 = arith.constant 0 : index
    %c0_6 = arith.constant 0 : index
    %5 = vector.load %arg8[%c0_4, %c0_5, %c0_6] : memref<3x272x272xbf16, #tpu.memory_space<vmem>>, vector<1x272x272xbf16>
    %6 = vector.shape_cast %5 : vector<1x272x272xbf16> to vector<272x272xbf16>
    %7 = arith.truncf %4 : vector<272x8xf32> to vector<272x8xbf16>
    %cst_7 = arith.constant dense<0.000000e+00> : vector<272x8xf32>
    %8 = tpu.matmul %6, %7, %cst_7 {dimension_numbers = #tpu.dot_dimension_numbers<[1], [0], [0], [1], [0, 0, 1, 1], [], []>} : vector<272x272xbf16>, vector<272x8xbf16>, vector<272x8xf32> -> vector<272x8xf32>
    %c1 = arith.constant 1 : index
    %c0_8 = arith.constant 0 : index
    %c0_9 = arith.constant 0 : index
    %9 = vector.load %arg9[%c1, %c0_8, %c0_9] : memref<3x4x8xbf16, #tpu.memory_space<vmem>>, vector<1x4x8xbf16>
    %10 = vector.shape_cast %9 : vector<1x4x8xbf16> to vector<4x8xbf16>
    %cst_10 = arith.constant dense<0.000000e+00> : vector<272x8xf32>
    %11 = tpu.matmul %1, %10, %cst_10 {dimension_numbers = #tpu.dot_dimension_numbers<[1], [0], [0], [1], [0, 0, 1, 1], [], []>} : vector<272x4xbf16>, vector<4x8xbf16>, vector<272x8xf32> -> vector<272x8xf32>
    %c1_11 = arith.constant 1 : index
    %c0_12 = arith.constant 0 : index
    %c0_13 = arith.constant 0 : index
    %12 = vector.load %arg8[%c1_11, %c0_12, %c0_13] : memref<3x272x272xbf16, #tpu.memory_space<vmem>>, vector<1x272x272xbf16>
    %13 = vector.shape_cast %12 : vector<1x272x272xbf16> to vector<272x272xbf16>
    %14 = arith.truncf %11 : vector<272x8xf32> to vector<272x8xbf16>
    %cst_14 = arith.constant dense<0.000000e+00> : vector<272x8xf32>
    %15 = tpu.matmul %13, %14, %cst_14 {dimension_numbers = #tpu.dot_dimension_numbers<[1], [0], [0], [1], [0, 0, 1, 1], [], []>} : vector<272x272xbf16>, vector<272x8xbf16>, vector<272x8xf32> -> vector<272x8xf32>
    %16 = arith.addf %8, %15 : vector<272x8xf32>
    %c2 = arith.constant 2 : index
    %c0_15 = arith.constant 0 : index
    %c0_16 = arith.constant 0 : index
    %17 = vector.load %arg9[%c2, %c0_15, %c0_16] : memref<3x4x8xbf16, #tpu.memory_space<vmem>>, vector<1x4x8xbf16>
    %18 = vector.shape_cast %17 : vector<1x4x8xbf16> to vector<4x8xbf16>
    %cst_17 = arith.constant dense<0.000000e+00> : vector<272x8xf32>
    %19 = tpu.matmul %1, %18, %cst_17 {dimension_numbers = #tpu.dot_dimension_numbers<[1], [0], [0], [1], [0, 0, 1, 1], [], []>} : vector<272x4xbf16>, vector<4x8xbf16>, vector<272x8xf32> -> vector<272x8xf32>
    %c2_18 = arith.constant 2 : index
    %c0_19 = arith.constant 0 : index
    %c0_20 = arith.constant 0 : index
    %20 = vector.load %arg8[%c2_18, %c0_19, %c0_20] : memref<3x272x272xbf16, #tpu.memory_space<vmem>>, vector<1x272x272xbf16>
    %21 = vector.shape_cast %20 : vector<1x272x272xbf16> to vector<272x272xbf16>
    %22 = arith.truncf %19 : vector<272x8xf32> to vector<272x8xbf16>
    %cst_21 = arith.constant dense<0.000000e+00> : vector<272x8xf32>
    %23 = tpu.matmul %21, %22, %cst_21 {dimension_numbers = #tpu.dot_dimension_numbers<[1], [0], [0], [1], [0, 0, 1, 1], [], []>} : vector<272x272xbf16>, vector<272x8xbf16>, vector<272x8xf32> -> vector<272x8xf32>
    %24 = arith.addf %16, %23 : vector<272x8xf32>
    %c0_22 = arith.constant 0 : index
    %c0_23 = arith.constant 0 : index
    %25 = vector.load %arg12[%c0_22, %c0_23] : memref<272x1xf32, #tpu.memory_space<vmem>>, vector<272x1xf32>
    %26 = vector.broadcast %25 : vector<272x1xf32> to vector<272x8xf32>
    %27 = arith.mulf %24, %26 : vector<272x8xf32>
    %c0_24 = arith.constant 0 : index
    %c0_25 = arith.constant 0 : index
    %28 = vector.load %arg10[%c0_24, %c0_25] : memref<4x8xbf16, #tpu.memory_space<vmem>>, vector<4x8xbf16>
    %cst_26 = arith.constant dense<0.000000e+00> : vector<272x8xf32>
    %29 = tpu.matmul %1, %28, %cst_26 {dimension_numbers = #tpu.dot_dimension_numbers<[1], [0], [0], [1], [0, 0, 1, 1], [], []>} : vector<272x4xbf16>, vector<4x8xbf16>, vector<272x8xf32> -> vector<272x8xf32>
    %30 = arith.addf %27, %29 : vector<272x8xf32>
    %c0_27 = arith.constant 0 : index
    %c0_28 = arith.constant 0 : index
    %31 = vector.load %arg11[%c0_27, %c0_28] : memref<1x8xf32, #tpu.memory_space<vmem>>, vector<1x8xf32>
    %32 = vector.broadcast %31 : vector<1x8xf32> to vector<272x8xf32>
    %33 = arith.addf %30, %32 : vector<272x8xf32>
    %cst_29 = arith.constant 0.000000e+00 : f32
    %34 = vector.broadcast %cst_29 : f32 to vector<272x8xf32>
    %35 = arith.maximumf %33, %34 : vector<272x8xf32>
    %c0_30 = arith.constant 0 : index
    %c0_31 = arith.constant 0 : index
    %36 = vector.load %arg13[%c0_30, %c0_31] : memref<560x272xbf16, #tpu.memory_space<vmem>>, vector<560x272xbf16>
    %37 = arith.truncf %35 : vector<272x8xf32> to vector<272x8xbf16>
    %cst_32 = arith.constant dense<0.000000e+00> : vector<560x8xf32>
    %38 = tpu.matmul %36, %37, %cst_32 {dimension_numbers = #tpu.dot_dimension_numbers<[1], [0], [0], [1], [0, 0, 1, 1], [], []>} : vector<560x272xbf16>, vector<272x8xbf16>, vector<560x8xf32> -> vector<560x8xf32>
    %39 = vector.extract_strided_slice %38 {offsets = [0, 0], sizes = [80, 8], strides = [1, 1]} : vector<560x8xf32> to vector<80x8xf32>
    %40 = vector.extract_strided_slice %38 {offsets = [80, 0], sizes = [80, 8], strides = [1, 1]} : vector<560x8xf32> to vector<80x8xf32>
    %41 = arith.maximumf %39, %40 : vector<80x8xf32>
    %42 = vector.extract_strided_slice %38 {offsets = [160, 0], sizes = [80, 8], strides = [1, 1]} : vector<560x8xf32> to vector<80x8xf32>
    %43 = vector.extract_strided_slice %38 {offsets = [240, 0], sizes = [80, 8], strides = [1, 1]} : vector<560x8xf32> to vector<80x8xf32>
    %44 = arith.maximumf %42, %43 : vector<80x8xf32>
    %45 = vector.extract_strided_slice %38 {offsets = [320, 0], sizes = [80, 8], strides = [1, 1]} : vector<560x8xf32> to vector<80x8xf32>
    %46 = vector.extract_strided_slice %38 {offsets = [400, 0], sizes = [80, 8], strides = [1, 1]} : vector<560x8xf32> to vector<80x8xf32>
    %47 = arith.maximumf %45, %46 : vector<80x8xf32>
    %48 = arith.maximumf %41, %44 : vector<80x8xf32>
    %49 = vector.extract_strided_slice %38 {offsets = [480, 0], sizes = [80, 8], strides = [1, 1]} : vector<560x8xf32> to vector<80x8xf32>
    %50 = arith.maximumf %47, %49 : vector<80x8xf32>
    %51 = arith.maximumf %48, %50 : vector<80x8xf32>
    %52 = arith.truncf %51 : vector<80x8xf32> to vector<80x8xbf16>
    %c0_33 = arith.constant 0 : index
    %c0_34 = arith.constant 0 : index
    %c0_35 = arith.constant 0 : index
    %53 = vector.load %arg15[%c0_33, %c0_34, %c0_35] : memref<3x8x16xbf16, #tpu.memory_space<vmem>>, vector<1x8x16xbf16>
    %54 = vector.shape_cast %53 : vector<1x8x16xbf16> to vector<8x16xbf16>
    %cst_36 = arith.constant dense<0.000000e+00> : vector<80x16xf32>
    %55 = tpu.matmul %52, %54, %cst_36 {dimension_numbers = #tpu.dot_dimension_numbers<[1], [0], [0], [1], [0, 0, 1, 1], [], []>} : vector<80x8xbf16>, vector<8x16xbf16>, vector<80x16xf32> -> vector<80x16xf32>
    %c0_37 = arith.constant 0 : index
    %c0_38 = arith.constant 0 : index
    %c0_39 = arith.constant 0 : index
    %56 = vector.load %arg14[%c0_37, %c0_38, %c0_39] : memref<3x80x80xbf16, #tpu.memory_space<vmem>>, vector<1x80x80xbf16>
    %57 = vector.shape_cast %56 : vector<1x80x80xbf16> to vector<80x80xbf16>
    %58 = arith.truncf %55 : vector<80x16xf32> to vector<80x16xbf16>
    %cst_40 = arith.constant dense<0.000000e+00> : vector<80x16xf32>
    %59 = tpu.matmul %57, %58, %cst_40 {dimension_numbers = #tpu.dot_dimension_numbers<[1], [0], [0], [1], [0, 0, 1, 1], [], []>} : vector<80x80xbf16>, vector<80x16xbf16>, vector<80x16xf32> -> vector<80x16xf32>
    %c1_41 = arith.constant 1 : index
    %c0_42 = arith.constant 0 : index
    %c0_43 = arith.constant 0 : index
    %60 = vector.load %arg15[%c1_41, %c0_42, %c0_43] : memref<3x8x16xbf16, #tpu.memory_space<vmem>>, vector<1x8x16xbf16>
    %61 = vector.shape_cast %60 : vector<1x8x16xbf16> to vector<8x16xbf16>
    %cst_44 = arith.constant dense<0.000000e+00> : vector<80x16xf32>
    %62 = tpu.matmul %52, %61, %cst_44 {dimension_numbers = #tpu.dot_dimension_numbers<[1], [0], [0], [1], [0, 0, 1, 1], [], []>} : vector<80x8xbf16>, vector<8x16xbf16>, vector<80x16xf32> -> vector<80x16xf32>
    %c1_45 = arith.constant 1 : index
    %c0_46 = arith.constant 0 : index
    %c0_47 = arith.constant 0 : index
    %63 = vector.load %arg14[%c1_45, %c0_46, %c0_47] : memref<3x80x80xbf16, #tpu.memory_space<vmem>>, vector<1x80x80xbf16>
    %64 = vector.shape_cast %63 : vector<1x80x80xbf16> to vector<80x80xbf16>
    %65 = arith.truncf %62 : vector<80x16xf32> to vector<80x16xbf16>
    %cst_48 = arith.constant dense<0.000000e+00> : vector<80x16xf32>
    %66 = tpu.matmul %64, %65, %cst_48 {dimension_numbers = #tpu.dot_dimension_numbers<[1], [0], [0], [1], [0, 0, 1, 1], [], []>} : vector<80x80xbf16>, vector<80x16xbf16>, vector<80x16xf32> -> vector<80x16xf32>
    %67 = arith.addf %59, %66 : vector<80x16xf32>
    %c2_49 = arith.constant 2 : index
    %c0_50 = arith.constant 0 : index
    %c0_51 = arith.constant 0 : index
    %68 = vector.load %arg15[%c2_49, %c0_50, %c0_51] : memref<3x8x16xbf16, #tpu.memory_space<vmem>>, vector<1x8x16xbf16>
    %69 = vector.shape_cast %68 : vector<1x8x16xbf16> to vector<8x16xbf16>
    %cst_52 = arith.constant dense<0.000000e+00> : vector<80x16xf32>
    %70 = tpu.matmul %52, %69, %cst_52 {dimension_numbers = #tpu.dot_dimension_numbers<[1], [0], [0], [1], [0, 0, 1, 1], [], []>} : vector<80x8xbf16>, vector<8x16xbf16>, vector<80x16xf32> -> vector<80x16xf32>
    %c2_53 = arith.constant 2 : index
    %c0_54 = arith.constant 0 : index
    %c0_55 = arith.constant 0 : index
    %71 = vector.load %arg14[%c2_53, %c0_54, %c0_55] : memref<3x80x80xbf16, #tpu.memory_space<vmem>>, vector<1x80x80xbf16>
    %72 = vector.shape_cast %71 : vector<1x80x80xbf16> to vector<80x80xbf16>
    %73 = arith.truncf %70 : vector<80x16xf32> to vector<80x16xbf16>
    %cst_56 = arith.constant dense<0.000000e+00> : vector<80x16xf32>
    %74 = tpu.matmul %72, %73, %cst_56 {dimension_numbers = #tpu.dot_dimension_numbers<[1], [0], [0], [1], [0, 0, 1, 1], [], []>} : vector<80x80xbf16>, vector<80x16xbf16>, vector<80x16xf32> -> vector<80x16xf32>
    %75 = arith.addf %67, %74 : vector<80x16xf32>
    %c0_57 = arith.constant 0 : index
    %c0_58 = arith.constant 0 : index
    %76 = vector.load %arg18[%c0_57, %c0_58] : memref<80x1xf32, #tpu.memory_space<vmem>>, vector<80x1xf32>
    %77 = vector.broadcast %76 : vector<80x1xf32> to vector<80x16xf32>
    %78 = arith.mulf %75, %77 : vector<80x16xf32>
    %c0_59 = arith.constant 0 : index
    %c0_60 = arith.constant 0 : index
    %79 = vector.load %arg16[%c0_59, %c0_60] : memref<8x16xbf16, #tpu.memory_space<vmem>>, vector<8x16xbf16>
    %cst_61 = arith.constant dense<0.000000e+00> : vector<80x16xf32>
    %80 = tpu.matmul %52, %79, %cst_61 {dimension_numbers = #tpu.dot_dimension_numbers<[1], [0], [0], [1], [0, 0, 1, 1], [], []>} : vector<80x8xbf16>, vector<8x16xbf16>, vector<80x16xf32> -> vector<80x16xf32>
    %81 = arith.addf %78, %80 : vector<80x16xf32>
    %c0_62 = arith.constant 0 : index
    %c0_63 = arith.constant 0 : index
    %82 = vector.load %arg17[%c0_62, %c0_63] : memref<1x16xf32, #tpu.memory_space<vmem>>, vector<1x16xf32>
    %83 = vector.broadcast %82 : vector<1x16xf32> to vector<80x16xf32>
    %84 = arith.addf %81, %83 : vector<80x16xf32>
    %cst_64 = arith.constant 0.000000e+00 : f32
    %85 = vector.broadcast %cst_64 : f32 to vector<80x16xf32>
    %86 = arith.maximumf %84, %85 : vector<80x16xf32>
    %c0_65 = arith.constant 0 : index
    %c0_66 = arith.constant 0 : index
    %87 = vector.load %arg19[%c0_65, %c0_66] : memref<224x80xbf16, #tpu.memory_space<vmem>>, vector<224x80xbf16>
    %88 = arith.truncf %86 : vector<80x16xf32> to vector<80x16xbf16>
    %cst_67 = arith.constant dense<0.000000e+00> : vector<224x16xf32>
    %89 = tpu.matmul %87, %88, %cst_67 {dimension_numbers = #tpu.dot_dimension_numbers<[1], [0], [0], [1], [0, 0, 1, 1], [], []>} : vector<224x80xbf16>, vector<80x16xbf16>, vector<224x16xf32> -> vector<224x16xf32>
    %90 = vector.extract_strided_slice %89 {offsets = [0, 0], sizes = [32, 16], strides = [1, 1]} : vector<224x16xf32> to vector<32x16xf32>
    %91 = vector.extract_strided_slice %89 {offsets = [32, 0], sizes = [32, 16], strides = [1, 1]} : vector<224x16xf32> to vector<32x16xf32>
    %92 = arith.maximumf %90, %91 : vector<32x16xf32>
    %93 = vector.extract_strided_slice %89 {offsets = [64, 0], sizes = [32, 16], strides = [1, 1]} : vector<224x16xf32> to vector<32x16xf32>
    %94 = vector.extract_strided_slice %89 {offsets = [96, 0], sizes = [32, 16], strides = [1, 1]} : vector<224x16xf32> to vector<32x16xf32>
    %95 = arith.maximumf %93, %94 : vector<32x16xf32>
    %96 = vector.extract_strided_slice %89 {offsets = [128, 0], sizes = [32, 16], strides = [1, 1]} : vector<224x16xf32> to vector<32x16xf32>
    %97 = vector.extract_strided_slice %89 {offsets = [160, 0], sizes = [32, 16], strides = [1, 1]} : vector<224x16xf32> to vector<32x16xf32>
    %98 = arith.maximumf %96, %97 : vector<32x16xf32>
    %99 = arith.maximumf %92, %95 : vector<32x16xf32>
    %100 = vector.extract_strided_slice %89 {offsets = [192, 0], sizes = [32, 16], strides = [1, 1]} : vector<224x16xf32> to vector<32x16xf32>
    %101 = arith.maximumf %98, %100 : vector<32x16xf32>
    %102 = arith.maximumf %99, %101 : vector<32x16xf32>
    %103 = arith.truncf %102 : vector<32x16xf32> to vector<32x16xbf16>
    %c0_68 = arith.constant 0 : index
    %c0_69 = arith.constant 0 : index
    %c0_70 = arith.constant 0 : index
    %104 = vector.load %arg21[%c0_68, %c0_69, %c0_70] : memref<3x16x32xbf16, #tpu.memory_space<vmem>>, vector<1x16x32xbf16>
    %105 = vector.shape_cast %104 : vector<1x16x32xbf16> to vector<16x32xbf16>
    %cst_71 = arith.constant dense<0.000000e+00> : vector<32x32xf32>
    %106 = tpu.matmul %103, %105, %cst_71 {dimension_numbers = #tpu.dot_dimension_numbers<[1], [0], [0], [1], [0, 0, 1, 1], [], []>} : vector<32x16xbf16>, vector<16x32xbf16>, vector<32x32xf32> -> vector<32x32xf32>
    %c0_72 = arith.constant 0 : index
    %c0_73 = arith.constant 0 : index
    %c0_74 = arith.constant 0 : index
    %107 = vector.load %arg20[%c0_72, %c0_73, %c0_74] : memref<3x32x32xbf16, #tpu.memory_space<vmem>>, vector<1x32x32xbf16>
    %108 = vector.shape_cast %107 : vector<1x32x32xbf16> to vector<32x32xbf16>
    %109 = arith.truncf %106 : vector<32x32xf32> to vector<32x32xbf16>
    %cst_75 = arith.constant dense<0.000000e+00> : vector<32x32xf32>
    %110 = tpu.matmul %108, %109, %cst_75 {dimension_numbers = #tpu.dot_dimension_numbers<[1], [0], [0], [1], [0, 0, 1, 1], [], []>} : vector<32x32xbf16>, vector<32x32xbf16>, vector<32x32xf32> -> vector<32x32xf32>
    %c1_76 = arith.constant 1 : index
    %c0_77 = arith.constant 0 : index
    %c0_78 = arith.constant 0 : index
    %111 = vector.load %arg21[%c1_76, %c0_77, %c0_78] : memref<3x16x32xbf16, #tpu.memory_space<vmem>>, vector<1x16x32xbf16>
    %112 = vector.shape_cast %111 : vector<1x16x32xbf16> to vector<16x32xbf16>
    %cst_79 = arith.constant dense<0.000000e+00> : vector<32x32xf32>
    %113 = tpu.matmul %103, %112, %cst_79 {dimension_numbers = #tpu.dot_dimension_numbers<[1], [0], [0], [1], [0, 0, 1, 1], [], []>} : vector<32x16xbf16>, vector<16x32xbf16>, vector<32x32xf32> -> vector<32x32xf32>
    %c1_80 = arith.constant 1 : index
    %c0_81 = arith.constant 0 : index
    %c0_82 = arith.constant 0 : index
    %114 = vector.load %arg20[%c1_80, %c0_81, %c0_82] : memref<3x32x32xbf16, #tpu.memory_space<vmem>>, vector<1x32x32xbf16>
    %115 = vector.shape_cast %114 : vector<1x32x32xbf16> to vector<32x32xbf16>
    %116 = arith.truncf %113 : vector<32x32xf32> to vector<32x32xbf16>
    %cst_83 = arith.constant dense<0.000000e+00> : vector<32x32xf32>
    %117 = tpu.matmul %115, %116, %cst_83 {dimension_numbers = #tpu.dot_dimension_numbers<[1], [0], [0], [1], [0, 0, 1, 1], [], []>} : vector<32x32xbf16>, vector<32x32xbf16>, vector<32x32xf32> -> vector<32x32xf32>
    %118 = arith.addf %110, %117 : vector<32x32xf32>
    %c2_84 = arith.constant 2 : index
    %c0_85 = arith.constant 0 : index
    %c0_86 = arith.constant 0 : index
    %119 = vector.load %arg21[%c2_84, %c0_85, %c0_86] : memref<3x16x32xbf16, #tpu.memory_space<vmem>>, vector<1x16x32xbf16>
    %120 = vector.shape_cast %119 : vector<1x16x32xbf16> to vector<16x32xbf16>
    %cst_87 = arith.constant dense<0.000000e+00> : vector<32x32xf32>
    %121 = tpu.matmul %103, %120, %cst_87 {dimension_numbers = #tpu.dot_dimension_numbers<[1], [0], [0], [1], [0, 0, 1, 1], [], []>} : vector<32x16xbf16>, vector<16x32xbf16>, vector<32x32xf32> -> vector<32x32xf32>
    %c2_88 = arith.constant 2 : index
    %c0_89 = arith.constant 0 : index
    %c0_90 = arith.constant 0 : index
    %122 = vector.load %arg20[%c2_88, %c0_89, %c0_90] : memref<3x32x32xbf16, #tpu.memory_space<vmem>>, vector<1x32x32xbf16>
    %123 = vector.shape_cast %122 : vector<1x32x32xbf16> to vector<32x32xbf16>
    %124 = arith.truncf %121 : vector<32x32xf32> to vector<32x32xbf16>
    %cst_91 = arith.constant dense<0.000000e+00> : vector<32x32xf32>
    %125 = tpu.matmul %123, %124, %cst_91 {dimension_numbers = #tpu.dot_dimension_numbers<[1], [0], [0], [1], [0, 0, 1, 1], [], []>} : vector<32x32xbf16>, vector<32x32xbf16>, vector<32x32xf32> -> vector<32x32xf32>
    %126 = arith.addf %118, %125 : vector<32x32xf32>
    %c0_92 = arith.constant 0 : index
    %c0_93 = arith.constant 0 : index
    %127 = vector.load %arg24[%c0_92, %c0_93] : memref<32x1xf32, #tpu.memory_space<vmem>>, vector<32x1xf32>
    %128 = vector.broadcast %127 : vector<32x1xf32> to vector<32x32xf32>
    %129 = arith.mulf %126, %128 : vector<32x32xf32>
    %c0_94 = arith.constant 0 : index
    %c0_95 = arith.constant 0 : index
    %130 = vector.load %arg22[%c0_94, %c0_95] : memref<16x32xbf16, #tpu.memory_space<vmem>>, vector<16x32xbf16>
    %cst_96 = arith.constant dense<0.000000e+00> : vector<32x32xf32>
    %131 = tpu.matmul %103, %130, %cst_96 {dimension_numbers = #tpu.dot_dimension_numbers<[1], [0], [0], [1], [0, 0, 1, 1], [], []>} : vector<32x16xbf16>, vector<16x32xbf16>, vector<32x32xf32> -> vector<32x32xf32>
    %132 = arith.addf %129, %131 : vector<32x32xf32>
    %c0_97 = arith.constant 0 : index
    %c0_98 = arith.constant 0 : index
    %133 = vector.load %arg23[%c0_97, %c0_98] : memref<1x32xf32, #tpu.memory_space<vmem>>, vector<1x32xf32>
    %134 = vector.broadcast %133 : vector<1x32xf32> to vector<32x32xf32>
    %135 = arith.addf %132, %134 : vector<32x32xf32>
    %cst_99 = arith.constant 0.000000e+00 : f32
    %136 = vector.broadcast %cst_99 : f32 to vector<32x32xf32>
    %137 = arith.maximumf %135, %136 : vector<32x32xf32>
    %c0_100 = arith.constant 0 : index
    %c0_101 = arith.constant 0 : index
    %138 = vector.load %arg25[%c0_100, %c0_101] : memref<112x32xbf16, #tpu.memory_space<vmem>>, vector<112x32xbf16>
    %139 = arith.truncf %137 : vector<32x32xf32> to vector<32x32xbf16>
    %cst_102 = arith.constant dense<0.000000e+00> : vector<112x32xf32>
    %140 = tpu.matmul %138, %139, %cst_102 {dimension_numbers = #tpu.dot_dimension_numbers<[1], [0], [0], [1], [0, 0, 1, 1], [], []>} : vector<112x32xbf16>, vector<32x32xbf16>, vector<112x32xf32> -> vector<112x32xf32>
    %141 = vector.extract_strided_slice %140 {offsets = [0, 0], sizes = [16, 32], strides = [1, 1]} : vector<112x32xf32> to vector<16x32xf32>
    %142 = vector.extract_strided_slice %140 {offsets = [16, 0], sizes = [16, 32], strides = [1, 1]} : vector<112x32xf32> to vector<16x32xf32>
    %143 = arith.maximumf %141, %142 : vector<16x32xf32>
    %144 = vector.extract_strided_slice %140 {offsets = [32, 0], sizes = [16, 32], strides = [1, 1]} : vector<112x32xf32> to vector<16x32xf32>
    %145 = vector.extract_strided_slice %140 {offsets = [48, 0], sizes = [16, 32], strides = [1, 1]} : vector<112x32xf32> to vector<16x32xf32>
    %146 = arith.maximumf %144, %145 : vector<16x32xf32>
    %147 = vector.extract_strided_slice %140 {offsets = [64, 0], sizes = [16, 32], strides = [1, 1]} : vector<112x32xf32> to vector<16x32xf32>
    %148 = vector.extract_strided_slice %140 {offsets = [80, 0], sizes = [16, 32], strides = [1, 1]} : vector<112x32xf32> to vector<16x32xf32>
    %149 = arith.maximumf %147, %148 : vector<16x32xf32>
    %150 = arith.maximumf %143, %146 : vector<16x32xf32>
    %151 = vector.extract_strided_slice %140 {offsets = [96, 0], sizes = [16, 32], strides = [1, 1]} : vector<112x32xf32> to vector<16x32xf32>
    %152 = arith.maximumf %149, %151 : vector<16x32xf32>
    %153 = arith.maximumf %150, %152 : vector<16x32xf32>
    %154 = arith.truncf %153 : vector<16x32xf32> to vector<16x32xbf16>
    %c0_103 = arith.constant 0 : index
    %c0_104 = arith.constant 0 : index
    %c0_105 = arith.constant 0 : index
    %155 = vector.load %arg27[%c0_103, %c0_104, %c0_105] : memref<3x32x32xbf16, #tpu.memory_space<vmem>>, vector<1x32x32xbf16>
    %156 = vector.shape_cast %155 : vector<1x32x32xbf16> to vector<32x32xbf16>
    %cst_106 = arith.constant dense<0.000000e+00> : vector<16x32xf32>
    %157 = tpu.matmul %154, %156, %cst_106 {dimension_numbers = #tpu.dot_dimension_numbers<[1], [0], [0], [1], [0, 0, 1, 1], [], []>} : vector<16x32xbf16>, vector<32x32xbf16>, vector<16x32xf32> -> vector<16x32xf32>
    %c0_107 = arith.constant 0 : index
    %c0_108 = arith.constant 0 : index
    %c0_109 = arith.constant 0 : index
    %158 = vector.load %arg26[%c0_107, %c0_108, %c0_109] : memref<3x16x16xbf16, #tpu.memory_space<vmem>>, vector<1x16x16xbf16>
    %159 = vector.shape_cast %158 : vector<1x16x16xbf16> to vector<16x16xbf16>
    %160 = arith.truncf %157 : vector<16x32xf32> to vector<16x32xbf16>
    %cst_110 = arith.constant dense<0.000000e+00> : vector<16x32xf32>
    %161 = tpu.matmul %159, %160, %cst_110 {dimension_numbers = #tpu.dot_dimension_numbers<[1], [0], [0], [1], [0, 0, 1, 1], [], []>} : vector<16x16xbf16>, vector<16x32xbf16>, vector<16x32xf32> -> vector<16x32xf32>
    %c1_111 = arith.constant 1 : index
    %c0_112 = arith.constant 0 : index
    %c0_113 = arith.constant 0 : index
    %162 = vector.load %arg27[%c1_111, %c0_112, %c0_113] : memref<3x32x32xbf16, #tpu.memory_space<vmem>>, vector<1x32x32xbf16>
    %163 = vector.shape_cast %162 : vector<1x32x32xbf16> to vector<32x32xbf16>
    %cst_114 = arith.constant dense<0.000000e+00> : vector<16x32xf32>
    %164 = tpu.matmul %154, %163, %cst_114 {dimension_numbers = #tpu.dot_dimension_numbers<[1], [0], [0], [1], [0, 0, 1, 1], [], []>} : vector<16x32xbf16>, vector<32x32xbf16>, vector<16x32xf32> -> vector<16x32xf32>
    %c1_115 = arith.constant 1 : index
    %c0_116 = arith.constant 0 : index
    %c0_117 = arith.constant 0 : index
    %165 = vector.load %arg26[%c1_115, %c0_116, %c0_117] : memref<3x16x16xbf16, #tpu.memory_space<vmem>>, vector<1x16x16xbf16>
    %166 = vector.shape_cast %165 : vector<1x16x16xbf16> to vector<16x16xbf16>
    %167 = arith.truncf %164 : vector<16x32xf32> to vector<16x32xbf16>
    %cst_118 = arith.constant dense<0.000000e+00> : vector<16x32xf32>
    %168 = tpu.matmul %166, %167, %cst_118 {dimension_numbers = #tpu.dot_dimension_numbers<[1], [0], [0], [1], [0, 0, 1, 1], [], []>} : vector<16x16xbf16>, vector<16x32xbf16>, vector<16x32xf32> -> vector<16x32xf32>
    %169 = arith.addf %161, %168 : vector<16x32xf32>
    %c2_119 = arith.constant 2 : index
    %c0_120 = arith.constant 0 : index
    %c0_121 = arith.constant 0 : index
    %170 = vector.load %arg27[%c2_119, %c0_120, %c0_121] : memref<3x32x32xbf16, #tpu.memory_space<vmem>>, vector<1x32x32xbf16>
    %171 = vector.shape_cast %170 : vector<1x32x32xbf16> to vector<32x32xbf16>
    %cst_122 = arith.constant dense<0.000000e+00> : vector<16x32xf32>
    %172 = tpu.matmul %154, %171, %cst_122 {dimension_numbers = #tpu.dot_dimension_numbers<[1], [0], [0], [1], [0, 0, 1, 1], [], []>} : vector<16x32xbf16>, vector<32x32xbf16>, vector<16x32xf32> -> vector<16x32xf32>
    %c2_123 = arith.constant 2 : index
    %c0_124 = arith.constant 0 : index
    %c0_125 = arith.constant 0 : index
    %173 = vector.load %arg26[%c2_123, %c0_124, %c0_125] : memref<3x16x16xbf16, #tpu.memory_space<vmem>>, vector<1x16x16xbf16>
    %174 = vector.shape_cast %173 : vector<1x16x16xbf16> to vector<16x16xbf16>
    %175 = arith.truncf %172 : vector<16x32xf32> to vector<16x32xbf16>
    %cst_126 = arith.constant dense<0.000000e+00> : vector<16x32xf32>
    %176 = tpu.matmul %174, %175, %cst_126 {dimension_numbers = #tpu.dot_dimension_numbers<[1], [0], [0], [1], [0, 0, 1, 1], [], []>} : vector<16x16xbf16>, vector<16x32xbf16>, vector<16x32xf32> -> vector<16x32xf32>
    %177 = arith.addf %169, %176 : vector<16x32xf32>
    %c0_127 = arith.constant 0 : index
    %c0_128 = arith.constant 0 : index
    %178 = vector.load %arg30[%c0_127, %c0_128] : memref<16x1xf32, #tpu.memory_space<vmem>>, vector<16x1xf32>
    %179 = vector.broadcast %178 : vector<16x1xf32> to vector<16x32xf32>
    %180 = arith.mulf %177, %179 : vector<16x32xf32>
    %c0_129 = arith.constant 0 : index
    %c0_130 = arith.constant 0 : index
    %181 = vector.load %arg28[%c0_129, %c0_130] : memref<32x32xbf16, #tpu.memory_space<vmem>>, vector<32x32xbf16>
    %cst_131 = arith.constant dense<0.000000e+00> : vector<16x32xf32>
    %182 = tpu.matmul %154, %181, %cst_131 {dimension_numbers = #tpu.dot_dimension_numbers<[1], [0], [0], [1], [0, 0, 1, 1], [], []>} : vector<16x32xbf16>, vector<32x32xbf16>, vector<16x32xf32> -> vector<16x32xf32>
    %183 = arith.addf %180, %182 : vector<16x32xf32>
    %c0_132 = arith.constant 0 : index
    %c0_133 = arith.constant 0 : index
    %184 = vector.load %arg29[%c0_132, %c0_133] : memref<1x32xf32, #tpu.memory_space<vmem>>, vector<1x32xf32>
    %185 = vector.broadcast %184 : vector<1x32xf32> to vector<16x32xf32>
    %186 = arith.addf %183, %185 : vector<16x32xf32>
    %cst_134 = arith.constant 0.000000e+00 : f32
    %187 = vector.broadcast %cst_134 : f32 to vector<16x32xf32>
    %188 = arith.maximumf %186, %187 : vector<16x32xf32>
    %c0_135 = arith.constant 0 : index
    %c0_136 = arith.constant 0 : index
    %189 = vector.load %arg31[%c0_135, %c0_136] : memref<112x16xbf16, #tpu.memory_space<vmem>>, vector<112x16xbf16>
    %190 = arith.truncf %188 : vector<16x32xf32> to vector<16x32xbf16>
    %cst_137 = arith.constant dense<0.000000e+00> : vector<112x32xf32>
    %191 = tpu.matmul %189, %190, %cst_137 {dimension_numbers = #tpu.dot_dimension_numbers<[1], [0], [0], [1], [0, 0, 1, 1], [], []>} : vector<112x16xbf16>, vector<16x32xbf16>, vector<112x32xf32> -> vector<112x32xf32>
    %192 = vector.extract_strided_slice %191 {offsets = [0, 0], sizes = [16, 32], strides = [1, 1]} : vector<112x32xf32> to vector<16x32xf32>
    %193 = vector.extract_strided_slice %191 {offsets = [16, 0], sizes = [16, 32], strides = [1, 1]} : vector<112x32xf32> to vector<16x32xf32>
    %194 = arith.maximumf %192, %193 : vector<16x32xf32>
    %195 = vector.extract_strided_slice %191 {offsets = [32, 0], sizes = [16, 32], strides = [1, 1]} : vector<112x32xf32> to vector<16x32xf32>
    %196 = vector.extract_strided_slice %191 {offsets = [48, 0], sizes = [16, 32], strides = [1, 1]} : vector<112x32xf32> to vector<16x32xf32>
    %197 = arith.maximumf %195, %196 : vector<16x32xf32>
    %198 = vector.extract_strided_slice %191 {offsets = [64, 0], sizes = [16, 32], strides = [1, 1]} : vector<112x32xf32> to vector<16x32xf32>
    %199 = vector.extract_strided_slice %191 {offsets = [80, 0], sizes = [16, 32], strides = [1, 1]} : vector<112x32xf32> to vector<16x32xf32>
    %200 = arith.maximumf %198, %199 : vector<16x32xf32>
    %201 = arith.maximumf %194, %197 : vector<16x32xf32>
    %202 = vector.extract_strided_slice %191 {offsets = [96, 0], sizes = [16, 32], strides = [1, 1]} : vector<112x32xf32> to vector<16x32xf32>
    %203 = arith.maximumf %200, %202 : vector<16x32xf32>
    %204 = arith.maximumf %201, %203 : vector<16x32xf32>
    %c0_138 = arith.constant 0 : index
    %c0_139 = arith.constant 0 : index
    %205 = vector.load %arg1[%c0_138, %c0_139] : memref<1x16xf32, #tpu.memory_space<vmem>>, vector<1x16xf32>
    %c0_140 = arith.constant 0 : index
    %c0_141 = arith.constant 0 : index
    %206 = vector.load %arg2[%c0_140, %c0_141] : memref<1x16xf32, #tpu.memory_space<vmem>>, vector<1x16xf32>
    %cst_142 = arith.constant dense<0.000000e+00> : vector<1x32xf32>
    %207 = tpu.matmul %206, %204, %cst_142 {dimension_numbers = #tpu.dot_dimension_numbers<[1], [0], [0], [1], [0, 0, 1, 1], [], []>} : vector<1x16xf32>, vector<16x32xf32>, vector<1x32xf32> -> vector<1x32xf32>
    %208 = vector.shape_cast %205 : vector<1x16xf32> to vector<1x16x1xf32>
    %cst_143 = arith.constant 5.000000e-01 : f32
    %209 = vector.broadcast %cst_143 : f32 to vector<1x16x1xf32>
    %210 = arith.cmpf ogt, %208, %209 : vector<1x16x1xf32>
    %211 = vector.shape_cast %204 : vector<16x32xf32> to vector<1x16x32xf32>
    %cst_144 = arith.constant -3.000000e+38 : f32
    %212 = vector.shape_cast %210 : vector<1x16x1xi1> to vector<1x16x1xi1>
    %213 = vector.broadcast %212 : vector<1x16x1xi1> to vector<1x16x32xi1>
    %214 = vector.broadcast %cst_144 : f32 to vector<1x16x32xf32>
    %215 = arith.select %213, %211, %214 : vector<1x16x32xi1>, vector<1x16x32xf32>
    %cst_145 = arith.constant dense<0xFF800000> : vector<1x32xf32>
    %216 = vector.multi_reduction <maximumf>, %215, %cst_145 [1] : vector<1x16x32xf32> to vector<1x32xf32>
    %c0_146 = arith.constant 0 : index
    %c0_147 = arith.constant 0 : index
    %217 = vector.load %arg3[%c0_146, %c0_147] : memref<32x32xf32, #tpu.memory_space<vmem>>, vector<32x32xf32>
    %cst_148 = arith.constant dense<0.000000e+00> : vector<1x32xf32>
    %218 = tpu.matmul %216, %217, %cst_148 {dimension_numbers = #tpu.dot_dimension_numbers<[1], [0], [0], [1], [0, 0, 1, 1], [], []>} : vector<1x32xf32>, vector<32x32xf32>, vector<1x32xf32> -> vector<1x32xf32>
    %c0_149 = arith.constant 0 : index
    %c0_150 = arith.constant 0 : index
    %219 = vector.load %arg4[%c0_149, %c0_150] : memref<32x32xf32, #tpu.memory_space<vmem>>, vector<32x32xf32>
    %cst_151 = arith.constant dense<0.000000e+00> : vector<1x32xf32>
    %220 = tpu.matmul %207, %219, %cst_151 {dimension_numbers = #tpu.dot_dimension_numbers<[1], [0], [0], [1], [0, 0, 1, 1], [], []>} : vector<1x32xf32>, vector<32x32xf32>, vector<1x32xf32> -> vector<1x32xf32>
    %221 = arith.addf %218, %220 : vector<1x32xf32>
    %c0_152 = arith.constant 0 : index
    %c0_153 = arith.constant 0 : index
    %222 = vector.load %arg5[%c0_152, %c0_153] : memref<1x32xf32, #tpu.memory_space<vmem>>, vector<1x32xf32>
    %223 = arith.addf %221, %222 : vector<1x32xf32>
    %cst_154 = arith.constant 0.000000e+00 : f32
    %224 = vector.broadcast %cst_154 : f32 to vector<1x32xf32>
    %225 = arith.maximumf %223, %224 : vector<1x32xf32>
    %c0_155 = arith.constant 0 : index
    %c0_156 = arith.constant 0 : index
    %226 = vector.load %arg6[%c0_155, %c0_156] : memref<32x1xf32, #tpu.memory_space<vmem>>, vector<32x1xf32>
    %cst_157 = arith.constant dense<0.000000e+00> : vector<1x1xf32>
    %227 = tpu.matmul %225, %226, %cst_157 {dimension_numbers = #tpu.dot_dimension_numbers<[1], [0], [0], [1], [0, 0, 1, 1], [], []>} : vector<1x32xf32>, vector<32x1xf32>, vector<1x1xf32> -> vector<1x1xf32>
    %c0_158 = arith.constant 0 : index
    %c0_159 = arith.constant 0 : index
    %228 = vector.load %arg7[%c0_158, %c0_159] : memref<1x1xf32, #tpu.memory_space<vmem>>, vector<1x1xf32>
    %229 = arith.addf %227, %228 : vector<1x1xf32>
    %c0_160 = arith.constant 0 : index
    %c0_161 = arith.constant 0 : index
    %230 = vector.load %arg32[%c0_160, %c0_161] : memref<1x1xf32, #tpu.memory_space<vmem>>, vector<1x1xf32>
    tpu.vector_store %arg32[%c0_160, %c0_161], %229 {strides = array<i32>} : memref<1x1xf32, #tpu.memory_space<vmem>>, vector<1x1xf32>,
    return
  }
}

</mosaic_0001>

<llo_original>
// kernel: monet_polar_regression_forward.1
$region0: #{monet_polar_regression_forward.1}
  #allocation0 [shape = 'u32[]', space=smem, size = 0x4, offset = 0x4, fixed_abs, tag = 'smem constant byte address 0x4 - core index']
  #allocation1 [shape = 'u32[72,128]{1,0:T(1,128)}', space=vmem, size = 0x9000, scoped, tag = 'internal scratch']
  #allocation2 [shape = 'f32[1,1]{1,0:T(1,128)S(1)}', space=vmem, size = 0x200, scoped, tag = 'scoped memory for monet_polar_regression_forward.1']
  %s0 = inlined_call_operand.smem [shape: u32[33], index: -1, kind: input, shape index: {}]
  %s1 = sld [smem:[%s0]]
  %s2 = scalar_lea.smem %s0, 1
  %s3 = sld [smem:[%s2]]
  %s4 = scalar_lea.smem %s0, 2
  %s5 = sld [smem:[%s4]]
  %s6 = scalar_lea.smem %s0, 3
  %s7 = sld [smem:[%s6]]
  %s8 = scalar_lea.smem %s0, 4
  %s9 = sld [smem:[%s8]]
  %s10 = scalar_lea.smem %s0, 5
  %s11 = sld [smem:[%s10]]
  %s12 = scalar_lea.smem %s0, 6
  %s13 = sld [smem:[%s12]]
  %s14 = scalar_lea.smem %s0, 7
  %s15 = sld [smem:[%s14]]
  %s16 = scalar_lea.smem %s0, 8
  %s17 = sld [smem:[%s16]]
  %s18 = scalar_lea.smem %s0, 9
  %s19 = sld [smem:[%s18]]
  %s20 = scalar_lea.smem %s0, 10
  %s21 = sld [smem:[%s20]]
  %s22 = scalar_lea.smem %s0, 11
  %s23 = sld [smem:[%s22]]
  %s24 = scalar_lea.smem %s0, 12
  %s25 = sld [smem:[%s24]]
  %s26 = scalar_lea.smem %s0, 13
  %s27 = sld [smem:[%s26]]
  %s28 = scalar_lea.smem %s0, 14
  %s29 = sld [smem:[%s28]]
  %s30 = scalar_lea.smem %s0, 15
  %s31 = sld [smem:[%s30]]
  %s32 = scalar_lea.smem %s0, 16
  %s33 = sld [smem:[%s32]]
  %s34 = scalar_lea.smem %s0, 17
  %s35 = sld [smem:[%s34]]
  %s36 = scalar_lea.smem %s0, 18
  %s37 = sld [smem:[%s36]]
  %s38 = scalar_lea.smem %s0, 19
  %s39 = sld [smem:[%s38]]
  %s40 = scalar_lea.smem %s0, 20
  %s41 = sld [smem:[%s40]]
  %s42 = scalar_lea.smem %s0, 21
  %s43 = sld [smem:[%s42]]
  %s44 = scalar_lea.smem %s0, 22
  %s45 = sld [smem:[%s44]]
  %s46 = scalar_lea.smem %s0, 23
  %s47 = sld [smem:[%s46]]
  %s48 = scalar_lea.smem %s0, 24
  %s49 = sld [smem:[%s48]]
  %s50 = scalar_lea.smem %s0, 25
  %s51 = sld [smem:[%s50]]
  %s52 = scalar_lea.smem %s0, 26
  %s53 = sld [smem:[%s52]]
  %s54 = scalar_lea.smem %s0, 27
  %s55 = sld [smem:[%s54]]
  %s56 = scalar_lea.smem %s0, 28
  %s57 = sld [smem:[%s56]]
  %s58 = scalar_lea.smem %s0, 29
  %s59 = sld [smem:[%s58]]
  %s60 = scalar_lea.smem %s0, 30
  %s61 = sld [smem:[%s60]]
  %s62 = scalar_lea.smem %s0, 31
  %s63 = sld [smem:[%s62]]
  %s64 = scalar_lea.smem %s0, 32
  %s65 = sld [smem:[%s64]]
  %s66 = sld [smem:[#allocation0]]
  $region138: #{monet_polar_regression_forward.1} parent=0
    _
  %s68 = ssub.s32 1, %s66
  %s69 = scalar_select 0, %s68, %s66
  %v70 = vstv %s15
  %71 = vst [vmem:[#allocation2] sm:$0x1] %v70
  $region1: #{monet_polar_regression_forward.1} parent=0
    #allocation3 [shape = 'u8[512]{0}', space=vmem, size = 0x400, scoped, tag = 'output window, operand 0, single buffered']
    #allocation4 [shape = 's32[1]{0}', space=sflag, size = 0x4, scoped, tag = 'scoped memory for monet_polar_regression_forward.1']
    %72 = vsyncpa [#allocation4], 0
    // Predicated region
    $region2: #{monet_polar_regression_forward.1} parent=1 // pred_check
      _
    $region3: #{monet_polar_regression_forward.1} parent=1 // pred_check_branch
      %74 = sbr.rel (0) target = $region5
    $region4: #{monet_polar_regression_forward.1} parent=1 // pred_region
      _
    $region5: #{monet_polar_regression_forward.1} parent=1 // pred_fallthru
      _
    // Predicated region
    $region6: #{monet_polar_regression_forward.1} parent=1 // pred_check
      _
    $region7: #{monet_polar_regression_forward.1} parent=1 // pred_check_branch
      %76 = sbr.rel (0) target = $region9
    $region8: #{monet_polar_regression_forward.1} parent=1 // pred_region
      _
    $region9: #{monet_polar_regression_forward.1} parent=1 // pred_fallthru
      _
    // Predicated region
    $region10: #{monet_polar_regression_forward.1} parent=1 // pred_check
      _
    $region11: #{monet_polar_regression_forward.1} parent=1 // pred_check_branch
      %78 = sbr.rel (0) target = $region13
    $region12: #{monet_polar_regression_forward.1} parent=1 // pred_region
      _
    $region13: #{monet_polar_regression_forward.1} parent=1 // pred_fallthru
      _
    // Predicated region
    $region14: #{monet_polar_regression_forward.1} parent=1 // pred_check
      _
    $region15: #{monet_polar_regression_forward.1} parent=1 // pred_check_branch
      %80 = sbr.rel (0) target = $region17
    $region16: #{monet_polar_regression_forward.1} parent=1 // pred_region
      _
    $region17: #{monet_polar_regression_forward.1} parent=1 // pred_fallthru
      _
    // Predicated region
    $region18: #{monet_polar_regression_forward.1} parent=1 // pred_check
      _
    $region19: #{monet_polar_regression_forward.1} parent=1 // pred_check_branch
      %82 = sbr.rel (0) target = $region21
    $region20: #{monet_polar_regression_forward.1} parent=1 // pred_region
      _
    $region21: #{monet_polar_regression_forward.1} parent=1 // pred_fallthru
      _
    // Predicated region
    $region22: #{monet_polar_regression_forward.1} parent=1 // pred_check
      _
    $region23: #{monet_polar_regression_forward.1} parent=1 // pred_check_branch
      %84 = sbr.rel (0) target = $region25
    $region24: #{monet_polar_regression_forward.1} parent=1 // pred_region
      _
    $region25: #{monet_polar_regression_forward.1} parent=1 // pred_fallthru
      _
    // Predicated region
    $region26: #{monet_polar_regression_forward.1} parent=1 // pred_check
      _
    $region27: #{monet_polar_regression_forward.1} parent=1 // pred_check_branch
      %86 = sbr.rel (0) target = $region29
    $region28: #{monet_polar_regression_forward.1} parent=1 // pred_region
      _
    $region29: #{monet_polar_regression_forward.1} parent=1 // pred_fallthru
      _
    // Predicated region
    $region30: #{monet_polar_regression_forward.1} parent=1 // pred_check
      _
    $region31: #{monet_polar_regression_forward.1} parent=1 // pred_check_branch
      %88 = sbr.rel (0) target = $region33
    $region32: #{monet_polar_regression_forward.1} parent=1 // pred_region
      _
    $region33: #{monet_polar_regression_forward.1} parent=1 // pred_fallthru
      _
    // Predicated region
    $region34: #{monet_polar_regression_forward.1} parent=1 // pred_check
      _
    $region35: #{monet_polar_regression_forward.1} parent=1 // pred_check_branch
      %90 = sbr.rel (0) target = $region37
    $region36: #{monet_polar_regression_forward.1} parent=1 // pred_region
      _
    $region37: #{monet_polar_regression_forward.1} parent=1 // pred_fallthru
      _
    // Predicated region
    $region38: #{monet_polar_regression_forward.1} parent=1 // pred_check
      _
    $region39: #{monet_polar_regression_forward.1} parent=1 // pred_check_branch
      %92 = sbr.rel (0) target = $region41
    $region40: #{monet_polar_regression_forward.1} parent=1 // pred_region
      _
    $region41: #{monet_polar_regression_forward.1} parent=1 // pred_fallthru
      _
    // Predicated region
    $region42: #{monet_polar_regression_forward.1} parent=1 // pred_check
      _
    $region43: #{monet_polar_regression_forward.1} parent=1 // pred_check_branch
      %94 = sbr.rel (0) target = $region45
    $region44: #{monet_polar_regression_forward.1} parent=1 // pred_region
      _
    $region45: #{monet_polar_regression_forward.1} parent=1 // pred_fallthru
      _
    // Predicated region
    $region46: #{monet_polar_regression_forward.1} parent=1 // pred_check
      _
    $region47: #{monet_polar_regression_forward.1} parent=1 // pred_check_branch
      %96 = sbr.rel (0) target = $region49
    $region48: #{monet_polar_regression_forward.1} parent=1 // pred_region
      _
    $region49: #{monet_polar_regression_forward.1} parent=1 // pred_fallthru
      _
    // Predicated region
    $region50: #{monet_polar_regression_forward.1} parent=1 // pred_check
      _
    $region51: #{monet_polar_regression_forward.1} parent=1 // pred_check_branch
      %98 = sbr.rel (0) target = $region53
    $region52: #{monet_polar_regression_forward.1} parent=1 // pred_region
      _
    $region53: #{monet_polar_regression_forward.1} parent=1 // pred_fallthru
      _
    // Predicated region
    $region54: #{monet_polar_regression_forward.1} parent=1 // pred_check
      _
    $region55: #{monet_polar_regression_forward.1} parent=1 // pred_check_branch
      %100 = sbr.rel (0) target = $region57
    $region56: #{monet_polar_regression_forward.1} parent=1 // pred_region
      _
    $region57: #{monet_polar_regression_forward.1} parent=1 // pred_fallthru
      _
    // Predicated region
    $region58: #{monet_polar_regression_forward.1} parent=1 // pred_check
      _
    $region59: #{monet_polar_regression_forward.1} parent=1 // pred_check_branch
      %102 = sbr.rel (0) target = $region61
    $region60: #{monet_polar_regression_forward.1} parent=1 // pred_region
      _
    $region61: #{monet_polar_regression_forward.1} parent=1 // pred_fallthru
      _
    // Predicated region
    $region62: #{monet_polar_regression_forward.1} parent=1 // pred_check
      _
    $region63: #{monet_polar_regression_forward.1} parent=1 // pred_check_branch
      %104 = sbr.rel (0) target = $region65
    $region64: #{monet_polar_regression_forward.1} parent=1 // pred_region
      _
    $region65: #{monet_polar_regression_forward.1} parent=1 // pred_fallthru
      _
    // Predicated region
    $region66: #{monet_polar_regression_forward.1} parent=1 // pred_check
      _
    $region67: #{monet_polar_regression_forward.1} parent=1 // pred_check_branch
      %106 = sbr.rel (0) target = $region69
    $region68: #{monet_polar_regression_forward.1} parent=1 // pred_region
      _
    $region69: #{monet_polar_regression_forward.1} parent=1 // pred_fallthru
      _
    // Predicated region
    $region70: #{monet_polar_regression_forward.1} parent=1 // pred_check
      _
    $region71: #{monet_polar_regression_forward.1} parent=1 // pred_check_branch
      %108 = sbr.rel (0) target = $region73
    $region72: #{monet_polar_regression_forward.1} parent=1 // pred_region
      _
    $region73: #{monet_polar_regression_forward.1} parent=1 // pred_fallthru
      _
    // Predicated region
    $region74: #{monet_polar_regression_forward.1} parent=1 // pred_check
      _
    $region75: #{monet_polar_regression_forward.1} parent=1 // pred_check_branch
      %110 = sbr.rel (0) target = $region77
    $region76: #{monet_polar_regression_forward.1} parent=1 // pred_region
      _
    $region77: #{monet_polar_regression_forward.1} parent=1 // pred_fallthru
      _
    // Predicated region
    $region78: #{monet_polar_regression_forward.1} parent=1 // pred_check
      _
    $region79: #{monet_polar_regression_forward.1} parent=1 // pred_check_branch
      %112 = sbr.rel (0) target = $region81
    $region80: #{monet_polar_regression_forward.1} parent=1 // pred_region
      _
    $region81: #{monet_polar_regression_forward.1} parent=1 // pred_fallthru
      _
    // Predicated region
    $region82: #{monet_polar_regression_forward.1} parent=1 // pred_check
      _
    $region83: #{monet_polar_regression_forward.1} parent=1 // pred_check_branch
      %114 = sbr.rel (0) target = $region85
    $region84: #{monet_polar_regression_forward.1} parent=1 // pred_region
      _
    $region85: #{monet_polar_regression_forward.1} parent=1 // pred_fallthru
      _
    // Predicated region
    $region86: #{monet_polar_regression_forward.1} parent=1 // pred_check
      _
    $region87: #{monet_polar_regression_forward.1} parent=1 // pred_check_branch
      %116 = sbr.rel (0) target = $region89
    $region88: #{monet_polar_regression_forward.1} parent=1 // pred_region
      _
    $region89: #{monet_polar_regression_forward.1} parent=1 // pred_fallthru
      _
    // Predicated region
    $region90: #{monet_polar_regression_forward.1} parent=1 // pred_check
      _
    $region91: #{monet_polar_regression_forward.1} parent=1 // pred_check_branch
      %118 = sbr.rel (0) target = $region93
    $region92: #{monet_polar_regression_forward.1} parent=1 // pred_region
      _
    $region93: #{monet_polar_regression_forward.1} parent=1 // pred_fallthru
      _
    // Predicated region
    $region94: #{monet_polar_regression_forward.1} parent=1 // pred_check
      _
    $region95: #{monet_polar_regression_forward.1} parent=1 // pred_check_branch
      %120 = sbr.rel (0) target = $region97
    $region96: #{monet_polar_regression_forward.1} parent=1 // pred_region
      _
    $region97: #{monet_polar_regression_forward.1} parent=1 // pred_fallthru
      _
    // Predicated region
    $region98: #{monet_polar_regression_forward.1} parent=1 // pred_check
      _
    $region99: #{monet_polar_regression_forward.1} parent=1 // pred_check_branch
      %122 = sbr.rel (0) target = $region101
    $region100: #{monet_polar_regression_forward.1} parent=1 // pred_region
      _
    $region101: #{monet_polar_regression_forward.1} parent=1 // pred_fallthru
      _
    // Predicated region
    $region102: #{monet_polar_regression_forward.1} parent=1 // pred_check
      _
    $region103: #{monet_polar_regression_forward.1} parent=1 // pred_check_branch
      %124 = sbr.rel (0) target = $region105
    $region104: #{monet_polar_regression_forward.1} parent=1 // pred_region
      _
    $region105: #{monet_polar_regression_forward.1} parent=1 // pred_fallthru
      _
    // Predicated region
    $region106: #{monet_polar_regression_forward.1} parent=1 // pred_check
      _
    $region107: #{monet_polar_regression_forward.1} parent=1 // pred_check_branch
      %126 = sbr.rel (0) target = $region109
    $region108: #{monet_polar_regression_forward.1} parent=1 // pred_region
      _
    $region109: #{monet_polar_regression_forward.1} parent=1 // pred_fallthru
      _
    // Predicated region
    $region110: #{monet_polar_regression_forward.1} parent=1 // pred_check
      _
    $region111: #{monet_polar_regression_forward.1} parent=1 // pred_check_branch
      %128 = sbr.rel (0) target = $region113
    $region112: #{monet_polar_regression_forward.1} parent=1 // pred_region
      _
    $region113: #{monet_polar_regression_forward.1} parent=1 // pred_fallthru
      _
    // Predicated region
    $region114: #{monet_polar_regression_forward.1} parent=1 // pred_check
      _
    $region115: #{monet_polar_regression_forward.1} parent=1 // pred_check_branch
      %130 = sbr.rel (0) target = $region117
    $region116: #{monet_polar_regression_forward.1} parent=1 // pred_region
      _
    $region117: #{monet_polar_regression_forward.1} parent=1 // pred_fallthru
      _
    // Predicated region
    $region118: #{monet_polar_regression_forward.1} parent=1 // pred_check
      _
    $region119: #{monet_polar_regression_forward.1} parent=1 // pred_check_branch
      %132 = sbr.rel (0) target = $region121
    $region120: #{monet_polar_regression_forward.1} parent=1 // pred_region
      _
    $region121: #{monet_polar_regression_forward.1} parent=1 // pred_fallthru
      _
    // Predicated region
    $region122: #{monet_polar_regression_forward.1} parent=1 // pred_check
      _
    $region123: #{monet_polar_regression_forward.1} parent=1 // pred_check_branch
      %134 = sbr.rel (0) target = $region125
    $region124: #{monet_polar_regression_forward.1} parent=1 // pred_region
      _
    $region125: #{monet_polar_regression_forward.1} parent=1 // pred_fallthru
      _
    // Predicated region
    $region126: #{monet_polar_regression_forward.1} parent=1 // pred_check
      _
    $region127: #{monet_polar_regression_forward.1} parent=1 // pred_check_branch
      %136 = sbr.rel (0) target = $region129
    $region128: #{monet_polar_regression_forward.1} parent=1 // pred_region
      _
    $region129: #{monet_polar_regression_forward.1} parent=1 // pred_fallthru
      _
    %v138 = vld [vmem:[%s1] sm:$0xff]
    %v139 = vld [vmem:[%s1 + $0x8] sm:$0xff]
    %v140 = vld [vmem:[%s1 + $0x10] sm:$0xff]
    %v141 = vld [vmem:[%s1 + $0x18] sm:$0xff]
    %v142 = vld [vmem:[%s1 + $0x20] sm:$0xff]
    %v143 = vld [vmem:[%s1 + $0x28] sm:$0xff]
    %v144 = vld [vmem:[%s1 + $0x30] sm:$0xff]
    %v145 = vld [vmem:[%s1 + $0x38] sm:$0xff]
    %v146 = vld [vmem:[%s1 + $0x40] sm:$0xff]
    %v147 = vld [vmem:[%s1 + $0x48] sm:$0xff]
    %v148 = vld [vmem:[%s1 + $0x50] sm:$0xff]
    %v149 = vld [vmem:[%s1 + $0x58] sm:$0xff]
    %v150 = vld [vmem:[%s1 + $0x60] sm:$0xff]
    %v151 = vld [vmem:[%s1 + $0x68] sm:$0xff]
    %v152 = vld [vmem:[%s1 + $0x70] sm:$0xff]
    %v153 = vld [vmem:[%s1 + $0x78] sm:$0xff]
    %v154 = vld [vmem:[%s1 + $0x80] sm:$0xff]
    %v155 = vld [vmem:[%s1 + $0x88] sm:$0xff]
    %v156 = vld [vmem:[%s1 + $0x90] sm:$0xff]
    %v157 = vld [vmem:[%s1 + $0x98] sm:$0xff]
    %v158 = vld [vmem:[%s1 + $0xa0] sm:$0xff]
    %v159 = vld [vmem:[%s1 + $0xa8] sm:$0xff]
    %v160 = vld [vmem:[%s1 + $0xb0] sm:$0xff]
    %v161 = vld [vmem:[%s1 + $0xb8] sm:$0xff]
    %v162 = vld [vmem:[%s1 + $0xc0] sm:$0xff]
    %v163 = vld [vmem:[%s1 + $0xc8] sm:$0xff]
    %v164 = vld [vmem:[%s1 + $0xd0] sm:$0xff]
    %v165 = vld [vmem:[%s1 + $0xd8] sm:$0xff]
    %v166 = vld [vmem:[%s1 + $0xe0] sm:$0xff]
    %v167 = vld [vmem:[%s1 + $0xe8] sm:$0xff]
    %v168 = vld [vmem:[%s1 + $0xf0] sm:$0xff]
    %v169 = vld [vmem:[%s1 + $0xf8] sm:$0xff]
    %v170 = vld [vmem:[%s1 + $0x100] sm:$0xff]
    %v171 = vld [vmem:[%s1 + $0x108] sm:$0xff]
    %v172 = vpack.c.bf16 %v139, %v138
    %v173 = vpack.c.bf16 %v141, %v140
    %v174 = vpack.c.bf16 %v143, %v142
    %v175 = vpack.c.bf16 %v145, %v144
    %v176 = vpack.c.bf16 %v147, %v146
    %v177 = vpack.c.bf16 %v149, %v148
    %v178 = vpack.c.bf16 %v151, %v150
    %v179 = vpack.c.bf16 %v153, %v152
    %v180 = vpack.c.bf16 %v155, %v154
    %v181 = vpack.c.bf16 %v157, %v156
    %v182 = vpack.c.bf16 %v159, %v158
    %v183 = vpack.c.bf16 %v161, %v160
    %v184 = vpack.c.bf16 %v163, %v162
    %v185 = vpack.c.bf16 %v165, %v164
    %v186 = vpack.c.bf16 %v167, %v166
    %v187 = vpack.c.bf16 %v169, %v168
    %v188 = vpack.c.bf16 %v171, %v170
    %v189 = vld [vmem:[%s19] sm:$0x3]
    %vm190 = vcmask 31744
    %v192 = vsel %vm190, %v172, 0
    %v195 = vsel %vm190, %v173, 0
    %v198 = vsel %vm190, %v174, 0
    %v201 = vsel %vm190, %v175, 0
    %v204 = vsel %vm190, %v176, 0
    %v207 = vsel %vm190, %v177, 0
    %v210 = vsel %vm190, %v178, 0
    %v213 = vsel %vm190, %v179, 0
    %v216 = vsel %vm190, %v180, 0
    %v219 = vsel %vm190, %v181, 0
    %v222 = vsel %vm190, %v182, 0
    %v225 = vsel %vm190, %v183, 0
    %v228 = vsel %vm190, %v184, 0
    %v231 = vsel %vm190, %v185, 0
    %v234 = vsel %vm190, %v186, 0
    %v237 = vsel %vm190, %v187, 0
    %v240 = vsel %vm190, %v188, 0
    %vm242 = vcmask 1041408
    %v244 = vsel %vm242, %v189, 0
    %246 = vmatpush.bf16.msra.mxu0 0
    %247 = vmatpush.bf16.msra.mxu0 0
    %248 = vmatpush.bf16.msra.mxu0 0
    %249 = vmatpush.bf16.msra.mxu0 0
    %250 = vmatpush.bf16.msra.mxu0 0
    %251 = vmatpush.bf16.msra.mxu0 0
    %252 = vmatpush.bf16.msra.mxu0 0
    %253 = vmatpush.bf16.msra.mxu0 %v244
    %254 = vmatmul.bf16.gmra.mxu0 %v192
    %v255 = vpop.f32.mrf.mxu0
    %v256 = vadd.f32 0.0, %v255
    %v257 = vpop.f32.mrf.mxu0
    %v258 = vadd.f32 0.0, %v257
    %259 = vmatmul.bf16.gmra.mxu0 %v195
    %v260 = vpop.f32.mrf.mxu0
    %v261 = vadd.f32 0.0, %v260
    %v262 = vpop.f32.mrf.mxu0
    %v263 = vadd.f32 0.0, %v262
    %264 = vmatmul.bf16.gmra.mxu0 %v198
    %v265 = vpop.f32.mrf.mxu0
    %v266 = vadd.f32 0.0, %v265
    %v267 = vpop.f32.mrf.mxu0
    %v268 = vadd.f32 0.0, %v267
    %269 = vmatmul.bf16.gmra.mxu0 %v201
    %v270 = vpop.f32.mrf.mxu0
    %v271 = vadd.f32 0.0, %v270
    %v272 = vpop.f32.mrf.mxu0
    %v273 = vadd.f32 0.0, %v272
    %274 = vmatmul.bf16.gmra.mxu0 %v204
    %v275 = vpop.f32.mrf.mxu0
    %v276 = vadd.f32 0.0, %v275
    %v277 = vpop.f32.mrf.mxu0
    %v278 = vadd.f32 0.0, %v277
    %279 = vmatmul.bf16.gmra.mxu0 %v207
    %v280 = vpop.f32.mrf.mxu0
    %v281 = vadd.f32 0.0, %v280
    %v282 = vpop.f32.mrf.mxu0
    %v283 = vadd.f32 0.0, %v282
    %284 = vmatmul.bf16.gmra.mxu0 %v210
    %v285 = vpop.f32.mrf.mxu0
    %v286 = vadd.f32 0.0, %v285
    %v287 = vpop.f32.mrf.mxu0
    %v288 = vadd.f32 0.0, %v287
    %289 = vmatmul.bf16.gmra.mxu0 %v213
    %v290 = vpop.f32.mrf.mxu0
    %v291 = vadd.f32 0.0, %v290
    %v292 = vpop.f32.mrf.mxu0
    %v293 = vadd.f32 0.0, %v292
    %294 = vmatmul.bf16.gmra.mxu0 %v216
    %v295 = vpop.f32.mrf.mxu0
    %v296 = vadd.f32 0.0, %v295
    %v297 = vpop.f32.mrf.mxu0
    %v298 = vadd.f32 0.0, %v297
    %299 = vmatmul.bf16.gmra.mxu0 %v219
    %v300 = vpop.f32.mrf.mxu0
    %v301 = vadd.f32 0.0, %v300
    %v302 = vpop.f32.mrf.mxu0
    %v303 = vadd.f32 0.0, %v302
    %304 = vmatmul.bf16.gmra.mxu0 %v222
    %v305 = vpop.f32.mrf.mxu0
    %v306 = vadd.f32 0.0, %v305
    %v307 = vpop.f32.mrf.mxu0
    %v308 = vadd.f32 0.0, %v307
    %309 = vmatmul.bf16.gmra.mxu0 %v225
    %v310 = vpop.f32.mrf.mxu0
    %v311 = vadd.f32 0.0, %v310
    %v312 = vpop.f32.mrf.mxu0
    %v313 = vadd.f32 0.0, %v312
    %314 = vmatmul.bf16.gmra.mxu0 %v228
    %v315 = vpop.f32.mrf.mxu0
    %v316 = vadd.f32 0.0, %v315
    %v317 = vpop.f32.mrf.mxu0
    %v318 = vadd.f32 0.0, %v317
    %319 = vmatmul.bf16.gmra.mxu0 %v231
    %v320 = vpop.f32.mrf.mxu0
    %v321 = vadd.f32 0.0, %v320
    %v322 = vpop.f32.mrf.mxu0
    %v323 = vadd.f32 0.0, %v322
    %324 = vmatmul.bf16.gmra.mxu0 %v234
    %v325 = vpop.f32.mrf.mxu0
    %v326 = vadd.f32 0.0, %v325
    %v327 = vpop.f32.mrf.mxu0
    %v328 = vadd.f32 0.0, %v327
    %329 = vmatmul.bf16.gmra.mxu0 %v237
    %v330 = vpop.f32.mrf.mxu0
    %v331 = vadd.f32 0.0, %v330
    %v332 = vpop.f32.mrf.mxu0
    %v333 = vadd.f32 0.0, %v332
    %334 = vmatmul.bf16.gmra.mxu0 %v240
    %v335 = vpop.f32.mrf.mxu0
    %v336 = vadd.f32 0.0, %v335
    %v337 = vpop.f32.mrf.mxu0
    %v338 = vadd.f32 0.0, %v337
    %339 = vdwg.mxu0
    %v340 = vld [vmem:[%s17] sm:$0xff]
    %v341 = vld [vmem:[%s17 + $0x8] sm:$0xf]
    %v342 = vld [vmem:[%s17 + $0xc] sm:$0xff]
    %v343 = vld [vmem:[%s17 + $0x14] sm:$0xf]
    %v344 = vld [vmem:[%s17 + $0x18] sm:$0xff]
    %v345 = vld [vmem:[%s17 + $0x20] sm:$0xf]
    %v346 = vld [vmem:[%s17 + $0x24] sm:$0xff]
    %v347 = vld [vmem:[%s17 + $0x2c] sm:$0xf]
    %v348 = vld [vmem:[%s17 + $0x30] sm:$0xff]
    %v349 = vld [vmem:[%s17 + $0x38] sm:$0xf]
    %v350 = vld [vmem:[%s17 + $0x3c] sm:$0xff]
    %v351 = vld [vmem:[%s17 + $0x44] sm:$0xf]
    %v352 = vld [vmem:[%s17 + $0x48] sm:$0xff]
    %v353 = vld [vmem:[%s17 + $0x50] sm:$0xf]
    %v354 = vld [vmem:[%s17 + $0x54] sm:$0xff]
    %v355 = vld [vmem:[%s17 + $0x5c] sm:$0xf]
    %v356 = vld [vmem:[%s17 + $0x60] sm:$0xff]
    %v357 = vld [vmem:[%s17 + $0x68] sm:$0xf]
    %v358 = vld [vmem:[%s17 + $0x6c] sm:$0xff]
    %v359 = vld [vmem:[%s17 + $0x74] sm:$0xf]
    %v360 = vld [vmem:[%s17 + $0x78] sm:$0xff]
    %v361 = vld [vmem:[%s17 + $0x80] sm:$0xf]
    %v362 = vld [vmem:[%s17 + $0x84] sm:$0xff]
    %v363 = vld [vmem:[%s17 + $0x8c] sm:$0xf]
    %v364 = vld [vmem:[%s17 + $0x90] sm:$0xff]
    %v365 = vld [vmem:[%s17 + $0x98] sm:$0xf]
    %v366 = vld [vmem:[%s17 + $0x9c] sm:$0xff]
    %v367 = vld [vmem:[%s17 + $0xa4] sm:$0xf]
    %v368 = vld [vmem:[%s17 + $0xa8] sm:$0xff]
    %v369 = vld [vmem:[%s17 + $0xb0] sm:$0xf]
    %v370 = vld [vmem:[%s17 + $0xb4] sm:$0xff]
    %v371 = vld [vmem:[%s17 + $0xbc] sm:$0xf]
    %v372 = vld [vmem:[%s17 + $0xc0] sm:$0xff]
    %v373 = vld [vmem:[%s17 + $0xc8] sm:$0xf]
    %v374 = vld [vmem:[%s17 + $0xcc] sm:$0xff]
    %v375 = vld [vmem:[%s17 + $0xd4] sm:$0xf]
    %v376 = vld [vmem:[%s17 + $0xd8] sm:$0xff]
    %v377 = vld [vmem:[%s17 + $0xe0] sm:$0xf]
    %v378 = vld [vmem:[%s17 + $0xe4] sm:$0xff]
    %v379 = vld [vmem:[%s17 + $0xec] sm:$0xf]
    %v380 = vld [vmem:[%s17 + $0xf0] sm:$0xff]
    %v381 = vld [vmem:[%s17 + $0xf8] sm:$0xf]
    %v382 = vld [vmem:[%s17 + $0xfc] sm:$0xff]
    %v383 = vld [vmem:[%s17 + $0x104] sm:$0xf]
    %v384 = vld [vmem:[%s17 + $0x108] sm:$0xff]
    %v385 = vld [vmem:[%s17 + $0x110] sm:$0xf]
    %v386 = vld [vmem:[%s17 + $0x114] sm:$0xff]
    %v387 = vld [vmem:[%s17 + $0x11c] sm:$0xf]
    %v388 = vld [vmem:[%s17 + $0x120] sm:$0xff]
    %v389 = vld [vmem:[%s17 + $0x128] sm:$0xf]
    %v390 = vld [vmem:[%s17 + $0x12c] sm:$0xff]
    %v391 = vld [vmem:[%s17 + $0x134] sm:$0xf]
    %v392 = vld [vmem:[%s17 + $0x138] sm:$0xff]
    %v393 = vld [vmem:[%s17 + $0x140] sm:$0xf]
    %v394 = vld [vmem:[%s17 + $0x144] sm:$0xff]
    %v395 = vld [vmem:[%s17 + $0x14c] sm:$0xf]
    %v396 = vld [vmem:[%s17 + $0x150] sm:$0xff]
    %v397 = vld [vmem:[%s17 + $0x158] sm:$0xf]
    %v398 = vld [vmem:[%s17 + $0x15c] sm:$0xff]
    %v399 = vld [vmem:[%s17 + $0x164] sm:$0xf]
    %v400 = vld [vmem:[%s17 + $0x168] sm:$0xff]
    %v401 = vld [vmem:[%s17 + $0x170] sm:$0xf]
    %v402 = vld [vmem:[%s17 + $0x174] sm:$0xff]
    %v403 = vld [vmem:[%s17 + $0x17c] sm:$0xf]
    %v404 = vld [vmem:[%s17 + $0x180] sm:$0xff]
    %v405 = vld [vmem:[%s17 + $0x188] sm:$0xf]
    %v406 = vld [vmem:[%s17 + $0x18c] sm:$0xff]
    %v407 = vld [vmem:[%s17 + $0x194] sm:$0xf]
    %v408 = vpack.c.bf16 %v258, %v256
    %v409 = vpack.c.bf16 %v263, %v261
    %v410 = vpack.c.bf16 %v268, %v266
    %v411 = vpack.c.bf16 %v273, %v271
    %v412 = vpack.c.bf16 %v278, %v276
    %v413 = vpack.c.bf16 %v283, %v281
    %v414 = vpack.c.bf16 %v288, %v286
    %v415 = vpack.c.bf16 %v293, %v291
    %v416 = vpack.c.bf16 %v298, %v296
    %v417 = vpack.c.bf16 %v303, %v301
    %v418 = vpack.c.bf16 %v308, %v306
    %v419 = vpack.c.bf16 %v313, %v311
    %v420 = vpack.c.bf16 %v318, %v316
    %v421 = vpack.c.bf16 %v323, %v321
    %v422 = vpack.c.bf16 %v328, %v326
    %v423 = vpack.c.bf16 %v333, %v331
    %v424 = vpack.c.bf16 %v338, %v336
    %s425 = scalar_lea.vmem %s19, 2
    %v426 = vld [vmem:[%s425] sm:$0x3]
    %v428 = vsel %vm242, %v426, 0
    %430 = vmatpush.bf16.msra.mxu0 0
    %431 = vmatpush.bf16.msra.mxu0 0
    %432 = vmatpush.bf16.msra.mxu0 0
    %433 = vmatpush.bf16.msra.mxu0 0
    %434 = vmatpush.bf16.msra.mxu0 0
    %435 = vmatpush.bf16.msra.mxu0 0
    %436 = vmatpush.bf16.msra.mxu0 0
    %437 = vmatpush.bf16.msra.mxu0 %v428
    %438 = vmatmul.bf16.gmra.mxu0 %v192
    %v439 = vpop.f32.mrf.mxu0
    %v440 = vadd.f32 0.0, %v439
    %v441 = vpop.f32.mrf.mxu0
    %v442 = vadd.f32 0.0, %v441
    %443 = vmatmul.bf16.gmra.mxu0 %v195
    %v444 = vpop.f32.mrf.mxu0
    %v445 = vadd.f32 0.0, %v444
    %v446 = vpop.f32.mrf.mxu0
    %v447 = vadd.f32 0.0, %v446
    %448 = vmatmul.bf16.gmra.mxu0 %v198
    %v449 = vpop.f32.mrf.mxu0
    %v450 = vadd.f32 0.0, %v449
    %v451 = vpop.f32.mrf.mxu0
    %v452 = vadd.f32 0.0, %v451
    %453 = vmatmul.bf16.gmra.mxu0 %v201
    %v454 = vpop.f32.mrf.mxu0
    %v455 = vadd.f32 0.0, %v454
    %v456 = vpop.f32.mrf.mxu0
    %v457 = vadd.f32 0.0, %v456
    %458 = vmatmul.bf16.gmra.mxu0 %v204
    %v459 = vpop.f32.mrf.mxu0
    %v460 = vadd.f32 0.0, %v459
    %v461 = vpop.f32.mrf.mxu0
    %v462 = vadd.f32 0.0, %v461
    %463 = vmatmul.bf16.gmra.mxu0 %v207
    %v464 = vpop.f32.mrf.mxu0
    %v465 = vadd.f32 0.0, %v464
    %v466 = vpop.f32.mrf.mxu0
    %v467 = vadd.f32 0.0, %v466
    %468 = vmatmul.bf16.gmra.mxu0 %v210
    %v469 = vpop.f32.mrf.mxu0
    %v470 = vadd.f32 0.0, %v469
    %v471 = vpop.f32.mrf.mxu0
    %v472 = vadd.f32 0.0, %v471
    %473 = vmatmul.bf16.gmra.mxu0 %v213
    %v474 = vpop.f32.mrf.mxu0
    %v475 = vadd.f32 0.0, %v474
    %v476 = vpop.f32.mrf.mxu0
    %v477 = vadd.f32 0.0, %v476
    %478 = vmatmul.bf16.gmra.mxu0 %v216
    %v479 = vpop.f32.mrf.mxu0
    %v480 = vadd.f32 0.0, %v479
    %v481 = vpop.f32.mrf.mxu0
    %v482 = vadd.f32 0.0, %v481
    %483 = vmatmul.bf16.gmra.mxu0 %v219
    %v484 = vpop.f32.mrf.mxu0
    %v485 = vadd.f32 0.0, %v484
    %v486 = vpop.f32.mrf.mxu0
    %v487 = vadd.f32 0.0, %v486
    %488 = vmatmul.bf16.gmra.mxu0 %v222
    %v489 = vpop.f32.mrf.mxu0
    %v490 = vadd.f32 0.0, %v489
    %v491 = vpop.f32.mrf.mxu0
    %v492 = vadd.f32 0.0, %v491
    %493 = vmatmul.bf16.gmra.mxu0 %v225
    %v494 = vpop.f32.mrf.mxu0
    %v495 = vadd.f32 0.0, %v494
    %v496 = vpop.f32.mrf.mxu0
    %v497 = vadd.f32 0.0, %v496
    %498 = vmatmul.bf16.gmra.mxu0 %v228
    %v499 = vpop.f32.mrf.mxu0
    %v500 = vadd.f32 0.0, %v499
    %v501 = vpop.f32.mrf.mxu0
    %v502 = vadd.f32 0.0, %v501
    %503 = vmatmul.bf16.gmra.mxu0 %v231
    %v504 = vpop.f32.mrf.mxu0
    %v505 = vadd.f32 0.0, %v504
    %v506 = vpop.f32.mrf.mxu0
    %v507 = vadd.f32 0.0, %v506
    %508 = vmatmul.bf16.gmra.mxu0 %v234
    %v509 = vpop.f32.mrf.mxu0
    %v510 = vadd.f32 0.0, %v509
    %v511 = vpop.f32.mrf.mxu0
    %v512 = vadd.f32 0.0, %v511
    %513 = vmatmul.bf16.gmra.mxu0 %v237
    %v514 = vpop.f32.mrf.mxu0
    %v515 = vadd.f32 0.0, %v514
    %v516 = vpop.f32.mrf.mxu0
    %v517 = vadd.f32 0.0, %v516
    %518 = vmatmul.bf16.gmra.mxu0 %v240
    %v519 = vpop.f32.mrf.mxu0
    %v520 = vadd.f32 0.0, %v519
    %v521 = vpop.f32.mrf.mxu0
    %v522 = vadd.f32 0.0, %v521
    %523 = vdwg.mxu0
    %s524 = scalar_lea.vmem %s17, 408
    %v525 = vld [vmem:[%s524] sm:$0xff]
    %v526 = vld [vmem:[%s524 + $0x8] sm:$0xf]
    %v527 = vld [vmem:[%s524 + $0xc] sm:$0xff]
    %v528 = vld [vmem:[%s524 + $0x14] sm:$0xf]
    %v529 = vld [vmem:[%s524 + $0x18] sm:$0xff]
    %v530 = vld [vmem:[%s524 + $0x20] sm:$0xf]
    %v531 = vld [vmem:[%s524 + $0x24] sm:$0xff]
    %v532 = vld [vmem:[%s524 + $0x2c] sm:$0xf]
    %v533 = vld [vmem:[%s524 + $0x30] sm:$0xff]
    %v534 = vld [vmem:[%s524 + $0x38] sm:$0xf]
    %v535 = vld [vmem:[%s524 + $0x3c] sm:$0xff]
    %v536 = vld [vmem:[%s524 + $0x44] sm:$0xf]
    %v537 = vld [vmem:[%s524 + $0x48] sm:$0xff]
    %v538 = vld [vmem:[%s524 + $0x50] sm:$0xf]
    %v539 = vld [vmem:[%s524 + $0x54] sm:$0xff]
    %v540 = vld [vmem:[%s524 + $0x5c] sm:$0xf]
    %v541 = vld [vmem:[%s524 + $0x60] sm:$0xff]
    %v542 = vld [vmem:[%s524 + $0x68] sm:$0xf]
    %v543 = vld [vmem:[%s524 + $0x6c] sm:$0xff]
    %v544 = vld [vmem:[%s524 + $0x74] sm:$0xf]
    %v545 = vld [vmem:[%s524 + $0x78] sm:$0xff]
    %v546 = vld [vmem:[%s524 + $0x80] sm:$0xf]
    %v547 = vld [vmem:[%s524 + $0x84] sm:$0xff]
    %v548 = vld [vmem:[%s524 + $0x8c] sm:$0xf]
    %v549 = vld [vmem:[%s524 + $0x90] sm:$0xff]
    %v550 = vld [vmem:[%s524 + $0x98] sm:$0xf]
    %v551 = vld [vmem:[%s524 + $0x9c] sm:$0xff]
    %v552 = vld [vmem:[%s524 + $0xa4] sm:$0xf]
    %v553 = vld [vmem:[%s524 + $0xa8] sm:$0xff]
    %v554 = vld [vmem:[%s524 + $0xb0] sm:$0xf]
    %v555 = vld [vmem:[%s524 + $0xb4] sm:$0xff]
    %v556 = vld [vmem:[%s524 + $0xbc] sm:$0xf]
    %v557 = vld [vmem:[%s524 + $0xc0] sm:$0xff]
    %v558 = vld [vmem:[%s524 + $0xc8] sm:$0xf]
    %v559 = vld [vmem:[%s524 + $0xcc] sm:$0xff]
    %v560 = vld [vmem:[%s524 + $0xd4] sm:$0xf]
    %v561 = vld [vmem:[%s524 + $0xd8] sm:$0xff]
    %v562 = vld [vmem:[%s524 + $0xe0] sm:$0xf]
    %v563 = vld [vmem:[%s524 + $0xe4] sm:$0xff]
    %v564 = vld [vmem:[%s524 + $0xec] sm:$0xf]
    %v565 = vld [vmem:[%s524 + $0xf0] sm:$0xff]
    %v566 = vld [vmem:[%s524 + $0xf8] sm:$0xf]
    %v567 = vld [vmem:[%s524 + $0xfc] sm:$0xff]
    %v568 = vld [vmem:[%s524 + $0x104] sm:$0xf]
    %v569 = vld [vmem:[%s524 + $0x108] sm:$0xff]
    %v570 = vld [vmem:[%s524 + $0x110] sm:$0xf]
    %v571 = vld [vmem:[%s524 + $0x114] sm:$0xff]
    %v572 = vld [vmem:[%s524 + $0x11c] sm:$0xf]
    %v573 = vld [vmem:[%s524 + $0x120] sm:$0xff]
    %v574 = vld [vmem:[%s524 + $0x128] sm:$0xf]
    %v575 = vld [vmem:[%s524 + $0x12c] sm:$0xff]
    %v576 = vld [vmem:[%s524 + $0x134] sm:$0xf]
    %v577 = vld [vmem:[%s524 + $0x138] sm:$0xff]
    %v578 = vld [vmem:[%s524 + $0x140] sm:$0xf]
    %v579 = vld [vmem:[%s524 + $0x144] sm:$0xff]
    %v580 = vld [vmem:[%s524 + $0x14c] sm:$0xf]
    %v581 = vld [vmem:[%s524 + $0x150] sm:$0xff]
    %v582 = vld [vmem:[%s524 + $0x158] sm:$0xf]
    %v583 = vld [vmem:[%s524 + $0x15c] sm:$0xff]
    %v584 = vld [vmem:[%s524 + $0x164] sm:$0xf]
    %v585 = vld [vmem:[%s524 + $0x168] sm:$0xff]
    %v586 = vld [vmem:[%s524 + $0x170] sm:$0xf]
    %v587 = vld [vmem:[%s524 + $0x174] sm:$0xff]
    %v588 = vld [vmem:[%s524 + $0x17c] sm:$0xf]
    %v589 = vld [vmem:[%s524 + $0x180] sm:$0xff]
    %v590 = vld [vmem:[%s524 + $0x188] sm:$0xf]
    %v591 = vld [vmem:[%s524 + $0x18c] sm:$0xff]
    %v592 = vld [vmem:[%s524 + $0x194] sm:$0xf]
    %v593 = vpack.c.bf16 %v442, %v440
    %v594 = vpack.c.bf16 %v447, %v445
    %v595 = vpack.c.bf16 %v452, %v450
    %v596 = vpack.c.bf16 %v457, %v455
    %v597 = vpack.c.bf16 %v462, %v460
    %v598 = vpack.c.bf16 %v467, %v465
    %v599 = vpack.c.bf16 %v472, %v470
    %v600 = vpack.c.bf16 %v477, %v475
    %v601 = vpack.c.bf16 %v482, %v480
    %v602 = vpack.c.bf16 %v487, %v485
    %v603 = vpack.c.bf16 %v492, %v490
    %v604 = vpack.c.bf16 %v497, %v495
    %v605 = vpack.c.bf16 %v502, %v500
    %v606 = vpack.c.bf16 %v507, %v505
    %v607 = vpack.c.bf16 %v512, %v510
    %v608 = vpack.c.bf16 %v517, %v515
    %v609 = vpack.c.bf16 %v522, %v520
    %v678 = vunpack.c.l.b16 %v525
    %v679 = vunpack.c.h.b16 %v525
    %v680 = vunpack.c.l.b16 %v526
    %v681 = vunpack.c.l.b16 %v527
    %v682 = vunpack.c.h.b16 %v527
    %v683 = vunpack.c.l.b16 %v528
    %v684 = vunpack.c.l.b16 %v529
    %v685 = vunpack.c.h.b16 %v529
    %v686 = vunpack.c.l.b16 %v530
    %v687 = vunpack.c.l.b16 %v531
    %v688 = vunpack.c.h.b16 %v531
    %v689 = vunpack.c.l.b16 %v532
    %v690 = vunpack.c.l.b16 %v533
    %v691 = vunpack.c.h.b16 %v533
    %v692 = vunpack.c.l.b16 %v534
    %v693 = vunpack.c.l.b16 %v535
    %v694 = vunpack.c.h.b16 %v535
    %v695 = vunpack.c.l.b16 %v536
    %v696 = vunpack.c.l.b16 %v537
    %v697 = vunpack.c.h.b16 %v537
    %v698 = vunpack.c.l.b16 %v538
    %v699 = vunpack.c.l.b16 %v539
    %v700 = vunpack.c.h.b16 %v539
    %v701 = vunpack.c.l.b16 %v540
    %v702 = vunpack.c.l.b16 %v541
    %v703 = vunpack.c.h.b16 %v541
    %v704 = vunpack.c.l.b16 %v542
    %v705 = vunpack.c.l.b16 %v543
    %v706 = vunpack.c.h.b16 %v543
    %v707 = vunpack.c.l.b16 %v544
    %v708 = vunpack.c.l.b16 %v545
    %v709 = vunpack.c.h.b16 %v545
    %v710 = vunpack.c.l.b16 %v546
    %v711 = vunpack.c.l.b16 %v547
    %v712 = vunpack.c.h.b16 %v547
    %v713 = vunpack.c.l.b16 %v548
    %v714 = vunpack.c.l.b16 %v549
    %v715 = vunpack.c.h.b16 %v549
    %v716 = vunpack.c.l.b16 %v550
    %v717 = vunpack.c.l.b16 %v551
    %v718 = vunpack.c.h.b16 %v551
    %v719 = vunpack.c.l.b16 %v552
    %v720 = vunpack.c.l.b16 %v553
    %v721 = vunpack.c.h.b16 %v553
    %v722 = vunpack.c.l.b16 %v554
    %v723 = vunpack.c.l.b16 %v555
    %v724 = vunpack.c.h.b16 %v555
    %v725 = vunpack.c.l.b16 %v556
    %v726 = vunpack.c.l.b16 %v557
    %v727 = vunpack.c.h.b16 %v557
    %v728 = vunpack.c.l.b16 %v558
    %v729 = vunpack.c.l.b16 %v559
    %v730 = vunpack.c.h.b16 %v559
    %v731 = vunpack.c.l.b16 %v560
    %v732 = vunpack.c.l.b16 %v561
    %v733 = vunpack.c.h.b16 %v561
    %v734 = vunpack.c.l.b16 %v562
    %v735 = vunpack.c.l.b16 %v563
    %v736 = vunpack.c.h.b16 %v563
    %v737 = vunpack.c.l.b16 %v564
    %v738 = vunpack.c.l.b16 %v565
    %v739 = vunpack.c.h.b16 %v565
    %v740 = vunpack.c.l.b16 %v566
    %v741 = vunpack.c.l.b16 %v567
    %v742 = vunpack.c.h.b16 %v567
    %v743 = vunpack.c.l.b16 %v568
    %v744 = vunpack.c.l.b16 %v569
    %v745 = vunpack.c.h.b16 %v569
    %v746 = vunpack.c.l.b16 %v570
    %v747 = vunpack.c.l.b16 %v571
    %v748 = vunpack.c.h.b16 %v571
    %v749 = vunpack.c.l.b16 %v572
    %v750 = vunpack.c.l.b16 %v573
    %v751 = vunpack.c.h.b16 %v573
    %v752 = vunpack.c.l.b16 %v574
    %v753 = vunpack.c.l.b16 %v575
    %v754 = vunpack.c.h.b16 %v575
    %v755 = vunpack.c.l.b16 %v576
    %v756 = vunpack.c.l.b16 %v577
    %v757 = vunpack.c.h.b16 %v577
    %v758 = vunpack.c.l.b16 %v578
    %v759 = vunpack.c.l.b16 %v579
    %v760 = vunpack.c.h.b16 %v579
    %v761 = vunpack.c.l.b16 %v580
    %v762 = vunpack.c.l.b16 %v581
    %v763 = vunpack.c.h.b16 %v581
    %v764 = vunpack.c.l.b16 %v582
    %v765 = vunpack.c.l.b16 %v583
    %v766 = vunpack.c.h.b16 %v583
    %v767 = vunpack.c.l.b16 %v584
    %v768 = vunpack.c.l.b16 %v585
    %v769 = vunpack.c.h.b16 %v585
    %v770 = vunpack.c.l.b16 %v586
    %v771 = vunpack.c.l.b16 %v587
    %v772 = vunpack.c.h.b16 %v587
    %v773 = vunpack.c.l.b16 %v588
    %v774 = vunpack.c.l.b16 %v589
    %v775 = vunpack.c.h.b16 %v589
    %v776 = vunpack.c.l.b16 %v590
    %v777 = vunpack.c.l.b16 %v591
    %v778 = vunpack.c.h.b16 %v591
    %v779 = vunpack.c.l.b16 %v592
    %v780 = vpack.c.b16 %v681, %v678
    %v781 = vpack.c.b16 %v682, %v679
    %v782 = vpack.c.b16 %v683, %v680
    %v783 = vpack.c.b16 %v687, %v684
    %v784 = vpack.c.b16 %v688, %v685
    %v785 = vpack.c.b16 %v689, %v686
    %v786 = vpack.c.b16 %v693, %v690
    %v787 = vpack.c.b16 %v694, %v691
    %v788 = vpack.c.b16 %v695, %v692
    %v789 = vpack.c.b16 %v699, %v696
    %v790 = vpack.c.b16 %v700, %v697
    %v791 = vpack.c.b16 %v701, %v698
    %v792 = vpack.c.b16 %v705, %v702
    %v793 = vpack.c.b16 %v706, %v703
    %v794 = vpack.c.b16 %v707, %v704
    %v795 = vpack.c.b16 %v711, %v708
    %v796 = vpack.c.b16 %v712, %v709
    %v797 = vpack.c.b16 %v713, %v710
    %v798 = vpack.c.b16 %v717, %v714
    %v799 = vpack.c.b16 %v718, %v715
    %v800 = vpack.c.b16 %v719, %v716
    %v801 = vpack.c.b16 %v723, %v720
    %v802 = vpack.c.b16 %v724, %v721
    %v803 = vpack.c.b16 %v725, %v722
    %v804 = vpack.c.b16 %v729, %v726
    %v805 = vpack.c.b16 %v730, %v727
    %v806 = vpack.c.b16 %v731, %v728
    %v807 = vpack.c.b16 %v735, %v732
    %v808 = vpack.c.b16 %v736, %v733
    %v809 = vpack.c.b16 %v737, %v734
    %v810 = vpack.c.b16 %v741, %v738
    %v811 = vpack.c.b16 %v742, %v739
    %v812 = vpack.c.b16 %v743, %v740
    %v813 = vpack.c.b16 %v747, %v744
    %v814 = vpack.c.b16 %v748, %v745
    %v815 = vpack.c.b16 %v749, %v746
    %v816 = vpack.c.b16 %v753, %v750
    %v817 = vpack.c.b16 %v754, %v751
    %v818 = vpack.c.b16 %v755, %v752
    %v819 = vpack.c.b16 %v759, %v756
    %v820 = vpack.c.b16 %v760, %v757
    %v821 = vpack.c.b16 %v761, %v758
    %v822 = vpack.c.b16 %v765, %v762
    %v823 = vpack.c.b16 %v766, %v763
    %v824 = vpack.c.b16 %v767, %v764
    %v825 = vpack.c.b16 %v771, %v768
    %v826 = vpack.c.b16 %v772, %v769
    %v827 = vpack.c.b16 %v773, %v770
    %v828 = vpack.c.b16 %v777, %v774
    %v829 = vpack.c.b16 %v778, %v775
    %v830 = vpack.c.b16 %v779, %v776
    %vm865 = vcmask 130048
    %v867 = vsel %vm865, %v782, 0
    %v870 = vsel %vm865, %v785, 0
    %v873 = vsel %vm865, %v788, 0
    %v876 = vsel %vm865, %v791, 0
    %v879 = vsel %vm865, %v794, 0
    %v882 = vsel %vm865, %v797, 0
    %v885 = vsel %vm865, %v800, 0
    %v888 = vsel %vm865, %v803, 0
    %v891 = vsel %vm865, %v806, 0
    %v894 = vsel %vm865, %v809, 0
    %v897 = vsel %vm865, %v812, 0
    %v900 = vsel %vm865, %v815, 0
    %v903 = vsel %vm865, %v818, 0
    %v906 = vsel %vm865, %v821, 0
    %v909 = vsel %vm865, %v824, 0
    %v912 = vsel %vm865, %v827, 0
    %v915 = vsel %vm865, %v830, 0
    %917 = vmatpush.bf16.msra.mxu0 %v600
    %918 = vmatpush.bf16.msra.mxu0 %v599
    %919 = vmatpush.bf16.msra.mxu0 %v598
    %920 = vmatpush.bf16.msra.mxu0 %v597
    %921 = vmatpush.bf16.msra.mxu0 %v596
    %922 = vmatpush.bf16.msra.mxu0 %v595
    %923 = vmatpush.bf16.msra.mxu0 %v594
    %924 = vmatpush.bf16.msra.mxu0 %v593
    %925 = vmatmul.bf16.gmra.mxu0 %v780
    %v926 = vpop.f32.mrf.mxu0
    %v927 = vadd.f32 0.0, %v926
    %v928 = vpop.f32.mrf.mxu0
    %v929 = vadd.f32 0.0, %v928
    %930 = vmatmul.bf16.gmra.mxu0 %v783
    %v931 = vpop.f32.mrf.mxu0
    %v932 = vadd.f32 0.0, %v931
    %v933 = vpop.f32.mrf.mxu0
    %v934 = vadd.f32 0.0, %v933
    %935 = vmatmul.bf16.gmra.mxu0 %v786
    %v936 = vpop.f32.mrf.mxu0
    %v937 = vadd.f32 0.0, %v936
    %v938 = vpop.f32.mrf.mxu0
    %v939 = vadd.f32 0.0, %v938
    %940 = vmatmul.bf16.gmra.mxu0 %v789
    %v941 = vpop.f32.mrf.mxu0
    %v942 = vadd.f32 0.0, %v941
    %v943 = vpop.f32.mrf.mxu0
    %v944 = vadd.f32 0.0, %v943
    %945 = vmatmul.bf16.gmra.mxu0 %v792
    %v946 = vpop.f32.mrf.mxu0
    %v947 = vadd.f32 0.0, %v946
    %v948 = vpop.f32.mrf.mxu0
    %v949 = vadd.f32 0.0, %v948
    %950 = vmatmul.bf16.gmra.mxu0 %v795
    %v951 = vpop.f32.mrf.mxu0
    %v952 = vadd.f32 0.0, %v951
    %v953 = vpop.f32.mrf.mxu0
    %v954 = vadd.f32 0.0, %v953
    %955 = vmatmul.bf16.gmra.mxu0 %v798
    %v956 = vpop.f32.mrf.mxu0
    %v957 = vadd.f32 0.0, %v956
    %v958 = vpop.f32.mrf.mxu0
    %v959 = vadd.f32 0.0, %v958
    %960 = vmatmul.bf16.gmra.mxu0 %v801
    %v961 = vpop.f32.mrf.mxu0
    %v962 = vadd.f32 0.0, %v961
    %v963 = vpop.f32.mrf.mxu0
    %v964 = vadd.f32 0.0, %v963
    %965 = vmatmul.bf16.gmra.mxu0 %v804
    %v966 = vpop.f32.mrf.mxu0
    %v967 = vadd.f32 0.0, %v966
    %v968 = vpop.f32.mrf.mxu0
    %v969 = vadd.f32 0.0, %v968
    %970 = vmatmul.bf16.gmra.mxu0 %v807
    %v971 = vpop.f32.mrf.mxu0
    %v972 = vadd.f32 0.0, %v971
    %v973 = vpop.f32.mrf.mxu0
    %v974 = vadd.f32 0.0, %v973
    %975 = vmatmul.bf16.gmra.mxu0 %v810
    %v976 = vpop.f32.mrf.mxu0
    %v977 = vadd.f32 0.0, %v976
    %v978 = vpop.f32.mrf.mxu0
    %v979 = vadd.f32 0.0, %v978
    %980 = vmatmul.bf16.gmra.mxu0 %v813
    %v981 = vpop.f32.mrf.mxu0
    %v982 = vadd.f32 0.0, %v981
    %v983 = vpop.f32.mrf.mxu0
    %v984 = vadd.f32 0.0, %v983
    %985 = vmatmul.bf16.gmra.mxu0 %v816
    %v986 = vpop.f32.mrf.mxu0
    %v987 = vadd.f32 0.0, %v986
    %v988 = vpop.f32.mrf.mxu0
    %v989 = vadd.f32 0.0, %v988
    %990 = vmatmul.bf16.gmra.mxu0 %v819
    %v991 = vpop.f32.mrf.mxu0
    %v992 = vadd.f32 0.0, %v991
    %v993 = vpop.f32.mrf.mxu0
    %v994 = vadd.f32 0.0, %v993
    %995 = vmatmul.bf16.gmra.mxu0 %v822
    %v996 = vpop.f32.mrf.mxu0
    %v997 = vadd.f32 0.0, %v996
    %v998 = vpop.f32.mrf.mxu0
    %v999 = vadd.f32 0.0, %v998
    %1000 = vmatmul.bf16.gmra.mxu0 %v825
    %v1001 = vpop.f32.mrf.mxu0
    %v1002 = vadd.f32 0.0, %v1001
    %v1003 = vpop.f32.mrf.mxu0
    %v1004 = vadd.f32 0.0, %v1003
    %1005 = vmatmul.bf16.gmra.mxu0 %v828
    %v1006 = vpop.f32.mrf.mxu0
    %v1007 = vadd.f32 0.0, %v1006
    %v1008 = vpop.f32.mrf.mxu0
    %v1009 = vadd.f32 0.0, %v1008
    %1010 = vdwg.mxu0
    %1011 = vmatpush.bf16.msra.mxu0 %v608
    %1012 = vmatpush.bf16.msra.mxu0 %v607
    %1013 = vmatpush.bf16.msra.mxu0 %v606
    %1014 = vmatpush.bf16.msra.mxu0 %v605
    %1015 = vmatpush.bf16.msra.mxu0 %v604
    %1016 = vmatpush.bf16.msra.mxu0 %v603
    %1017 = vmatpush.bf16.msra.mxu0 %v602
    %1018 = vmatpush.bf16.msra.mxu0 %v601
    %1019 = vmatmul.bf16.gmra.mxu0 %v781
    %v1020 = vpop.f32.mrf.mxu0
    %v1021 = vadd.f32 %v927, %v1020
    %v1022 = vpop.f32.mrf.mxu0
    %v1023 = vadd.f32 %v929, %v1022
    %1024 = vmatmul.bf16.gmra.mxu0 %v784
    %v1025 = vpop.f32.mrf.mxu0
    %v1026 = vadd.f32 %v932, %v1025
    %v1027 = vpop.f32.mrf.mxu0
    %v1028 = vadd.f32 %v934, %v1027
    %1029 = vmatmul.bf16.gmra.mxu0 %v787
    %v1030 = vpop.f32.mrf.mxu0
    %v1031 = vadd.f32 %v937, %v1030
    %v1032 = vpop.f32.mrf.mxu0
    %v1033 = vadd.f32 %v939, %v1032
    %1034 = vmatmul.bf16.gmra.mxu0 %v790
    %v1035 = vpop.f32.mrf.mxu0
    %v1036 = vadd.f32 %v942, %v1035
    %v1037 = vpop.f32.mrf.mxu0
    %v1038 = vadd.f32 %v944, %v1037
    %1039 = vmatmul.bf16.gmra.mxu0 %v793
    %v1040 = vpop.f32.mrf.mxu0
    %v1041 = vadd.f32 %v947, %v1040
    %v1042 = vpop.f32.mrf.mxu0
    %v1043 = vadd.f32 %v949, %v1042
    %1044 = vmatmul.bf16.gmra.mxu0 %v796
    %v1045 = vpop.f32.mrf.mxu0
    %v1046 = vadd.f32 %v952, %v1045
    %v1047 = vpop.f32.mrf.mxu0
    %v1048 = vadd.f32 %v954, %v1047
    %1049 = vmatmul.bf16.gmra.mxu0 %v799
    %v1050 = vpop.f32.mrf.mxu0
    %v1051 = vadd.f32 %v957, %v1050
    %v1052 = vpop.f32.mrf.mxu0
    %v1053 = vadd.f32 %v959, %v1052
    %1054 = vmatmul.bf16.gmra.mxu0 %v802
    %v1055 = vpop.f32.mrf.mxu0
    %v1056 = vadd.f32 %v962, %v1055
    %v1057 = vpop.f32.mrf.mxu0
    %v1058 = vadd.f32 %v964, %v1057
    %1059 = vmatmul.bf16.gmra.mxu0 %v805
    %v1060 = vpop.f32.mrf.mxu0
    %v1061 = vadd.f32 %v967, %v1060
    %v1062 = vpop.f32.mrf.mxu0
    %v1063 = vadd.f32 %v969, %v1062
    %1064 = vmatmul.bf16.gmra.mxu0 %v808
    %v1065 = vpop.f32.mrf.mxu0
    %v1066 = vadd.f32 %v972, %v1065
    %v1067 = vpop.f32.mrf.mxu0
    %v1068 = vadd.f32 %v974, %v1067
    %1069 = vmatmul.bf16.gmra.mxu0 %v811
    %v1070 = vpop.f32.mrf.mxu0
    %v1071 = vadd.f32 %v977, %v1070
    %v1072 = vpop.f32.mrf.mxu0
    %v1073 = vadd.f32 %v979, %v1072
    %1074 = vmatmul.bf16.gmra.mxu0 %v814
    %v1075 = vpop.f32.mrf.mxu0
    %v1076 = vadd.f32 %v982, %v1075
    %v1077 = vpop.f32.mrf.mxu0
    %v1078 = vadd.f32 %v984, %v1077
    %1079 = vmatmul.bf16.gmra.mxu0 %v817
    %v1080 = vpop.f32.mrf.mxu0
    %v1081 = vadd.f32 %v987, %v1080
    %v1082 = vpop.f32.mrf.mxu0
    %v1083 = vadd.f32 %v989, %v1082
    %1084 = vmatmul.bf16.gmra.mxu0 %v820
    %v1085 = vpop.f32.mrf.mxu0
    %v1086 = vadd.f32 %v992, %v1085
    %v1087 = vpop.f32.mrf.mxu0
    %v1088 = vadd.f32 %v994, %v1087
    %1089 = vmatmul.bf16.gmra.mxu0 %v823
    %v1090 = vpop.f32.mrf.mxu0
    %v1091 = vadd.f32 %v997, %v1090
    %v1092 = vpop.f32.mrf.mxu0
    %v1093 = vadd.f32 %v999, %v1092
    %1094 = vmatmul.bf16.gmra.mxu0 %v826
    %v1095 = vpop.f32.mrf.mxu0
    %v1096 = vadd.f32 %v1002, %v1095
    %v1097 = vpop.f32.mrf.mxu0
    %v1098 = vadd.f32 %v1004, %v1097
    %1099 = vmatmul.bf16.gmra.mxu0 %v829
    %v1100 = vpop.f32.mrf.mxu0
    %v1101 = vadd.f32 %v1007, %v1100
    %v1102 = vpop.f32.mrf.mxu0
    %v1103 = vadd.f32 %v1009, %v1102
    %1104 = vdwg.mxu0
    %1105 = vmatpush.bf16.msra.mxu0 0
    %1106 = vmatpush.bf16.msra.mxu0 0
    %1107 = vmatpush.bf16.msra.mxu0 0
    %1108 = vmatpush.bf16.msra.mxu0 0
    %1109 = vmatpush.bf16.msra.mxu0 0
    %1110 = vmatpush.bf16.msra.mxu0 0
    %1111 = vmatpush.bf16.msra.mxu0 0
    %1112 = vmatpush.bf16.msra.mxu0 %v609
    %1113 = vmatmul.bf16.gmra.mxu0 %v867
    %v1114 = vpop.f32.mrf.mxu0
    %v1115 = vadd.f32 %v1021, %v1114
    %v1116 = vpop.f32.mrf.mxu0
    %v1117 = vadd.f32 %v1023, %v1116
    %1118 = vmatmul.bf16.gmra.mxu0 %v870
    %v1119 = vpop.f32.mrf.mxu0
    %v1120 = vadd.f32 %v1026, %v1119
    %v1121 = vpop.f32.mrf.mxu0
    %v1122 = vadd.f32 %v1028, %v1121
    %1123 = vmatmul.bf16.gmra.mxu0 %v873
    %v1124 = vpop.f32.mrf.mxu0
    %v1125 = vadd.f32 %v1031, %v1124
    %v1126 = vpop.f32.mrf.mxu0
    %v1127 = vadd.f32 %v1033, %v1126
    %1128 = vmatmul.bf16.gmra.mxu0 %v876
    %v1129 = vpop.f32.mrf.mxu0
    %v1130 = vadd.f32 %v1036, %v1129
    %v1131 = vpop.f32.mrf.mxu0
    %v1132 = vadd.f32 %v1038, %v1131
    %1133 = vmatmul.bf16.gmra.mxu0 %v879
    %v1134 = vpop.f32.mrf.mxu0
    %v1135 = vadd.f32 %v1041, %v1134
    %v1136 = vpop.f32.mrf.mxu0
    %v1137 = vadd.f32 %v1043, %v1136
    %1138 = vmatmul.bf16.gmra.mxu0 %v882
    %v1139 = vpop.f32.mrf.mxu0
    %v1140 = vadd.f32 %v1046, %v1139
    %v1141 = vpop.f32.mrf.mxu0
    %v1142 = vadd.f32 %v1048, %v1141
    %1143 = vmatmul.bf16.gmra.mxu0 %v885
    %v1144 = vpop.f32.mrf.mxu0
    %v1145 = vadd.f32 %v1051, %v1144
    %v1146 = vpop.f32.mrf.mxu0
    %v1147 = vadd.f32 %v1053, %v1146
    %1148 = vmatmul.bf16.gmra.mxu0 %v888
    %v1149 = vpop.f32.mrf.mxu0
    %v1150 = vadd.f32 %v1056, %v1149
    %v1151 = vpop.f32.mrf.mxu0
    %v1152 = vadd.f32 %v1058, %v1151
    %1153 = vmatmul.bf16.gmra.mxu0 %v891
    %v1154 = vpop.f32.mrf.mxu0
    %v1155 = vadd.f32 %v1061, %v1154
    %v1156 = vpop.f32.mrf.mxu0
    %v1157 = vadd.f32 %v1063, %v1156
    %1158 = vmatmul.bf16.gmra.mxu0 %v894
    %v1159 = vpop.f32.mrf.mxu0
    %v1160 = vadd.f32 %v1066, %v1159
    %v1161 = vpop.f32.mrf.mxu0
    %v1162 = vadd.f32 %v1068, %v1161
    %1163 = vmatmul.bf16.gmra.mxu0 %v897
    %v1164 = vpop.f32.mrf.mxu0
    %v1165 = vadd.f32 %v1071, %v1164
    %v1166 = vpop.f32.mrf.mxu0
    %v1167 = vadd.f32 %v1073, %v1166
    %1168 = vmatmul.bf16.gmra.mxu0 %v900
    %v1169 = vpop.f32.mrf.mxu0
    %v1170 = vadd.f32 %v1076, %v1169
    %v1171 = vpop.f32.mrf.mxu0
    %v1172 = vadd.f32 %v1078, %v1171
    %1173 = vmatmul.bf16.gmra.mxu0 %v903
    %v1174 = vpop.f32.mrf.mxu0
    %v1175 = vadd.f32 %v1081, %v1174
    %v1176 = vpop.f32.mrf.mxu0
    %v1177 = vadd.f32 %v1083, %v1176
    %1178 = vmatmul.bf16.gmra.mxu0 %v906
    %v1179 = vpop.f32.mrf.mxu0
    %v1180 = vadd.f32 %v1086, %v1179
    %v1181 = vpop.f32.mrf.mxu0
    %v1182 = vadd.f32 %v1088, %v1181
    %1183 = vmatmul.bf16.gmra.mxu0 %v909
    %v1184 = vpop.f32.mrf.mxu0
    %v1185 = vadd.f32 %v1091, %v1184
    %v1186 = vpop.f32.mrf.mxu0
    %v1187 = vadd.f32 %v1093, %v1186
    %1188 = vmatmul.bf16.gmra.mxu0 %v912
    %v1189 = vpop.f32.mrf.mxu0
    %v1190 = vadd.f32 %v1096, %v1189
    %v1191 = vpop.f32.mrf.mxu0
    %v1192 = vadd.f32 %v1098, %v1191
    %1193 = vmatmul.bf16.gmra.mxu0 %v915
    %v1194 = vpop.f32.mrf.mxu0
    %v1195 = vadd.f32 %v1101, %v1194
    %v1196 = vpop.f32.mrf.mxu0
    %v1197 = vadd.f32 %v1103, %v1196
    %1198 = vdwg.mxu0
    %v1267 = vunpack.c.l.b16 %v340
    %v1268 = vunpack.c.h.b16 %v340
    %v1269 = vunpack.c.l.b16 %v341
    %v1270 = vunpack.c.l.b16 %v342
    %v1271 = vunpack.c.h.b16 %v342
    %v1272 = vunpack.c.l.b16 %v343
    %v1273 = vunpack.c.l.b16 %v344
    %v1274 = vunpack.c.h.b16 %v344
    %v1275 = vunpack.c.l.b16 %v345
    %v1276 = vunpack.c.l.b16 %v346
    %v1277 = vunpack.c.h.b16 %v346
    %v1278 = vunpack.c.l.b16 %v347
    %v1279 = vunpack.c.l.b16 %v348
    %v1280 = vunpack.c.h.b16 %v348
    %v1281 = vunpack.c.l.b16 %v349
    %v1282 = vunpack.c.l.b16 %v350
    %v1283 = vunpack.c.h.b16 %v350
    %v1284 = vunpack.c.l.b16 %v351
    %v1285 = vunpack.c.l.b16 %v352
    %v1286 = vunpack.c.h.b16 %v352
    %v1287 = vunpack.c.l.b16 %v353
    %v1288 = vunpack.c.l.b16 %v354
    %v1289 = vunpack.c.h.b16 %v354
    %v1290 = vunpack.c.l.b16 %v355
    %v1291 = vunpack.c.l.b16 %v356
    %v1292 = vunpack.c.h.b16 %v356
    %v1293 = vunpack.c.l.b16 %v357
    %v1294 = vunpack.c.l.b16 %v358
    %v1295 = vunpack.c.h.b16 %v358
    %v1296 = vunpack.c.l.b16 %v359
    %v1297 = vunpack.c.l.b16 %v360
    %v1298 = vunpack.c.h.b16 %v360
    %v1299 = vunpack.c.l.b16 %v361
    %v1300 = vunpack.c.l.b16 %v362
    %v1301 = vunpack.c.h.b16 %v362
    %v1302 = vunpack.c.l.b16 %v363
    %v1303 = vunpack.c.l.b16 %v364
    %v1304 = vunpack.c.h.b16 %v364
    %v1305 = vunpack.c.l.b16 %v365
    %v1306 = vunpack.c.l.b16 %v366
    %v1307 = vunpack.c.h.b16 %v366
    %v1308 = vunpack.c.l.b16 %v367
    %v1309 = vunpack.c.l.b16 %v368
    %v1310 = vunpack.c.h.b16 %v368
    %v1311 = vunpack.c.l.b16 %v369
    %v1312 = vunpack.c.l.b16 %v370
    %v1313 = vunpack.c.h.b16 %v370
    %v1314 = vunpack.c.l.b16 %v371
    %v1315 = vunpack.c.l.b16 %v372
    %v1316 = vunpack.c.h.b16 %v372
    %v1317 = vunpack.c.l.b16 %v373
    %v1318 = vunpack.c.l.b16 %v374
    %v1319 = vunpack.c.h.b16 %v374
    %v1320 = vunpack.c.l.b16 %v375
    %v1321 = vunpack.c.l.b16 %v376
    %v1322 = vunpack.c.h.b16 %v376
    %v1323 = vunpack.c.l.b16 %v377
    %v1324 = vunpack.c.l.b16 %v378
    %v1325 = vunpack.c.h.b16 %v378
    %v1326 = vunpack.c.l.b16 %v379
    %v1327 = vunpack.c.l.b16 %v380
    %v1328 = vunpack.c.h.b16 %v380
    %v1329 = vunpack.c.l.b16 %v381
    %v1330 = vunpack.c.l.b16 %v382
    %v1331 = vunpack.c.h.b16 %v382
    %v1332 = vunpack.c.l.b16 %v383
    %v1333 = vunpack.c.l.b16 %v384
    %v1334 = vunpack.c.h.b16 %v384
    %v1335 = vunpack.c.l.b16 %v385
    %v1336 = vunpack.c.l.b16 %v386
    %v1337 = vunpack.c.h.b16 %v386
    %v1338 = vunpack.c.l.b16 %v387
    %v1339 = vunpack.c.l.b16 %v388
    %v1340 = vunpack.c.h.b16 %v388
    %v1341 = vunpack.c.l.b16 %v389
    %v1342 = vunpack.c.l.b16 %v390
    %v1343 = vunpack.c.h.b16 %v390
    %v1344 = vunpack.c.l.b16 %v391
    %v1345 = vunpack.c.l.b16 %v392
    %v1346 = vunpack.c.h.b16 %v392
    %v1347 = vunpack.c.l.b16 %v393
    %v1348 = vunpack.c.l.b16 %v394
    %v1349 = vunpack.c.h.b16 %v394
    %v1350 = vunpack.c.l.b16 %v395
    %v1351 = vunpack.c.l.b16 %v396
    %v1352 = vunpack.c.h.b16 %v396
    %v1353 = vunpack.c.l.b16 %v397
    %v1354 = vunpack.c.l.b16 %v398
    %v1355 = vunpack.c.h.b16 %v398
    %v1356 = vunpack.c.l.b16 %v399
    %v1357 = vunpack.c.l.b16 %v400
    %v1358 = vunpack.c.h.b16 %v400
    %v1359 = vunpack.c.l.b16 %v401
    %v1360 = vunpack.c.l.b16 %v402
    %v1361 = vunpack.c.h.b16 %v402
    %v1362 = vunpack.c.l.b16 %v403
    %v1363 = vunpack.c.l.b16 %v404
    %v1364 = vunpack.c.h.b16 %v404
    %v1365 = vunpack.c.l.b16 %v405
    %v1366 = vunpack.c.l.b16 %v406
    %v1367 = vunpack.c.h.b16 %v406
    %v1368 = vunpack.c.l.b16 %v407
    %v1369 = vpack.c.b16 %v1270, %v1267
    %v1370 = vpack.c.b16 %v1271, %v1268
    %v1371 = vpack.c.b16 %v1272, %v1269
    %v1372 = vpack.c.b16 %v1276, %v1273
    %v1373 = vpack.c.b16 %v1277, %v1274
    %v1374 = vpack.c.b16 %v1278, %v1275
    %v1375 = vpack.c.b16 %v1282, %v1279
    %v1376 = vpack.c.b16 %v1283, %v1280
    %v1377 = vpack.c.b16 %v1284, %v1281
    %v1378 = vpack.c.b16 %v1288, %v1285
    %v1379 = vpack.c.b16 %v1289, %v1286
    %v1380 = vpack.c.b16 %v1290, %v1287
    %v1381 = vpack.c.b16 %v1294, %v1291
    %v1382 = vpack.c.b16 %v1295, %v1292
    %v1383 = vpack.c.b16 %v1296, %v1293
    %v1384 = vpack.c.b16 %v1300, %v1297
    %v1385 = vpack.c.b16 %v1301, %v1298
    %v1386 = vpack.c.b16 %v1302, %v1299
    %v1387 = vpack.c.b16 %v1306, %v1303
    %v1388 = vpack.c.b16 %v1307, %v1304
    %v1389 = vpack.c.b16 %v1308, %v1305
    %v1390 = vpack.c.b16 %v1312, %v1309
    %v1391 = vpack.c.b16 %v1313, %v1310
    %v1392 = vpack.c.b16 %v1314, %v1311
    %v1393 = vpack.c.b16 %v1318, %v1315
    %v1394 = vpack.c.b16 %v1319, %v1316
    %v1395 = vpack.c.b16 %v1320, %v1317
    %v1396 = vpack.c.b16 %v1324, %v1321
    %v1397 = vpack.c.b16 %v1325, %v1322
    %v1398 = vpack.c.b16 %v1326, %v1323
    %v1399 = vpack.c.b16 %v1330, %v1327
    %v1400 = vpack.c.b16 %v1331, %v1328
    %v1401 = vpack.c.b16 %v1332, %v1329
    %v1402 = vpack.c.b16 %v1336, %v1333
    %v1403 = vpack.c.b16 %v1337, %v1334
    %v1404 = vpack.c.b16 %v1338, %v1335
    %v1405 = vpack.c.b16 %v1342, %v1339
    %v1406 = vpack.c.b16 %v1343, %v1340
    %v1407 = vpack.c.b16 %v1344, %v1341
    %v1408 = vpack.c.b16 %v1348, %v1345
    %v1409 = vpack.c.b16 %v1349, %v1346
    %v1410 = vpack.c.b16 %v1350, %v1347
    %v1411 = vpack.c.b16 %v1354, %v1351
    %v1412 = vpack.c.b16 %v1355, %v1352
    %v1413 = vpack.c.b16 %v1356, %v1353
    %v1414 = vpack.c.b16 %v1360, %v1357
    %v1415 = vpack.c.b16 %v1361, %v1358
    %v1416 = vpack.c.b16 %v1362, %v1359
    %v1417 = vpack.c.b16 %v1366, %v1363
    %v1418 = vpack.c.b16 %v1367, %v1364
    %v1419 = vpack.c.b16 %v1368, %v1365
    %v1455 = vsel %vm865, %v1371, 0
    %v1458 = vsel %vm865, %v1374, 0
    %v1461 = vsel %vm865, %v1377, 0
    %v1464 = vsel %vm865, %v1380, 0
    %v1467 = vsel %vm865, %v1383, 0
    %v1470 = vsel %vm865, %v1386, 0
    %v1473 = vsel %vm865, %v1389, 0
    %v1476 = vsel %vm865, %v1392, 0
    %v1479 = vsel %vm865, %v1395, 0
    %v1482 = vsel %vm865, %v1398, 0
    %v1485 = vsel %vm865, %v1401, 0
    %v1488 = vsel %vm865, %v1404, 0
    %v1491 = vsel %vm865, %v1407, 0
    %v1494 = vsel %vm865, %v1410, 0
    %v1497 = vsel %vm865, %v1413, 0
    %v1500 = vsel %vm865, %v1416, 0
    %v1503 = vsel %vm865, %v1419, 0
    %1505 = vmatpush.bf16.msra.mxu0 %v415
    %1506 = vmatpush.bf16.msra.mxu0 %v414
    %1507 = vmatpush.bf16.msra.mxu0 %v413
    %1508 = vmatpush.bf16.msra.mxu0 %v412
    %1509 = vmatpush.bf16.msra.mxu0 %v411
    %1510 = vmatpush.bf16.msra.mxu0 %v410
    %1511 = vmatpush.bf16.msra.mxu0 %v409
    %1512 = vmatpush.bf16.msra.mxu0 %v408
    %1513 = vmatmul.bf16.gmra.mxu0 %v1369
    %v1514 = vpop.f32.mrf.mxu0
    %v1515 = vadd.f32 %v1115, %v1514
    %v1516 = vpop.f32.mrf.mxu0
    %v1517 = vadd.f32 %v1117, %v1516
    %1518 = vmatmul.bf16.gmra.mxu0 %v1372
    %v1519 = vpop.f32.mrf.mxu0
    %v1520 = vadd.f32 %v1120, %v1519
    %v1521 = vpop.f32.mrf.mxu0
    %v1522 = vadd.f32 %v1122, %v1521
    %1523 = vmatmul.bf16.gmra.mxu0 %v1375
    %v1524 = vpop.f32.mrf.mxu0
    %v1525 = vadd.f32 %v1125, %v1524
    %v1526 = vpop.f32.mrf.mxu0
    %v1527 = vadd.f32 %v1127, %v1526
    %1528 = vmatmul.bf16.gmra.mxu0 %v1378
    %v1529 = vpop.f32.mrf.mxu0
    %v1530 = vadd.f32 %v1130, %v1529
    %v1531 = vpop.f32.mrf.mxu0
    %v1532 = vadd.f32 %v1132, %v1531
    %1533 = vmatmul.bf16.gmra.mxu0 %v1381
    %v1534 = vpop.f32.mrf.mxu0
    %v1535 = vadd.f32 %v1135, %v1534
    %v1536 = vpop.f32.mrf.mxu0
    %v1537 = vadd.f32 %v1137, %v1536
    %1538 = vmatmul.bf16.gmra.mxu0 %v1384
    %v1539 = vpop.f32.mrf.mxu0
    %v1540 = vadd.f32 %v1140, %v1539
    %v1541 = vpop.f32.mrf.mxu0
    %v1542 = vadd.f32 %v1142, %v1541
    %1543 = vmatmul.bf16.gmra.mxu0 %v1387
    %v1544 = vpop.f32.mrf.mxu0
    %v1545 = vadd.f32 %v1145, %v1544
    %v1546 = vpop.f32.mrf.mxu0
    %v1547 = vadd.f32 %v1147, %v1546
    %1548 = vmatmul.bf16.gmra.mxu0 %v1390
    %v1549 = vpop.f32.mrf.mxu0
    %v1550 = vadd.f32 %v1150, %v1549
    %v1551 = vpop.f32.mrf.mxu0
    %v1552 = vadd.f32 %v1152, %v1551
    %1553 = vmatmul.bf16.gmra.mxu0 %v1393
    %v1554 = vpop.f32.mrf.mxu0
    %v1555 = vadd.f32 %v1155, %v1554
    %v1556 = vpop.f32.mrf.mxu0
    %v1557 = vadd.f32 %v1157, %v1556
    %1558 = vmatmul.bf16.gmra.mxu0 %v1396
    %v1559 = vpop.f32.mrf.mxu0
    %v1560 = vadd.f32 %v1160, %v1559
    %v1561 = vpop.f32.mrf.mxu0
    %v1562 = vadd.f32 %v1162, %v1561
    %1563 = vmatmul.bf16.gmra.mxu0 %v1399
    %v1564 = vpop.f32.mrf.mxu0
    %v1565 = vadd.f32 %v1165, %v1564
    %v1566 = vpop.f32.mrf.mxu0
    %v1567 = vadd.f32 %v1167, %v1566
    %1568 = vmatmul.bf16.gmra.mxu0 %v1402
    %v1569 = vpop.f32.mrf.mxu0
    %v1570 = vadd.f32 %v1170, %v1569
    %v1571 = vpop.f32.mrf.mxu0
    %v1572 = vadd.f32 %v1172, %v1571
    %1573 = vmatmul.bf16.gmra.mxu0 %v1405
    %v1574 = vpop.f32.mrf.mxu0
    %v1575 = vadd.f32 %v1175, %v1574
    %v1576 = vpop.f32.mrf.mxu0
    %v1577 = vadd.f32 %v1177, %v1576
    %1578 = vmatmul.bf16.gmra.mxu0 %v1408
    %v1579 = vpop.f32.mrf.mxu0
    %v1580 = vadd.f32 %v1180, %v1579
    %v1581 = vpop.f32.mrf.mxu0
    %v1582 = vadd.f32 %v1182, %v1581
    %1583 = vmatmul.bf16.gmra.mxu0 %v1411
    %v1584 = vpop.f32.mrf.mxu0
    %v1585 = vadd.f32 %v1185, %v1584
    %v1586 = vpop.f32.mrf.mxu0
    %v1587 = vadd.f32 %v1187, %v1586
    %1588 = vmatmul.bf16.gmra.mxu0 %v1414
    %v1589 = vpop.f32.mrf.mxu0
    %v1590 = vadd.f32 %v1190, %v1589
    %v1591 = vpop.f32.mrf.mxu0
    %v1592 = vadd.f32 %v1192, %v1591
    %1593 = vmatmul.bf16.gmra.mxu0 %v1417
    %v1594 = vpop.f32.mrf.mxu0
    %v1595 = vadd.f32 %v1195, %v1594
    %v1596 = vpop.f32.mrf.mxu0
    %v1597 = vadd.f32 %v1197, %v1596
    %1598 = vdwg.mxu0
    %1599 = vmatpush.bf16.msra.mxu0 %v423
    %1600 = vmatpush.bf16.msra.mxu0 %v422
    %1601 = vmatpush.bf16.msra.mxu0 %v421
    %1602 = vmatpush.bf16.msra.mxu0 %v420
    %1603 = vmatpush.bf16.msra.mxu0 %v419
    %1604 = vmatpush.bf16.msra.mxu0 %v418
    %1605 = vmatpush.bf16.msra.mxu0 %v417
    %1606 = vmatpush.bf16.msra.mxu0 %v416
    %1607 = vmatmul.bf16.gmra.mxu0 %v1370
    %v1608 = vpop.f32.mrf.mxu0
    %v1609 = vadd.f32 %v1515, %v1608
    %v1610 = vpop.f32.mrf.mxu0
    %v1611 = vadd.f32 %v1517, %v1610
    %1612 = vmatmul.bf16.gmra.mxu0 %v1373
    %v1613 = vpop.f32.mrf.mxu0
    %v1614 = vadd.f32 %v1520, %v1613
    %v1615 = vpop.f32.mrf.mxu0
    %v1616 = vadd.f32 %v1522, %v1615
    %1617 = vmatmul.bf16.gmra.mxu0 %v1376
    %v1618 = vpop.f32.mrf.mxu0
    %v1619 = vadd.f32 %v1525, %v1618
    %v1620 = vpop.f32.mrf.mxu0
    %v1621 = vadd.f32 %v1527, %v1620
    %1622 = vmatmul.bf16.gmra.mxu0 %v1379
    %v1623 = vpop.f32.mrf.mxu0
    %v1624 = vadd.f32 %v1530, %v1623
    %v1625 = vpop.f32.mrf.mxu0
    %v1626 = vadd.f32 %v1532, %v1625
    %1627 = vmatmul.bf16.gmra.mxu0 %v1382
    %v1628 = vpop.f32.mrf.mxu0
    %v1629 = vadd.f32 %v1535, %v1628
    %v1630 = vpop.f32.mrf.mxu0
    %v1631 = vadd.f32 %v1537, %v1630
    %1632 = vmatmul.bf16.gmra.mxu0 %v1385
    %v1633 = vpop.f32.mrf.mxu0
    %v1634 = vadd.f32 %v1540, %v1633
    %v1635 = vpop.f32.mrf.mxu0
    %v1636 = vadd.f32 %v1542, %v1635
    %1637 = vmatmul.bf16.gmra.mxu0 %v1388
    %v1638 = vpop.f32.mrf.mxu0
    %v1639 = vadd.f32 %v1545, %v1638
    %v1640 = vpop.f32.mrf.mxu0
    %v1641 = vadd.f32 %v1547, %v1640
    %1642 = vmatmul.bf16.gmra.mxu0 %v1391
    %v1643 = vpop.f32.mrf.mxu0
    %v1644 = vadd.f32 %v1550, %v1643
    %v1645 = vpop.f32.mrf.mxu0
    %v1646 = vadd.f32 %v1552, %v1645
    %1647 = vmatmul.bf16.gmra.mxu0 %v1394
    %v1648 = vpop.f32.mrf.mxu0
    %v1649 = vadd.f32 %v1555, %v1648
    %v1650 = vpop.f32.mrf.mxu0
    %v1651 = vadd.f32 %v1557, %v1650
    %1652 = vmatmul.bf16.gmra.mxu0 %v1397
    %v1653 = vpop.f32.mrf.mxu0
    %v1654 = vadd.f32 %v1560, %v1653
    %v1655 = vpop.f32.mrf.mxu0
    %v1656 = vadd.f32 %v1562, %v1655
    %1657 = vmatmul.bf16.gmra.mxu0 %v1400
    %v1658 = vpop.f32.mrf.mxu0
    %v1659 = vadd.f32 %v1565, %v1658
    %v1660 = vpop.f32.mrf.mxu0
    %v1661 = vadd.f32 %v1567, %v1660
    %1662 = vmatmul.bf16.gmra.mxu0 %v1403
    %v1663 = vpop.f32.mrf.mxu0
    %v1664 = vadd.f32 %v1570, %v1663
    %v1665 = vpop.f32.mrf.mxu0
    %v1666 = vadd.f32 %v1572, %v1665
    %1667 = vmatmul.bf16.gmra.mxu0 %v1406
    %v1668 = vpop.f32.mrf.mxu0
    %v1669 = vadd.f32 %v1575, %v1668
    %v1670 = vpop.f32.mrf.mxu0
    %v1671 = vadd.f32 %v1577, %v1670
    %1672 = vmatmul.bf16.gmra.mxu0 %v1409
    %v1673 = vpop.f32.mrf.mxu0
    %v1674 = vadd.f32 %v1580, %v1673
    %v1675 = vpop.f32.mrf.mxu0
    %v1676 = vadd.f32 %v1582, %v1675
    %1677 = vmatmul.bf16.gmra.mxu0 %v1412
    %v1678 = vpop.f32.mrf.mxu0
    %v1679 = vadd.f32 %v1585, %v1678
    %v1680 = vpop.f32.mrf.mxu0
    %v1681 = vadd.f32 %v1587, %v1680
    %1682 = vmatmul.bf16.gmra.mxu0 %v1415
    %v1683 = vpop.f32.mrf.mxu0
    %v1684 = vadd.f32 %v1590, %v1683
    %v1685 = vpop.f32.mrf.mxu0
    %v1686 = vadd.f32 %v1592, %v1685
    %1687 = vmatmul.bf16.gmra.mxu0 %v1418
    %v1688 = vpop.f32.mrf.mxu0
    %v1689 = vadd.f32 %v1595, %v1688
    %v1690 = vpop.f32.mrf.mxu0
    %v1691 = vadd.f32 %v1597, %v1690
    %1692 = vdwg.mxu0
    %1693 = vmatpush.bf16.msra.mxu0 0
    %1694 = vmatpush.bf16.msra.mxu0 0
    %1695 = vmatpush.bf16.msra.mxu0 0
    %1696 = vmatpush.bf16.msra.mxu0 0
    %1697 = vmatpush.bf16.msra.mxu0 0
    %1698 = vmatpush.bf16.msra.mxu0 0
    %1699 = vmatpush.bf16.msra.mxu0 0
    %1700 = vmatpush.bf16.msra.mxu0 %v424
    %1701 = vmatmul.bf16.gmra.mxu0 %v1455
    %v1702 = vpop.f32.mrf.mxu0
    %v1703 = vadd.f32 %v1609, %v1702
    %v1704 = vpop.f32.mrf.mxu0
    %v1705 = vadd.f32 %v1611, %v1704
    %1706 = vmatmul.bf16.gmra.mxu0 %v1458
    %v1707 = vpop.f32.mrf.mxu0
    %v1708 = vadd.f32 %v1614, %v1707
    %v1709 = vpop.f32.mrf.mxu0
    %v1710 = vadd.f32 %v1616, %v1709
    %1711 = vmatmul.bf16.gmra.mxu0 %v1461
    %v1712 = vpop.f32.mrf.mxu0
    %v1713 = vadd.f32 %v1619, %v1712
    %v1714 = vpop.f32.mrf.mxu0
    %v1715 = vadd.f32 %v1621, %v1714
    %1716 = vmatmul.bf16.gmra.mxu0 %v1464
    %v1717 = vpop.f32.mrf.mxu0
    %v1718 = vadd.f32 %v1624, %v1717
    %v1719 = vpop.f32.mrf.mxu0
    %v1720 = vadd.f32 %v1626, %v1719
    %1721 = vmatmul.bf16.gmra.mxu0 %v1467
    %v1722 = vpop.f32.mrf.mxu0
    %v1723 = vadd.f32 %v1629, %v1722
    %v1724 = vpop.f32.mrf.mxu0
    %v1725 = vadd.f32 %v1631, %v1724
    %1726 = vmatmul.bf16.gmra.mxu0 %v1470
    %v1727 = vpop.f32.mrf.mxu0
    %v1728 = vadd.f32 %v1634, %v1727
    %v1729 = vpop.f32.mrf.mxu0
    %v1730 = vadd.f32 %v1636, %v1729
    %1731 = vmatmul.bf16.gmra.mxu0 %v1473
    %v1732 = vpop.f32.mrf.mxu0
    %v1733 = vadd.f32 %v1639, %v1732
    %v1734 = vpop.f32.mrf.mxu0
    %v1735 = vadd.f32 %v1641, %v1734
    %1736 = vmatmul.bf16.gmra.mxu0 %v1476
    %v1737 = vpop.f32.mrf.mxu0
    %v1738 = vadd.f32 %v1644, %v1737
    %v1739 = vpop.f32.mrf.mxu0
    %v1740 = vadd.f32 %v1646, %v1739
    %1741 = vmatmul.bf16.gmra.mxu0 %v1479
    %v1742 = vpop.f32.mrf.mxu0
    %v1743 = vadd.f32 %v1649, %v1742
    %v1744 = vpop.f32.mrf.mxu0
    %v1745 = vadd.f32 %v1651, %v1744
    %1746 = vmatmul.bf16.gmra.mxu0 %v1482
    %v1747 = vpop.f32.mrf.mxu0
    %v1748 = vadd.f32 %v1654, %v1747
    %v1749 = vpop.f32.mrf.mxu0
    %v1750 = vadd.f32 %v1656, %v1749
    %1751 = vmatmul.bf16.gmra.mxu0 %v1485
    %v1752 = vpop.f32.mrf.mxu0
    %v1753 = vadd.f32 %v1659, %v1752
    %v1754 = vpop.f32.mrf.mxu0
    %v1755 = vadd.f32 %v1661, %v1754
    %1756 = vmatmul.bf16.gmra.mxu0 %v1488
    %v1757 = vpop.f32.mrf.mxu0
    %v1758 = vadd.f32 %v1664, %v1757
    %v1759 = vpop.f32.mrf.mxu0
    %v1760 = vadd.f32 %v1666, %v1759
    %1761 = vmatmul.bf16.gmra.mxu0 %v1491
    %v1762 = vpop.f32.mrf.mxu0
    %v1763 = vadd.f32 %v1669, %v1762
    %v1764 = vpop.f32.mrf.mxu0
    %v1765 = vadd.f32 %v1671, %v1764
    %1766 = vmatmul.bf16.gmra.mxu0 %v1494
    %v1767 = vpop.f32.mrf.mxu0
    %v1768 = vadd.f32 %v1674, %v1767
    %v1769 = vpop.f32.mrf.mxu0
    %v1770 = vadd.f32 %v1676, %v1769
    %1771 = vmatmul.bf16.gmra.mxu0 %v1497
    %v1772 = vpop.f32.mrf.mxu0
    %v1773 = vadd.f32 %v1679, %v1772
    %v1774 = vpop.f32.mrf.mxu0
    %v1775 = vadd.f32 %v1681, %v1774
    %1776 = vmatmul.bf16.gmra.mxu0 %v1500
    %v1777 = vpop.f32.mrf.mxu0
    %v1778 = vadd.f32 %v1684, %v1777
    %v1779 = vpop.f32.mrf.mxu0
    %v1780 = vadd.f32 %v1686, %v1779
    %1781 = vmatmul.bf16.gmra.mxu0 %v1503
    %v1782 = vpop.f32.mrf.mxu0
    %v1783 = vadd.f32 %v1689, %v1782
    %v1784 = vpop.f32.mrf.mxu0
    %v1785 = vadd.f32 %v1691, %v1784
    %1786 = vdwg.mxu0
    %s1787 = scalar_lea.vmem %s19, 4
    %v1788 = vld [vmem:[%s1787] sm:$0x3]
    %v1790 = vsel %vm242, %v1788, 0
    %1792 = vmatpush.bf16.msra.mxu0 0
    %1793 = vmatpush.bf16.msra.mxu0 0
    %1794 = vmatpush.bf16.msra.mxu0 0
    %1795 = vmatpush.bf16.msra.mxu0 0
    %1796 = vmatpush.bf16.msra.mxu0 0
    %1797 = vmatpush.bf16.msra.mxu0 0
    %1798 = vmatpush.bf16.msra.mxu0 0
    %1799 = vmatpush.bf16.msra.mxu0 %v1790
    %1800 = vmatmul.bf16.gmra.mxu0 %v192
    %v1801 = vpop.f32.mrf.mxu0
    %v1802 = vadd.f32 0.0, %v1801
    %v1803 = vpop.f32.mrf.mxu0
    %v1804 = vadd.f32 0.0, %v1803
    %1805 = vmatmul.bf16.gmra.mxu0 %v195
    %v1806 = vpop.f32.mrf.mxu0
    %v1807 = vadd.f32 0.0, %v1806
    %v1808 = vpop.f32.mrf.mxu0
    %v1809 = vadd.f32 0.0, %v1808
    %1810 = vmatmul.bf16.gmra.mxu0 %v198
    %v1811 = vpop.f32.mrf.mxu0
    %v1812 = vadd.f32 0.0, %v1811
    %v1813 = vpop.f32.mrf.mxu0
    %v1814 = vadd.f32 0.0, %v1813
    %1815 = vmatmul.bf16.gmra.mxu0 %v201
    %v1816 = vpop.f32.mrf.mxu0
    %v1817 = vadd.f32 0.0, %v1816
    %v1818 = vpop.f32.mrf.mxu0
    %v1819 = vadd.f32 0.0, %v1818
    %1820 = vmatmul.bf16.gmra.mxu0 %v204
    %v1821 = vpop.f32.mrf.mxu0
    %v1822 = vadd.f32 0.0, %v1821
    %v1823 = vpop.f32.mrf.mxu0
    %v1824 = vadd.f32 0.0, %v1823
    %1825 = vmatmul.bf16.gmra.mxu0 %v207
    %v1826 = vpop.f32.mrf.mxu0
    %v1827 = vadd.f32 0.0, %v1826
    %v1828 = vpop.f32.mrf.mxu0
    %v1829 = vadd.f32 0.0, %v1828
    %1830 = vmatmul.bf16.gmra.mxu0 %v210
    %v1831 = vpop.f32.mrf.mxu0
    %v1832 = vadd.f32 0.0, %v1831
    %v1833 = vpop.f32.mrf.mxu0
    %v1834 = vadd.f32 0.0, %v1833
    %1835 = vmatmul.bf16.gmra.mxu0 %v213
    %v1836 = vpop.f32.mrf.mxu0
    %v1837 = vadd.f32 0.0, %v1836
    %v1838 = vpop.f32.mrf.mxu0
    %v1839 = vadd.f32 0.0, %v1838
    %1840 = vmatmul.bf16.gmra.mxu0 %v216
    %v1841 = vpop.f32.mrf.mxu0
    %v1842 = vadd.f32 0.0, %v1841
    %v1843 = vpop.f32.mrf.mxu0
    %v1844 = vadd.f32 0.0, %v1843
    %1845 = vmatmul.bf16.gmra.mxu0 %v219
    %v1846 = vpop.f32.mrf.mxu0
    %v1847 = vadd.f32 0.0, %v1846
    %v1848 = vpop.f32.mrf.mxu0
    %v1849 = vadd.f32 0.0, %v1848
    %1850 = vmatmul.bf16.gmra.mxu0 %v222
    %v1851 = vpop.f32.mrf.mxu0
    %v1852 = vadd.f32 0.0, %v1851
    %v1853 = vpop.f32.mrf.mxu0
    %v1854 = vadd.f32 0.0, %v1853
    %1855 = vmatmul.bf16.gmra.mxu0 %v225
    %v1856 = vpop.f32.mrf.mxu0
    %v1857 = vadd.f32 0.0, %v1856
    %v1858 = vpop.f32.mrf.mxu0
    %v1859 = vadd.f32 0.0, %v1858
    %1860 = vmatmul.bf16.gmra.mxu0 %v228
    %v1861 = vpop.f32.mrf.mxu0
    %v1862 = vadd.f32 0.0, %v1861
    %v1863 = vpop.f32.mrf.mxu0
    %v1864 = vadd.f32 0.0, %v1863
    %1865 = vmatmul.bf16.gmra.mxu0 %v231
    %v1866 = vpop.f32.mrf.mxu0
    %v1867 = vadd.f32 0.0, %v1866
    %v1868 = vpop.f32.mrf.mxu0
    %v1869 = vadd.f32 0.0, %v1868
    %1870 = vmatmul.bf16.gmra.mxu0 %v234
    %v1871 = vpop.f32.mrf.mxu0
    %v1872 = vadd.f32 0.0, %v1871
    %v1873 = vpop.f32.mrf.mxu0
    %v1874 = vadd.f32 0.0, %v1873
    %1875 = vmatmul.bf16.gmra.mxu0 %v237
    %v1876 = vpop.f32.mrf.mxu0
    %v1877 = vadd.f32 0.0, %v1876
    %v1878 = vpop.f32.mrf.mxu0
    %v1879 = vadd.f32 0.0, %v1878
    %1880 = vmatmul.bf16.gmra.mxu0 %v240
    %v1881 = vpop.f32.mrf.mxu0
    %v1882 = vadd.f32 0.0, %v1881
    %v1883 = vpop.f32.mrf.mxu0
    %v1884 = vadd.f32 0.0, %v1883
    %1885 = vdwg.mxu0
    %s1886 = scalar_lea.vmem %s17, 816
    %v1887 = vld [vmem:[%s1886] sm:$0xff]
    %v1888 = vld [vmem:[%s1886 + $0x8] sm:$0xf]
    %v1889 = vld [vmem:[%s1886 + $0xc] sm:$0xff]
    %v1890 = vld [vmem:[%s1886 + $0x14] sm:$0xf]
    %v1891 = vld [vmem:[%s1886 + $0x18] sm:$0xff]
    %v1892 = vld [vmem:[%s1886 + $0x20] sm:$0xf]
    %v1893 = vld [vmem:[%s1886 + $0x24] sm:$0xff]
    %v1894 = vld [vmem:[%s1886 + $0x2c] sm:$0xf]
    %v1895 = vld [vmem:[%s1886 + $0x30] sm:$0xff]
    %v1896 = vld [vmem:[%s1886 + $0x38] sm:$0xf]
    %v1897 = vld [vmem:[%s1886 + $0x3c] sm:$0xff]
    %v1898 = vld [vmem:[%s1886 + $0x44] sm:$0xf]
    %v1899 = vld [vmem:[%s1886 + $0x48] sm:$0xff]
    %v1900 = vld [vmem:[%s1886 + $0x50] sm:$0xf]
    %v1901 = vld [vmem:[%s1886 + $0x54] sm:$0xff]
    %v1902 = vld [vmem:[%s1886 + $0x5c] sm:$0xf]
    %v1903 = vld [vmem:[%s1886 + $0x60] sm:$0xff]
    %v1904 = vld [vmem:[%s1886 + $0x68] sm:$0xf]
    %v1905 = vld [vmem:[%s1886 + $0x6c] sm:$0xff]
    %v1906 = vld [vmem:[%s1886 + $0x74] sm:$0xf]
    %v1907 = vld [vmem:[%s1886 + $0x78] sm:$0xff]
    %v1908 = vld [vmem:[%s1886 + $0x80] sm:$0xf]
    %v1909 = vld [vmem:[%s1886 + $0x84] sm:$0xff]
    %v1910 = vld [vmem:[%s1886 + $0x8c] sm:$0xf]
    %v1911 = vld [vmem:[%s1886 + $0x90] sm:$0xff]
    %v1912 = vld [vmem:[%s1886 + $0x98] sm:$0xf]
    %v1913 = vld [vmem:[%s1886 + $0x9c] sm:$0xff]
    %v1914 = vld [vmem:[%s1886 + $0xa4] sm:$0xf]
    %v1915 = vld [vmem:[%s1886 + $0xa8] sm:$0xff]
    %v1916 = vld [vmem:[%s1886 + $0xb0] sm:$0xf]
    %v1917 = vld [vmem:[%s1886 + $0xb4] sm:$0xff]
    %v1918 = vld [vmem:[%s1886 + $0xbc] sm:$0xf]
    %v1919 = vld [vmem:[%s1886 + $0xc0] sm:$0xff]
    %v1920 = vld [vmem:[%s1886 + $0xc8] sm:$0xf]
    %v1921 = vld [vmem:[%s1886 + $0xcc] sm:$0xff]
    %v1922 = vld [vmem:[%s1886 + $0xd4] sm:$0xf]
    %v1923 = vld [vmem:[%s1886 + $0xd8] sm:$0xff]
    %v1924 = vld [vmem:[%s1886 + $0xe0] sm:$0xf]
    %v1925 = vld [vmem:[%s1886 + $0xe4] sm:$0xff]
    %v1926 = vld [vmem:[%s1886 + $0xec] sm:$0xf]
    %v1927 = vld [vmem:[%s1886 + $0xf0] sm:$0xff]
    %v1928 = vld [vmem:[%s1886 + $0xf8] sm:$0xf]
    %v1929 = vld [vmem:[%s1886 + $0xfc] sm:$0xff]
    %v1930 = vld [vmem:[%s1886 + $0x104] sm:$0xf]
    %v1931 = vld [vmem:[%s1886 + $0x108] sm:$0xff]
    %v1932 = vld [vmem:[%s1886 + $0x110] sm:$0xf]
    %v1933 = vld [vmem:[%s1886 + $0x114] sm:$0xff]
    %v1934 = vld [vmem:[%s1886 + $0x11c] sm:$0xf]
    %v1935 = vld [vmem:[%s1886 + $0x120] sm:$0xff]
    %v1936 = vld [vmem:[%s1886 + $0x128] sm:$0xf]
    %v1937 = vld [vmem:[%s1886 + $0x12c] sm:$0xff]
    %v1938 = vld [vmem:[%s1886 + $0x134] sm:$0xf]
    %v1939 = vld [vmem:[%s1886 + $0x138] sm:$0xff]
    %v1940 = vld [vmem:[%s1886 + $0x140] sm:$0xf]
    %v1941 = vld [vmem:[%s1886 + $0x144] sm:$0xff]
    %v1942 = vld [vmem:[%s1886 + $0x14c] sm:$0xf]
    %v1943 = vld [vmem:[%s1886 + $0x150] sm:$0xff]
    %v1944 = vld [vmem:[%s1886 + $0x158] sm:$0xf]
    %v1945 = vld [vmem:[%s1886 + $0x15c] sm:$0xff]
    %v1946 = vld [vmem:[%s1886 + $0x164] sm:$0xf]
    %v1947 = vld [vmem:[%s1886 + $0x168] sm:$0xff]
    %v1948 = vld [vmem:[%s1886 + $0x170] sm:$0xf]
    %v1949 = vld [vmem:[%s1886 + $0x174] sm:$0xff]
    %v1950 = vld [vmem:[%s1886 + $0x17c] sm:$0xf]
    %v1951 = vld [vmem:[%s1886 + $0x180] sm:$0xff]
    %v1952 = vld [vmem:[%s1886 + $0x188] sm:$0xf]
    %v1953 = vld [vmem:[%s1886 + $0x18c] sm:$0xff]
    %v1954 = vld [vmem:[%s1886 + $0x194] sm:$0xf]
    %v1955 = vpack.c.bf16 %v1804, %v1802
    %v1956 = vpack.c.bf16 %v1809, %v1807
    %v1957 = vpack.c.bf16 %v1814, %v1812
    %v1958 = vpack.c.bf16 %v1819, %v1817
    %v1959 = vpack.c.bf16 %v1824, %v1822
    %v1960 = vpack.c.bf16 %v1829, %v1827
    %v1961 = vpack.c.bf16 %v1834, %v1832
    %v1962 = vpack.c.bf16 %v1839, %v1837
    %v1963 = vpack.c.bf16 %v1844, %v1842
    %v1964 = vpack.c.bf16 %v1849, %v1847
    %v1965 = vpack.c.bf16 %v1854, %v1852
    %v1966 = vpack.c.bf16 %v1859, %v1857
    %v1967 = vpack.c.bf16 %v1864, %v1862
    %v1968 = vpack.c.bf16 %v1869, %v1867
    %v1969 = vpack.c.bf16 %v1874, %v1872
    %v1970 = vpack.c.bf16 %v1879, %v1877
    %v1971 = vpack.c.bf16 %v1884, %v1882
    %v2040 = vunpack.c.l.b16 %v1887
    %v2041 = vunpack.c.h.b16 %v1887
    %v2042 = vunpack.c.l.b16 %v1888
    %v2043 = vunpack.c.l.b16 %v1889
    %v2044 = vunpack.c.h.b16 %v1889
    %v2045 = vunpack.c.l.b16 %v1890
    %v2046 = vunpack.c.l.b16 %v1891
    %v2047 = vunpack.c.h.b16 %v1891
    %v2048 = vunpack.c.l.b16 %v1892
    %v2049 = vunpack.c.l.b16 %v1893
    %v2050 = vunpack.c.h.b16 %v1893
    %v2051 = vunpack.c.l.b16 %v1894
    %v2052 = vunpack.c.l.b16 %v1895
    %v2053 = vunpack.c.h.b16 %v1895
    %v2054 = vunpack.c.l.b16 %v1896
    %v2055 = vunpack.c.l.b16 %v1897
    %v2056 = vunpack.c.h.b16 %v1897
    %v2057 = vunpack.c.l.b16 %v1898
    %v2058 = vunpack.c.l.b16 %v1899
    %v2059 = vunpack.c.h.b16 %v1899
    %v2060 = vunpack.c.l.b16 %v1900
    %v2061 = vunpack.c.l.b16 %v1901
    %v2062 = vunpack.c.h.b16 %v1901
    %v2063 = vunpack.c.l.b16 %v1902
    %v2064 = vunpack.c.l.b16 %v1903
    %v2065 = vunpack.c.h.b16 %v1903
    %v2066 = vunpack.c.l.b16 %v1904
    %v2067 = vunpack.c.l.b16 %v1905
    %v2068 = vunpack.c.h.b16 %v1905
    %v2069 = vunpack.c.l.b16 %v1906
    %v2070 = vunpack.c.l.b16 %v1907
    %v2071 = vunpack.c.h.b16 %v1907
    %v2072 = vunpack.c.l.b16 %v1908
    %v2073 = vunpack.c.l.b16 %v1909
    %v2074 = vunpack.c.h.b16 %v1909
    %v2075 = vunpack.c.l.b16 %v1910
    %v2076 = vunpack.c.l.b16 %v1911
    %v2077 = vunpack.c.h.b16 %v1911
    %v2078 = vunpack.c.l.b16 %v1912
    %v2079 = vunpack.c.l.b16 %v1913
    %v2080 = vunpack.c.h.b16 %v1913
    %v2081 = vunpack.c.l.b16 %v1914
    %v2082 = vunpack.c.l.b16 %v1915
    %v2083 = vunpack.c.h.b16 %v1915
    %v2084 = vunpack.c.l.b16 %v1916
    %v2085 = vunpack.c.l.b16 %v1917
    %v2086 = vunpack.c.h.b16 %v1917
    %v2087 = vunpack.c.l.b16 %v1918
    %v2088 = vunpack.c.l.b16 %v1919
    %v2089 = vunpack.c.h.b16 %v1919
    %v2090 = vunpack.c.l.b16 %v1920
    %v2091 = vunpack.c.l.b16 %v1921
    %v2092 = vunpack.c.h.b16 %v1921
    %v2093 = vunpack.c.l.b16 %v1922
    %v2094 = vunpack.c.l.b16 %v1923
    %v2095 = vunpack.c.h.b16 %v1923
    %v2096 = vunpack.c.l.b16 %v1924
    %v2097 = vunpack.c.l.b16 %v1925
    %v2098 = vunpack.c.h.b16 %v1925
    %v2099 = vunpack.c.l.b16 %v1926
    %v2100 = vunpack.c.l.b16 %v1927
    %v2101 = vunpack.c.h.b16 %v1927
    %v2102 = vunpack.c.l.b16 %v1928
    %v2103 = vunpack.c.l.b16 %v1929
    %v2104 = vunpack.c.h.b16 %v1929
    %v2105 = vunpack.c.l.b16 %v1930
    %v2106 = vunpack.c.l.b16 %v1931
    %v2107 = vunpack.c.h.b16 %v1931
    %v2108 = vunpack.c.l.b16 %v1932
    %v2109 = vunpack.c.l.b16 %v1933
    %v2110 = vunpack.c.h.b16 %v1933
    %v2111 = vunpack.c.l.b16 %v1934
    %v2112 = vunpack.c.l.b16 %v1935
    %v2113 = vunpack.c.h.b16 %v1935
    %v2114 = vunpack.c.l.b16 %v1936
    %v2115 = vunpack.c.l.b16 %v1937
    %v2116 = vunpack.c.h.b16 %v1937
    %v2117 = vunpack.c.l.b16 %v1938
    %v2118 = vunpack.c.l.b16 %v1939
    %v2119 = vunpack.c.h.b16 %v1939
    %v2120 = vunpack.c.l.b16 %v1940
    %v2121 = vunpack.c.l.b16 %v1941
    %v2122 = vunpack.c.h.b16 %v1941
    %v2123 = vunpack.c.l.b16 %v1942
    %v2124 = vunpack.c.l.b16 %v1943
    %v2125 = vunpack.c.h.b16 %v1943
    %v2126 = vunpack.c.l.b16 %v1944
    %v2127 = vunpack.c.l.b16 %v1945
    %v2128 = vunpack.c.h.b16 %v1945
    %v2129 = vunpack.c.l.b16 %v1946
    %v2130 = vunpack.c.l.b16 %v1947
    %v2131 = vunpack.c.h.b16 %v1947
    %v2132 = vunpack.c.l.b16 %v1948
    %v2133 = vunpack.c.l.b16 %v1949
    %v2134 = vunpack.c.h.b16 %v1949
    %v2135 = vunpack.c.l.b16 %v1950
    %v2136 = vunpack.c.l.b16 %v1951
    %v2137 = vunpack.c.h.b16 %v1951
    %v2138 = vunpack.c.l.b16 %v1952
    %v2139 = vunpack.c.l.b16 %v1953
    %v2140 = vunpack.c.h.b16 %v1953
    %v2141 = vunpack.c.l.b16 %v1954
    %v2142 = vpack.c.b16 %v2043, %v2040
    %v2143 = vpack.c.b16 %v2044, %v2041
    %v2144 = vpack.c.b16 %v2045, %v2042
    %v2145 = vpack.c.b16 %v2049, %v2046
    %v2146 = vpack.c.b16 %v2050, %v2047
    %v2147 = vpack.c.b16 %v2051, %v2048
    %v2148 = vpack.c.b16 %v2055, %v2052
    %v2149 = vpack.c.b16 %v2056, %v2053
    %v2150 = vpack.c.b16 %v2057, %v2054
    %v2151 = vpack.c.b16 %v2061, %v2058
    %v2152 = vpack.c.b16 %v2062, %v2059
    %v2153 = vpack.c.b16 %v2063, %v2060
    %v2154 = vpack.c.b16 %v2067, %v2064
    %v2155 = vpack.c.b16 %v2068, %v2065
    %v2156 = vpack.c.b16 %v2069, %v2066
    %v2157 = vpack.c.b16 %v2073, %v2070
    %v2158 = vpack.c.b16 %v2074, %v2071
    %v2159 = vpack.c.b16 %v2075, %v2072
    %v2160 = vpack.c.b16 %v2079, %v2076
    %v2161 = vpack.c.b16 %v2080, %v2077
    %v2162 = vpack.c.b16 %v2081, %v2078
    %v2163 = vpack.c.b16 %v2085, %v2082
    %v2164 = vpack.c.b16 %v2086, %v2083
    %v2165 = vpack.c.b16 %v2087, %v2084
    %v2166 = vpack.c.b16 %v2091, %v2088
    %v2167 = vpack.c.b16 %v2092, %v2089
    %v2168 = vpack.c.b16 %v2093, %v2090
    %v2169 = vpack.c.b16 %v2097, %v2094
    %v2170 = vpack.c.b16 %v2098, %v2095
    %v2171 = vpack.c.b16 %v2099, %v2096
    %v2172 = vpack.c.b16 %v2103, %v2100
    %v2173 = vpack.c.b16 %v2104, %v2101
    %v2174 = vpack.c.b16 %v2105, %v2102
    %v2175 = vpack.c.b16 %v2109, %v2106
    %v2176 = vpack.c.b16 %v2110, %v2107
    %v2177 = vpack.c.b16 %v2111, %v2108
    %v2178 = vpack.c.b16 %v2115, %v2112
    %v2179 = vpack.c.b16 %v2116, %v2113
    %v2180 = vpack.c.b16 %v2117, %v2114
    %v2181 = vpack.c.b16 %v2121, %v2118
    %v2182 = vpack.c.b16 %v2122, %v2119
    %v2183 = vpack.c.b16 %v2123, %v2120
    %v2184 = vpack.c.b16 %v2127, %v2124
    %v2185 = vpack.c.b16 %v2128, %v2125
    %v2186 = vpack.c.b16 %v2129, %v2126
    %v2187 = vpack.c.b16 %v2133, %v2130
    %v2188 = vpack.c.b16 %v2134, %v2131
    %v2189 = vpack.c.b16 %v2135, %v2132
    %v2190 = vpack.c.b16 %v2139, %v2136
    %v2191 = vpack.c.b16 %v2140, %v2137
    %v2192 = vpack.c.b16 %v2141, %v2138
    %v2228 = vsel %vm865, %v2144, 0
    %v2231 = vsel %vm865, %v2147, 0
    %v2234 = vsel %vm865, %v2150, 0
    %v2237 = vsel %vm865, %v2153, 0
    %v2240 = vsel %vm865, %v2156, 0
    %v2243 = vsel %vm865, %v2159, 0
    %v2246 = vsel %vm865, %v2162, 0
    %v2249 = vsel %vm865, %v2165, 0
    %v2252 = vsel %vm865, %v2168, 0
    %v2255 = vsel %vm865, %v2171, 0
    %v2258 = vsel %vm865, %v2174, 0
    %v2261 = vsel %vm865, %v2177, 0
    %v2264 = vsel %vm865, %v2180, 0
    %v2267 = vsel %vm865, %v2183, 0
    %v2270 = vsel %vm865, %v2186, 0
    %v2273 = vsel %vm865, %v2189, 0
    %v2276 = vsel %vm865, %v2192, 0
    %2278 = vmatpush.bf16.msra.mxu0 %v1962
    %2279 = vmatpush.bf16.msra.mxu0 %v1961
    %2280 = vmatpush.bf16.msra.mxu0 %v1960
    %2281 = vmatpush.bf16.msra.mxu0 %v1959
    %2282 = vmatpush.bf16.msra.mxu0 %v1958
    %2283 = vmatpush.bf16.msra.mxu0 %v1957
    %2284 = vmatpush.bf16.msra.mxu0 %v1956
    %2285 = vmatpush.bf16.msra.mxu0 %v1955
    %2286 = vmatmul.bf16.gmra.mxu0 %v2142
    %v2287 = vpop.f32.mrf.mxu0
    %v2288 = vadd.f32 0.0, %v2287
    %v2289 = vpop.f32.mrf.mxu0
    %v2290 = vadd.f32 0.0, %v2289
    %2291 = vmatmul.bf16.gmra.mxu0 %v2145
    %v2292 = vpop.f32.mrf.mxu0
    %v2293 = vadd.f32 0.0, %v2292
    %v2294 = vpop.f32.mrf.mxu0
    %v2295 = vadd.f32 0.0, %v2294
    %2296 = vmatmul.bf16.gmra.mxu0 %v2148
    %v2297 = vpop.f32.mrf.mxu0
    %v2298 = vadd.f32 0.0, %v2297
    %v2299 = vpop.f32.mrf.mxu0
    %v2300 = vadd.f32 0.0, %v2299
    %2301 = vmatmul.bf16.gmra.mxu0 %v2151
    %v2302 = vpop.f32.mrf.mxu0
    %v2303 = vadd.f32 0.0, %v2302
    %v2304 = vpop.f32.mrf.mxu0
    %v2305 = vadd.f32 0.0, %v2304
    %2306 = vmatmul.bf16.gmra.mxu0 %v2154
    %v2307 = vpop.f32.mrf.mxu0
    %v2308 = vadd.f32 0.0, %v2307
    %v2309 = vpop.f32.mrf.mxu0
    %v2310 = vadd.f32 0.0, %v2309
    %2311 = vmatmul.bf16.gmra.mxu0 %v2157
    %v2312 = vpop.f32.mrf.mxu0
    %v2313 = vadd.f32 0.0, %v2312
    %v2314 = vpop.f32.mrf.mxu0
    %v2315 = vadd.f32 0.0, %v2314
    %2316 = vmatmul.bf16.gmra.mxu0 %v2160
    %v2317 = vpop.f32.mrf.mxu0
    %v2318 = vadd.f32 0.0, %v2317
    %v2319 = vpop.f32.mrf.mxu0
    %v2320 = vadd.f32 0.0, %v2319
    %2321 = vmatmul.bf16.gmra.mxu0 %v2163
    %v2322 = vpop.f32.mrf.mxu0
    %v2323 = vadd.f32 0.0, %v2322
    %v2324 = vpop.f32.mrf.mxu0
    %v2325 = vadd.f32 0.0, %v2324
    %2326 = vmatmul.bf16.gmra.mxu0 %v2166
    %v2327 = vpop.f32.mrf.mxu0
    %v2328 = vadd.f32 0.0, %v2327
    %v2329 = vpop.f32.mrf.mxu0
    %v2330 = vadd.f32 0.0, %v2329
    %2331 = vmatmul.bf16.gmra.mxu0 %v2169
    %v2332 = vpop.f32.mrf.mxu0
    %v2333 = vadd.f32 0.0, %v2332
    %v2334 = vpop.f32.mrf.mxu0
    %v2335 = vadd.f32 0.0, %v2334
    %2336 = vmatmul.bf16.gmra.mxu0 %v2172
    %v2337 = vpop.f32.mrf.mxu0
    %v2338 = vadd.f32 0.0, %v2337
    %v2339 = vpop.f32.mrf.mxu0
    %v2340 = vadd.f32 0.0, %v2339
    %2341 = vmatmul.bf16.gmra.mxu0 %v2175
    %v2342 = vpop.f32.mrf.mxu0
    %v2343 = vadd.f32 0.0, %v2342
    %v2344 = vpop.f32.mrf.mxu0
    %v2345 = vadd.f32 0.0, %v2344
    %2346 = vmatmul.bf16.gmra.mxu0 %v2178
    %v2347 = vpop.f32.mrf.mxu0
    %v2348 = vadd.f32 0.0, %v2347
    %v2349 = vpop.f32.mrf.mxu0
    %v2350 = vadd.f32 0.0, %v2349
    %2351 = vmatmul.bf16.gmra.mxu0 %v2181
    %v2352 = vpop.f32.mrf.mxu0
    %v2353 = vadd.f32 0.0, %v2352
    %v2354 = vpop.f32.mrf.mxu0
    %v2355 = vadd.f32 0.0, %v2354
    %2356 = vmatmul.bf16.gmra.mxu0 %v2184
    %v2357 = vpop.f32.mrf.mxu0
    %v2358 = vadd.f32 0.0, %v2357
    %v2359 = vpop.f32.mrf.mxu0
    %v2360 = vadd.f32 0.0, %v2359
    %2361 = vmatmul.bf16.gmra.mxu0 %v2187
    %v2362 = vpop.f32.mrf.mxu0
    %v2363 = vadd.f32 0.0, %v2362
    %v2364 = vpop.f32.mrf.mxu0
    %v2365 = vadd.f32 0.0, %v2364
    %2366 = vmatmul.bf16.gmra.mxu0 %v2190
    %v2367 = vpop.f32.mrf.mxu0
    %v2368 = vadd.f32 0.0, %v2367
    %v2369 = vpop.f32.mrf.mxu0
    %v2370 = vadd.f32 0.0, %v2369
    %2371 = vdwg.mxu0
    %2372 = vmatpush.bf16.msra.mxu0 %v1970
    %2373 = vmatpush.bf16.msra.mxu0 %v1969
    %2374 = vmatpush.bf16.msra.mxu0 %v1968
    %2375 = vmatpush.bf16.msra.mxu0 %v1967
    %2376 = vmatpush.bf16.msra.mxu0 %v1966
    %2377 = vmatpush.bf16.msra.mxu0 %v1965
    %2378 = vmatpush.bf16.msra.mxu0 %v1964
    %2379 = vmatpush.bf16.msra.mxu0 %v1963
    %2380 = vmatmul.bf16.gmra.mxu0 %v2143
    %v2381 = vpop.f32.mrf.mxu0
    %v2382 = vadd.f32 %v2288, %v2381
    %v2383 = vpop.f32.mrf.mxu0
    %v2384 = vadd.f32 %v2290, %v2383
    %2385 = vmatmul.bf16.gmra.mxu0 %v2146
    %v2386 = vpop.f32.mrf.mxu0
    %v2387 = vadd.f32 %v2293, %v2386
    %v2388 = vpop.f32.mrf.mxu0
    %v2389 = vadd.f32 %v2295, %v2388
    %2390 = vmatmul.bf16.gmra.mxu0 %v2149
    %v2391 = vpop.f32.mrf.mxu0
    %v2392 = vadd.f32 %v2298, %v2391
    %v2393 = vpop.f32.mrf.mxu0
    %v2394 = vadd.f32 %v2300, %v2393
    %2395 = vmatmul.bf16.gmra.mxu0 %v2152
    %v2396 = vpop.f32.mrf.mxu0
    %v2397 = vadd.f32 %v2303, %v2396
    %v2398 = vpop.f32.mrf.mxu0
    %v2399 = vadd.f32 %v2305, %v2398
    %2400 = vmatmul.bf16.gmra.mxu0 %v2155
    %v2401 = vpop.f32.mrf.mxu0
    %v2402 = vadd.f32 %v2308, %v2401
    %v2403 = vpop.f32.mrf.mxu0
    %v2404 = vadd.f32 %v2310, %v2403
    %2405 = vmatmul.bf16.gmra.mxu0 %v2158
    %v2406 = vpop.f32.mrf.mxu0
    %v2407 = vadd.f32 %v2313, %v2406
    %v2408 = vpop.f32.mrf.mxu0
    %v2409 = vadd.f32 %v2315, %v2408
    %2410 = vmatmul.bf16.gmra.mxu0 %v2161
    %v2411 = vpop.f32.mrf.mxu0
    %v2412 = vadd.f32 %v2318, %v2411
    %v2413 = vpop.f32.mrf.mxu0
    %v2414 = vadd.f32 %v2320, %v2413
    %2415 = vmatmul.bf16.gmra.mxu0 %v2164
    %v2416 = vpop.f32.mrf.mxu0
    %v2417 = vadd.f32 %v2323, %v2416
    %v2418 = vpop.f32.mrf.mxu0
    %v2419 = vadd.f32 %v2325, %v2418
    %2420 = vmatmul.bf16.gmra.mxu0 %v2167
    %v2421 = vpop.f32.mrf.mxu0
    %v2422 = vadd.f32 %v2328, %v2421
    %v2423 = vpop.f32.mrf.mxu0
    %v2424 = vadd.f32 %v2330, %v2423
    %2425 = vmatmul.bf16.gmra.mxu0 %v2170
    %v2426 = vpop.f32.mrf.mxu0
    %v2427 = vadd.f32 %v2333, %v2426
    %v2428 = vpop.f32.mrf.mxu0
    %v2429 = vadd.f32 %v2335, %v2428
    %2430 = vmatmul.bf16.gmra.mxu0 %v2173
    %v2431 = vpop.f32.mrf.mxu0
    %v2432 = vadd.f32 %v2338, %v2431
    %v2433 = vpop.f32.mrf.mxu0
    %v2434 = vadd.f32 %v2340, %v2433
    %2435 = vmatmul.bf16.gmra.mxu0 %v2176
    %v2436 = vpop.f32.mrf.mxu0
    %v2437 = vadd.f32 %v2343, %v2436
    %v2438 = vpop.f32.mrf.mxu0
    %v2439 = vadd.f32 %v2345, %v2438
    %2440 = vmatmul.bf16.gmra.mxu0 %v2179
    %v2441 = vpop.f32.mrf.mxu0
    %v2442 = vadd.f32 %v2348, %v2441
    %v2443 = vpop.f32.mrf.mxu0
    %v2444 = vadd.f32 %v2350, %v2443
    %2445 = vmatmul.bf16.gmra.mxu0 %v2182
    %v2446 = vpop.f32.mrf.mxu0
    %v2447 = vadd.f32 %v2353, %v2446
    %v2448 = vpop.f32.mrf.mxu0
    %v2449 = vadd.f32 %v2355, %v2448
    %2450 = vmatmul.bf16.gmra.mxu0 %v2185
    %v2451 = vpop.f32.mrf.mxu0
    %v2452 = vadd.f32 %v2358, %v2451
    %v2453 = vpop.f32.mrf.mxu0
    %v2454 = vadd.f32 %v2360, %v2453
    %2455 = vmatmul.bf16.gmra.mxu0 %v2188
    %v2456 = vpop.f32.mrf.mxu0
    %v2457 = vadd.f32 %v2363, %v2456
    %v2458 = vpop.f32.mrf.mxu0
    %v2459 = vadd.f32 %v2365, %v2458
    %2460 = vmatmul.bf16.gmra.mxu0 %v2191
    %v2461 = vpop.f32.mrf.mxu0
    %v2462 = vadd.f32 %v2368, %v2461
    %v2463 = vpop.f32.mrf.mxu0
    %v2464 = vadd.f32 %v2370, %v2463
    %2465 = vdwg.mxu0
    %2466 = vmatpush.bf16.msra.mxu0 0
    %2467 = vmatpush.bf16.msra.mxu0 0
    %2468 = vmatpush.bf16.msra.mxu0 0
    %2469 = vmatpush.bf16.msra.mxu0 0
    %2470 = vmatpush.bf16.msra.mxu0 0
    %2471 = vmatpush.bf16.msra.mxu0 0
    %2472 = vmatpush.bf16.msra.mxu0 0
    %2473 = vmatpush.bf16.msra.mxu0 %v1971
    %2474 = vmatmul.bf16.gmra.mxu0 %v2228
    %v2475 = vpop.f32.mrf.mxu0
    %v2476 = vadd.f32 %v2382, %v2475
    %v2477 = vpop.f32.mrf.mxu0
    %v2478 = vadd.f32 %v2384, %v2477
    %2479 = vmatmul.bf16.gmra.mxu0 %v2231
    %v2480 = vpop.f32.mrf.mxu0
    %v2481 = vadd.f32 %v2387, %v2480
    %v2482 = vpop.f32.mrf.mxu0
    %v2483 = vadd.f32 %v2389, %v2482
    %2484 = vmatmul.bf16.gmra.mxu0 %v2234
    %v2485 = vpop.f32.mrf.mxu0
    %v2486 = vadd.f32 %v2392, %v2485
    %v2487 = vpop.f32.mrf.mxu0
    %v2488 = vadd.f32 %v2394, %v2487
    %2489 = vmatmul.bf16.gmra.mxu0 %v2237
    %v2490 = vpop.f32.mrf.mxu0
    %v2491 = vadd.f32 %v2397, %v2490
    %v2492 = vpop.f32.mrf.mxu0
    %v2493 = vadd.f32 %v2399, %v2492
    %2494 = vmatmul.bf16.gmra.mxu0 %v2240
    %v2495 = vpop.f32.mrf.mxu0
    %v2496 = vadd.f32 %v2402, %v2495
    %v2497 = vpop.f32.mrf.mxu0
    %v2498 = vadd.f32 %v2404, %v2497
    %2499 = vmatmul.bf16.gmra.mxu0 %v2243
    %v2500 = vpop.f32.mrf.mxu0
    %v2501 = vadd.f32 %v2407, %v2500
    %v2502 = vpop.f32.mrf.mxu0
    %v2503 = vadd.f32 %v2409, %v2502
    %2504 = vmatmul.bf16.gmra.mxu0 %v2246
    %v2505 = vpop.f32.mrf.mxu0
    %v2506 = vadd.f32 %v2412, %v2505
    %v2507 = vpop.f32.mrf.mxu0
    %v2508 = vadd.f32 %v2414, %v2507
    %2509 = vmatmul.bf16.gmra.mxu0 %v2249
    %v2510 = vpop.f32.mrf.mxu0
    %v2511 = vadd.f32 %v2417, %v2510
    %v2512 = vpop.f32.mrf.mxu0
    %v2513 = vadd.f32 %v2419, %v2512
    %2514 = vmatmul.bf16.gmra.mxu0 %v2252
    %v2515 = vpop.f32.mrf.mxu0
    %v2516 = vadd.f32 %v2422, %v2515
    %v2517 = vpop.f32.mrf.mxu0
    %v2518 = vadd.f32 %v2424, %v2517
    %2519 = vmatmul.bf16.gmra.mxu0 %v2255
    %v2520 = vpop.f32.mrf.mxu0
    %v2521 = vadd.f32 %v2427, %v2520
    %v2522 = vpop.f32.mrf.mxu0
    %v2523 = vadd.f32 %v2429, %v2522
    %2524 = vmatmul.bf16.gmra.mxu0 %v2258
    %v2525 = vpop.f32.mrf.mxu0
    %v2526 = vadd.f32 %v2432, %v2525
    %v2527 = vpop.f32.mrf.mxu0
    %v2528 = vadd.f32 %v2434, %v2527
    %2529 = vmatmul.bf16.gmra.mxu0 %v2261
    %v2530 = vpop.f32.mrf.mxu0
    %v2531 = vadd.f32 %v2437, %v2530
    %v2532 = vpop.f32.mrf.mxu0
    %v2533 = vadd.f32 %v2439, %v2532
    %2534 = vmatmul.bf16.gmra.mxu0 %v2264
    %v2535 = vpop.f32.mrf.mxu0
    %v2536 = vadd.f32 %v2442, %v2535
    %v2537 = vpop.f32.mrf.mxu0
    %v2538 = vadd.f32 %v2444, %v2537
    %2539 = vmatmul.bf16.gmra.mxu0 %v2267
    %v2540 = vpop.f32.mrf.mxu0
    %v2541 = vadd.f32 %v2447, %v2540
    %v2542 = vpop.f32.mrf.mxu0
    %v2543 = vadd.f32 %v2449, %v2542
    %2544 = vmatmul.bf16.gmra.mxu0 %v2270
    %v2545 = vpop.f32.mrf.mxu0
    %v2546 = vadd.f32 %v2452, %v2545
    %v2547 = vpop.f32.mrf.mxu0
    %v2548 = vadd.f32 %v2454, %v2547
    %2549 = vmatmul.bf16.gmra.mxu0 %v2273
    %v2550 = vpop.f32.mrf.mxu0
    %v2551 = vadd.f32 %v2457, %v2550
    %v2552 = vpop.f32.mrf.mxu0
    %v2553 = vadd.f32 %v2459, %v2552
    %2554 = vmatmul.bf16.gmra.mxu0 %v2276
    %v2555 = vpop.f32.mrf.mxu0
    %v2556 = vadd.f32 %v2462, %v2555
    %v2557 = vpop.f32.mrf.mxu0
    %v2558 = vadd.f32 %v2464, %v2557
    %2559 = vdwg.mxu0
    %v2560 = vadd.f32 %v1703, %v2476
    %v2561 = vadd.f32 %v1705, %v2478
    %v2562 = vadd.f32 %v1708, %v2481
    %v2563 = vadd.f32 %v1710, %v2483
    %v2564 = vadd.f32 %v1713, %v2486
    %v2565 = vadd.f32 %v1715, %v2488
    %v2566 = vadd.f32 %v1718, %v2491
    %v2567 = vadd.f32 %v1720, %v2493
    %v2568 = vadd.f32 %v1723, %v2496
    %v2569 = vadd.f32 %v1725, %v2498
    %v2570 = vadd.f32 %v1728, %v2501
    %v2571 = vadd.f32 %v1730, %v2503
    %v2572 = vadd.f32 %v1733, %v2506
    %v2573 = vadd.f32 %v1735, %v2508
    %v2574 = vadd.f32 %v1738, %v2511
    %v2575 = vadd.f32 %v1740, %v2513
    %v2576 = vadd.f32 %v1743, %v2516
    %v2577 = vadd.f32 %v1745, %v2518
    %v2578 = vadd.f32 %v1748, %v2521
    %v2579 = vadd.f32 %v1750, %v2523
    %v2580 = vadd.f32 %v1753, %v2526
    %v2581 = vadd.f32 %v1755, %v2528
    %v2582 = vadd.f32 %v1758, %v2531
    %v2583 = vadd.f32 %v1760, %v2533
    %v2584 = vadd.f32 %v1763, %v2536
    %v2585 = vadd.f32 %v1765, %v2538
    %v2586 = vadd.f32 %v1768, %v2541
    %v2587 = vadd.f32 %v1770, %v2543
    %v2588 = vadd.f32 %v1773, %v2546
    %v2589 = vadd.f32 %v1775, %v2548
    %v2590 = vadd.f32 %v1778, %v2551
    %v2591 = vadd.f32 %v1780, %v2553
    %v2592 = vadd.f32 %v1783, %v2556
    %v2593 = vadd.f32 %v1785, %v2558
    %v2594 = vld [vmem:[%s25] sm:$0xff]
    %v2595 = vld [vmem:[%s25 + $0x8] sm:$0xff]
    %v2596 = vld [vmem:[%s25 + $0x10] sm:$0xff]
    %v2597 = vld [vmem:[%s25 + $0x18] sm:$0xff]
    %v2598 = vld [vmem:[%s25 + $0x20] sm:$0xff]
    %v2599 = vld [vmem:[%s25 + $0x28] sm:$0xff]
    %v2600 = vld [vmem:[%s25 + $0x30] sm:$0xff]
    %v2601 = vld [vmem:[%s25 + $0x38] sm:$0xff]
    %v2602 = vld [vmem:[%s25 + $0x40] sm:$0xff]
    %v2603 = vld [vmem:[%s25 + $0x48] sm:$0xff]
    %v2604 = vld [vmem:[%s25 + $0x50] sm:$0xff]
    %v2605 = vld [vmem:[%s25 + $0x58] sm:$0xff]
    %v2606 = vld [vmem:[%s25 + $0x60] sm:$0xff]
    %v2607 = vld [vmem:[%s25 + $0x68] sm:$0xff]
    %v2608 = vld [vmem:[%s25 + $0x70] sm:$0xff]
    %v2609 = vld [vmem:[%s25 + $0x78] sm:$0xff]
    %v2610 = vld [vmem:[%s25 + $0x80] sm:$0xff]
    %v2611 = vld [vmem:[%s25 + $0x88] sm:$0xff]
    %v2612 = vld [vmem:[%s25 + $0x90] sm:$0xff]
    %v2613 = vld [vmem:[%s25 + $0x98] sm:$0xff]
    %v2614 = vld [vmem:[%s25 + $0xa0] sm:$0xff]
    %v2615 = vld [vmem:[%s25 + $0xa8] sm:$0xff]
    %v2616 = vld [vmem:[%s25 + $0xb0] sm:$0xff]
    %v2617 = vld [vmem:[%s25 + $0xb8] sm:$0xff]
    %v2618 = vld [vmem:[%s25 + $0xc0] sm:$0xff]
    %v2619 = vld [vmem:[%s25 + $0xc8] sm:$0xff]
    %v2620 = vld [vmem:[%s25 + $0xd0] sm:$0xff]
    %v2621 = vld [vmem:[%s25 + $0xd8] sm:$0xff]
    %v2622 = vld [vmem:[%s25 + $0xe0] sm:$0xff]
    %v2623 = vld [vmem:[%s25 + $0xe8] sm:$0xff]
    %v2624 = vld [vmem:[%s25 + $0xf0] sm:$0xff]
    %v2625 = vld [vmem:[%s25 + $0xf8] sm:$0xff]
    %v2626 = vld [vmem:[%s25 + $0x100] sm:$0xff]
    %v2627 = vld [vmem:[%s25 + $0x108] sm:$0xff]
    %2629 = vset.pattern.permute.xlu0 0
    %2630 = vperm.xlu0 %2629, %v2594
    %v2631 = vpop.permute.xlu0 %2630
    %2634 = vset.pattern.permute.xlu0 0
    %2635 = vperm.xlu0 %2634, %v2595
    %v2636 = vpop.permute.xlu0 %2635
    %2639 = vset.pattern.permute.xlu0 0
    %2640 = vperm.xlu0 %2639, %v2596
    %v2641 = vpop.permute.xlu0 %2640
    %2644 = vset.pattern.permute.xlu0 0
    %2645 = vperm.xlu0 %2644, %v2597
    %v2646 = vpop.permute.xlu0 %2645
    %2649 = vset.pattern.permute.xlu0 0
    %2650 = vperm.xlu0 %2649, %v2598
    %v2651 = vpop.permute.xlu0 %2650
    %2654 = vset.pattern.permute.xlu0 0
    %2655 = vperm.xlu0 %2654, %v2599
    %v2656 = vpop.permute.xlu0 %2655
    %2659 = vset.pattern.permute.xlu0 0
    %2660 = vperm.xlu0 %2659, %v2600
    %v2661 = vpop.permute.xlu0 %2660
    %2664 = vset.pattern.permute.xlu0 0
    %2665 = vperm.xlu0 %2664, %v2601
    %v2666 = vpop.permute.xlu0 %2665
    %2669 = vset.pattern.permute.xlu0 0
    %2670 = vperm.xlu0 %2669, %v2602
    %v2671 = vpop.permute.xlu0 %2670
    %2674 = vset.pattern.permute.xlu0 0
    %2675 = vperm.xlu0 %2674, %v2603
    %v2676 = vpop.permute.xlu0 %2675
    %2679 = vset.pattern.permute.xlu0 0
    %2680 = vperm.xlu0 %2679, %v2604
    %v2681 = vpop.permute.xlu0 %2680
    %2684 = vset.pattern.permute.xlu0 0
    %2685 = vperm.xlu0 %2684, %v2605
    %v2686 = vpop.permute.xlu0 %2685
    %2689 = vset.pattern.permute.xlu0 0
    %2690 = vperm.xlu0 %2689, %v2606
    %v2691 = vpop.permute.xlu0 %2690
    %2694 = vset.pattern.permute.xlu0 0
    %2695 = vperm.xlu0 %2694, %v2607
    %v2696 = vpop.permute.xlu0 %2695
    %2699 = vset.pattern.permute.xlu0 0
    %2700 = vperm.xlu0 %2699, %v2608
    %v2701 = vpop.permute.xlu0 %2700
    %2704 = vset.pattern.permute.xlu0 0
    %2705 = vperm.xlu0 %2704, %v2609
    %v2706 = vpop.permute.xlu0 %2705
    %2709 = vset.pattern.permute.xlu0 0
    %2710 = vperm.xlu0 %2709, %v2610
    %v2711 = vpop.permute.xlu0 %2710
    %2714 = vset.pattern.permute.xlu0 0
    %2715 = vperm.xlu0 %2714, %v2611
    %v2716 = vpop.permute.xlu0 %2715
    %2719 = vset.pattern.permute.xlu0 0
    %2720 = vperm.xlu0 %2719, %v2612
    %v2721 = vpop.permute.xlu0 %2720
    %2724 = vset.pattern.permute.xlu0 0
    %2725 = vperm.xlu0 %2724, %v2613
    %v2726 = vpop.permute.xlu0 %2725
    %2729 = vset.pattern.permute.xlu0 0
    %2730 = vperm.xlu0 %2729, %v2614
    %v2731 = vpop.permute.xlu0 %2730
    %2734 = vset.pattern.permute.xlu0 0
    %2735 = vperm.xlu0 %2734, %v2615
    %v2736 = vpop.permute.xlu0 %2735
    %2739 = vset.pattern.permute.xlu0 0
    %2740 = vperm.xlu0 %2739, %v2616
    %v2741 = vpop.permute.xlu0 %2740
    %2744 = vset.pattern.permute.xlu0 0
    %2745 = vperm.xlu0 %2744, %v2617
    %v2746 = vpop.permute.xlu0 %2745
    %2749 = vset.pattern.permute.xlu0 0
    %2750 = vperm.xlu0 %2749, %v2618
    %v2751 = vpop.permute.xlu0 %2750
    %2754 = vset.pattern.permute.xlu0 0
    %2755 = vperm.xlu0 %2754, %v2619
    %v2756 = vpop.permute.xlu0 %2755
    %2759 = vset.pattern.permute.xlu0 0
    %2760 = vperm.xlu0 %2759, %v2620
    %v2761 = vpop.permute.xlu0 %2760
    %2764 = vset.pattern.permute.xlu0 0
    %2765 = vperm.xlu0 %2764, %v2621
    %v2766 = vpop.permute.xlu0 %2765
    %2769 = vset.pattern.permute.xlu0 0
    %2770 = vperm.xlu0 %2769, %v2622
    %v2771 = vpop.permute.xlu0 %2770
    %2774 = vset.pattern.permute.xlu0 0
    %2775 = vperm.xlu0 %2774, %v2623
    %v2776 = vpop.permute.xlu0 %2775
    %2779 = vset.pattern.permute.xlu0 0
    %2780 = vperm.xlu0 %2779, %v2624
    %v2781 = vpop.permute.xlu0 %2780
    %2784 = vset.pattern.permute.xlu0 0
    %2785 = vperm.xlu0 %2784, %v2625
    %v2786 = vpop.permute.xlu0 %2785
    %2789 = vset.pattern.permute.xlu0 0
    %2790 = vperm.xlu0 %2789, %v2626
    %v2791 = vpop.permute.xlu0 %2790
    %2794 = vset.pattern.permute.xlu0 0
    %2795 = vperm.xlu0 %2794, %v2627
    %v2796 = vpop.permute.xlu0 %2795
    %v2798 = vmul.f32 %v2560, %v2631
    %v2799 = vmul.f32 %v2561, %v2636
    %v2800 = vmul.f32 %v2562, %v2641
    %v2801 = vmul.f32 %v2563, %v2646
    %v2802 = vmul.f32 %v2564, %v2651
    %v2803 = vmul.f32 %v2565, %v2656
    %v2804 = vmul.f32 %v2566, %v2661
    %v2805 = vmul.f32 %v2567, %v2666
    %v2806 = vmul.f32 %v2568, %v2671
    %v2807 = vmul.f32 %v2569, %v2676
    %v2808 = vmul.f32 %v2570, %v2681
    %v2809 = vmul.f32 %v2571, %v2686
    %v2810 = vmul.f32 %v2572, %v2691
    %v2811 = vmul.f32 %v2573, %v2696
    %v2812 = vmul.f32 %v2574, %v2701
    %v2813 = vmul.f32 %v2575, %v2706
    %v2814 = vmul.f32 %v2576, %v2711
    %v2815 = vmul.f32 %v2577, %v2716
    %v2816 = vmul.f32 %v2578, %v2721
    %v2817 = vmul.f32 %v2579, %v2726
    %v2818 = vmul.f32 %v2580, %v2731
    %v2819 = vmul.f32 %v2581, %v2736
    %v2820 = vmul.f32 %v2582, %v2741
    %v2821 = vmul.f32 %v2583, %v2746
    %v2822 = vmul.f32 %v2584, %v2751
    %v2823 = vmul.f32 %v2585, %v2756
    %v2824 = vmul.f32 %v2586, %v2761
    %v2825 = vmul.f32 %v2587, %v2766
    %v2826 = vmul.f32 %v2588, %v2771
    %v2827 = vmul.f32 %v2589, %v2776
    %v2828 = vmul.f32 %v2590, %v2781
    %v2829 = vmul.f32 %v2591, %v2786
    %v2830 = vmul.f32 %v2592, %v2791
    %v2831 = vmul.f32 %v2593, %v2796
    %v2832 = vld [vmem:[%s21] sm:$0x3]
    %v2834 = vsel %vm242, %v2832, 0
    %2836 = vmatpush.bf16.msra.mxu0 0
    %2837 = vmatpush.bf16.msra.mxu0 0
    %2838 = vmatpush.bf16.msra.mxu0 0
    %2839 = vmatpush.bf16.msra.mxu0 0
    %2840 = vmatpush.bf16.msra.mxu0 0
    %2841 = vmatpush.bf16.msra.mxu0 0
    %2842 = vmatpush.bf16.msra.mxu0 0
    %2843 = vmatpush.bf16.msra.mxu0 %v2834
    %2844 = vmatmul.bf16.gmra.mxu0 %v192
    %v2845 = vpop.f32.mrf.mxu0
    %v2846 = vadd.f32 0.0, %v2845
    %v2847 = vpop.f32.mrf.mxu0
    %v2848 = vadd.f32 0.0, %v2847
    %2849 = vmatmul.bf16.gmra.mxu0 %v195
    %v2850 = vpop.f32.mrf.mxu0
    %v2851 = vadd.f32 0.0, %v2850
    %v2852 = vpop.f32.mrf.mxu0
    %v2853 = vadd.f32 0.0, %v2852
    %2854 = vmatmul.bf16.gmra.mxu0 %v198
    %v2855 = vpop.f32.mrf.mxu0
    %v2856 = vadd.f32 0.0, %v2855
    %v2857 = vpop.f32.mrf.mxu0
    %v2858 = vadd.f32 0.0, %v2857
    %2859 = vmatmul.bf16.gmra.mxu0 %v201
    %v2860 = vpop.f32.mrf.mxu0
    %v2861 = vadd.f32 0.0, %v2860
    %v2862 = vpop.f32.mrf.mxu0
    %v2863 = vadd.f32 0.0, %v2862
    %2864 = vmatmul.bf16.gmra.mxu0 %v204
    %v2865 = vpop.f32.mrf.mxu0
    %v2866 = vadd.f32 0.0, %v2865
    %v2867 = vpop.f32.mrf.mxu0
    %v2868 = vadd.f32 0.0, %v2867
    %2869 = vmatmul.bf16.gmra.mxu0 %v207
    %v2870 = vpop.f32.mrf.mxu0
    %v2871 = vadd.f32 0.0, %v2870
    %v2872 = vpop.f32.mrf.mxu0
    %v2873 = vadd.f32 0.0, %v2872
    %2874 = vmatmul.bf16.gmra.mxu0 %v210
    %v2875 = vpop.f32.mrf.mxu0
    %v2876 = vadd.f32 0.0, %v2875
    %v2877 = vpop.f32.mrf.mxu0
    %v2878 = vadd.f32 0.0, %v2877
    %2879 = vmatmul.bf16.gmra.mxu0 %v213
    %v2880 = vpop.f32.mrf.mxu0
    %v2881 = vadd.f32 0.0, %v2880
    %v2882 = vpop.f32.mrf.mxu0
    %v2883 = vadd.f32 0.0, %v2882
    %2884 = vmatmul.bf16.gmra.mxu0 %v216
    %v2885 = vpop.f32.mrf.mxu0
    %v2886 = vadd.f32 0.0, %v2885
    %v2887 = vpop.f32.mrf.mxu0
    %v2888 = vadd.f32 0.0, %v2887
    %2889 = vmatmul.bf16.gmra.mxu0 %v219
    %v2890 = vpop.f32.mrf.mxu0
    %v2891 = vadd.f32 0.0, %v2890
    %v2892 = vpop.f32.mrf.mxu0
    %v2893 = vadd.f32 0.0, %v2892
    %2894 = vmatmul.bf16.gmra.mxu0 %v222
    %v2895 = vpop.f32.mrf.mxu0
    %v2896 = vadd.f32 0.0, %v2895
    %v2897 = vpop.f32.mrf.mxu0
    %v2898 = vadd.f32 0.0, %v2897
    %2899 = vmatmul.bf16.gmra.mxu0 %v225
    %v2900 = vpop.f32.mrf.mxu0
    %v2901 = vadd.f32 0.0, %v2900
    %v2902 = vpop.f32.mrf.mxu0
    %v2903 = vadd.f32 0.0, %v2902
    %2904 = vmatmul.bf16.gmra.mxu0 %v228
    %v2905 = vpop.f32.mrf.mxu0
    %v2906 = vadd.f32 0.0, %v2905
    %v2907 = vpop.f32.mrf.mxu0
    %v2908 = vadd.f32 0.0, %v2907
    %2909 = vmatmul.bf16.gmra.mxu0 %v231
    %v2910 = vpop.f32.mrf.mxu0
    %v2911 = vadd.f32 0.0, %v2910
    %v2912 = vpop.f32.mrf.mxu0
    %v2913 = vadd.f32 0.0, %v2912
    %2914 = vmatmul.bf16.gmra.mxu0 %v234
    %v2915 = vpop.f32.mrf.mxu0
    %v2916 = vadd.f32 0.0, %v2915
    %v2917 = vpop.f32.mrf.mxu0
    %v2918 = vadd.f32 0.0, %v2917
    %2919 = vmatmul.bf16.gmra.mxu0 %v237
    %v2920 = vpop.f32.mrf.mxu0
    %v2921 = vadd.f32 0.0, %v2920
    %v2922 = vpop.f32.mrf.mxu0
    %v2923 = vadd.f32 0.0, %v2922
    %2924 = vmatmul.bf16.gmra.mxu0 %v240
    %v2925 = vpop.f32.mrf.mxu0
    %v2926 = vadd.f32 0.0, %v2925
    %v2927 = vpop.f32.mrf.mxu0
    %v2928 = vadd.f32 0.0, %v2927
    %2929 = vdwg.mxu0
    %v2930 = vadd.f32 %v2798, %v2846
    %v2931 = vadd.f32 %v2799, %v2848
    %v2932 = vadd.f32 %v2800, %v2851
    %v2933 = vadd.f32 %v2801, %v2853
    %v2934 = vadd.f32 %v2802, %v2856
    %v2935 = vadd.f32 %v2803, %v2858
    %v2936 = vadd.f32 %v2804, %v2861
    %v2937 = vadd.f32 %v2805, %v2863
    %v2938 = vadd.f32 %v2806, %v2866
    %v2939 = vadd.f32 %v2807, %v2868
    %v2940 = vadd.f32 %v2808, %v2871
    %v2941 = vadd.f32 %v2809, %v2873
    %v2942 = vadd.f32 %v2810, %v2876
    %v2943 = vadd.f32 %v2811, %v2878
    %v2944 = vadd.f32 %v2812, %v2881
    %v2945 = vadd.f32 %v2813, %v2883
    %v2946 = vadd.f32 %v2814, %v2886
    %v2947 = vadd.f32 %v2815, %v2888
    %v2948 = vadd.f32 %v2816, %v2891
    %v2949 = vadd.f32 %v2817, %v2893
    %v2950 = vadd.f32 %v2818, %v2896
    %v2951 = vadd.f32 %v2819, %v2898
    %v2952 = vadd.f32 %v2820, %v2901
    %v2953 = vadd.f32 %v2821, %v2903
    %v2954 = vadd.f32 %v2822, %v2906
    %v2955 = vadd.f32 %v2823, %v2908
    %v2956 = vadd.f32 %v2824, %v2911
    %v2957 = vadd.f32 %v2825, %v2913
    %v2958 = vadd.f32 %v2826, %v2916
    %v2959 = vadd.f32 %v2827, %v2918
    %v2960 = vadd.f32 %v2828, %v2921
    %v2961 = vadd.f32 %v2829, %v2923
    %v2962 = vadd.f32 %v2830, %v2926
    %v2963 = vadd.f32 %v2831, %v2928
    %v2964 = vld [vmem:[%s23] sm:$0x1]
    %v2966 = vperm.slane %v2964, 0
    %v2968 = vadd.f32 %v2930, %v2966
    %v2969 = vadd.f32 %v2931, %v2966
    %v2970 = vadd.f32 %v2932, %v2966
    %v2971 = vadd.f32 %v2933, %v2966
    %v2972 = vadd.f32 %v2934, %v2966
    %v2973 = vadd.f32 %v2935, %v2966
    %v2974 = vadd.f32 %v2936, %v2966
    %v2975 = vadd.f32 %v2937, %v2966
    %v2976 = vadd.f32 %v2938, %v2966
    %v2977 = vadd.f32 %v2939, %v2966
    %v2978 = vadd.f32 %v2940, %v2966
    %v2979 = vadd.f32 %v2941, %v2966
    %v2980 = vadd.f32 %v2942, %v2966
    %v2981 = vadd.f32 %v2943, %v2966
    %v2982 = vadd.f32 %v2944, %v2966
    %v2983 = vadd.f32 %v2945, %v2966
    %v2984 = vadd.f32 %v2946, %v2966
    %v2985 = vadd.f32 %v2947, %v2966
    %v2986 = vadd.f32 %v2948, %v2966
    %v2987 = vadd.f32 %v2949, %v2966
    %v2988 = vadd.f32 %v2950, %v2966
    %v2989 = vadd.f32 %v2951, %v2966
    %v2990 = vadd.f32 %v2952, %v2966
    %v2991 = vadd.f32 %v2953, %v2966
    %v2992 = vadd.f32 %v2954, %v2966
    %v2993 = vadd.f32 %v2955, %v2966
    %v2994 = vadd.f32 %v2956, %v2966
    %v2995 = vadd.f32 %v2957, %v2966
    %v2996 = vadd.f32 %v2958, %v2966
    %v2997 = vadd.f32 %v2959, %v2966
    %v2998 = vadd.f32 %v2960, %v2966
    %v2999 = vadd.f32 %v2961, %v2966
    %v3000 = vadd.f32 %v2962, %v2966
    %v3001 = vadd.f32 %v2963, %v2966
    %v3002 = vmax.f32 %v2968, 0.0
    %v3003 = vmax.f32 %v2969, 0.0
    %v3004 = vmax.f32 %v2970, 0.0
    %v3005 = vmax.f32 %v2971, 0.0
    %v3006 = vmax.f32 %v2972, 0.0
    %v3007 = vmax.f32 %v2973, 0.0
    %v3008 = vmax.f32 %v2974, 0.0
    %v3009 = vmax.f32 %v2975, 0.0
    %v3010 = vmax.f32 %v2976, 0.0
    %v3011 = vmax.f32 %v2977, 0.0
    %v3012 = vmax.f32 %v2978, 0.0
    %v3013 = vmax.f32 %v2979, 0.0
    %v3014 = vmax.f32 %v2980, 0.0
    %v3015 = vmax.f32 %v2981, 0.0
    %v3016 = vmax.f32 %v2982, 0.0
    %v3017 = vmax.f32 %v2983, 0.0
    %v3018 = vmax.f32 %v2984, 0.0
    %v3019 = vmax.f32 %v2985, 0.0
    %v3020 = vmax.f32 %v2986, 0.0
    %v3021 = vmax.f32 %v2987, 0.0
    %v3022 = vmax.f32 %v2988, 0.0
    %v3023 = vmax.f32 %v2989, 0.0
    %v3024 = vmax.f32 %v2990, 0.0
    %v3025 = vmax.f32 %v2991, 0.0
    %v3026 = vmax.f32 %v2992, 0.0
    %v3027 = vmax.f32 %v2993, 0.0
    %v3028 = vmax.f32 %v2994, 0.0
    %v3029 = vmax.f32 %v2995, 0.0
    %v3030 = vmax.f32 %v2996, 0.0
    %v3031 = vmax.f32 %v2997, 0.0
    %v3032 = vmax.f32 %v2998, 0.0
    %v3033 = vmax.f32 %v2999, 0.0
    %v3034 = vmax.f32 %v3000, 0.0
    %v3035 = vmax.f32 %v3001, 0.0
    %v3036 = vld [vmem:[%s27] sm:$0xff]
    %v3037 = vld [vmem:[%s27 + $0x8] sm:$0xf]
    %v3038 = vld [vmem:[%s27 + $0xc] sm:$0xff]
    %v3039 = vld [vmem:[%s27 + $0x14] sm:$0xf]
    %v3040 = vld [vmem:[%s27 + $0x18] sm:$0xff]
    %v3041 = vld [vmem:[%s27 + $0x20] sm:$0xf]
    %v3042 = vld [vmem:[%s27 + $0x24] sm:$0xff]
    %v3043 = vld [vmem:[%s27 + $0x2c] sm:$0xf]
    %v3044 = vld [vmem:[%s27 + $0x30] sm:$0xff]
    %v3045 = vld [vmem:[%s27 + $0x38] sm:$0xf]
    %v3046 = vld [vmem:[%s27 + $0x3c] sm:$0xff]
    %v3047 = vld [vmem:[%s27 + $0x44] sm:$0xf]
    %v3048 = vld [vmem:[%s27 + $0x48] sm:$0xff]
    %v3049 = vld [vmem:[%s27 + $0x50] sm:$0xf]
    %v3050 = vld [vmem:[%s27 + $0x54] sm:$0xff]
    %v3051 = vld [vmem:[%s27 + $0x5c] sm:$0xf]
    %v3052 = vld [vmem:[%s27 + $0x60] sm:$0xff]
    %v3053 = vld [vmem:[%s27 + $0x68] sm:$0xf]
    %v3054 = vld [vmem:[%s27 + $0x6c] sm:$0xff]
    %v3055 = vld [vmem:[%s27 + $0x74] sm:$0xf]
    %v3056 = vld [vmem:[%s27 + $0x78] sm:$0xff]
    %v3057 = vld [vmem:[%s27 + $0x80] sm:$0xf]
    %v3058 = vld [vmem:[%s27 + $0x84] sm:$0xff]
    %v3059 = vld [vmem:[%s27 + $0x8c] sm:$0xf]
    %v3060 = vld [vmem:[%s27 + $0x90] sm:$0xff]
    %v3061 = vld [vmem:[%s27 + $0x98] sm:$0xf]
    %v3062 = vld [vmem:[%s27 + $0x9c] sm:$0xff]
    %v3063 = vld [vmem:[%s27 + $0xa4] sm:$0xf]
    %v3064 = vld [vmem:[%s27 + $0xa8] sm:$0xff]
    %v3065 = vld [vmem:[%s27 + $0xb0] sm:$0xf]
    %v3066 = vld [vmem:[%s27 + $0xb4] sm:$0xff]
    %v3067 = vld [vmem:[%s27 + $0xbc] sm:$0xf]
    %v3068 = vld [vmem:[%s27 + $0xc0] sm:$0xff]
    %v3069 = vld [vmem:[%s27 + $0xc8] sm:$0xf]
    %v3070 = vld [vmem:[%s27 + $0xcc] sm:$0xff]
    %v3071 = vld [vmem:[%s27 + $0xd4] sm:$0xf]
    %v3072 = vld [vmem:[%s27 + $0xd8] sm:$0xff]
    %v3073 = vld [vmem:[%s27 + $0xe0] sm:$0xf]
    %v3074 = vld [vmem:[%s27 + $0xe4] sm:$0xff]
    %v3075 = vld [vmem:[%s27 + $0xec] sm:$0xf]
    %v3076 = vld [vmem:[%s27 + $0xf0] sm:$0xff]
    %v3077 = vld [vmem:[%s27 + $0xf8] sm:$0xf]
    %v3078 = vld [vmem:[%s27 + $0xfc] sm:$0xff]
    %v3079 = vld [vmem:[%s27 + $0x104] sm:$0xf]
    %v3080 = vld [vmem:[%s27 + $0x108] sm:$0xff]
    %v3081 = vld [vmem:[%s27 + $0x110] sm:$0xf]
    %v3082 = vld [vmem:[%s27 + $0x114] sm:$0xff]
    %v3083 = vld [vmem:[%s27 + $0x11c] sm:$0xf]
    %v3084 = vld [vmem:[%s27 + $0x120] sm:$0xff]
    %v3085 = vld [vmem:[%s27 + $0x128] sm:$0xf]
    %v3086 = vld [vmem:[%s27 + $0x12c] sm:$0xff]
    %v3087 = vld [vmem:[%s27 + $0x134] sm:$0xf]
    %v3088 = vld [vmem:[%s27 + $0x138] sm:$0xff]
    %v3089 = vld [vmem:[%s27 + $0x140] sm:$0xf]
    %v3090 = vld [vmem:[%s27 + $0x144] sm:$0xff]
    %v3091 = vld [vmem:[%s27 + $0x14c] sm:$0xf]
    %v3092 = vld [vmem:[%s27 + $0x150] sm:$0xff]
    %v3093 = vld [vmem:[%s27 + $0x158] sm:$0xf]
    %v3094 = vld [vmem:[%s27 + $0x15c] sm:$0xff]
    %v3095 = vld [vmem:[%s27 + $0x164] sm:$0xf]
    %v3096 = vld [vmem:[%s27 + $0x168] sm:$0xff]
    %v3097 = vld [vmem:[%s27 + $0x170] sm:$0xf]
    %v3098 = vld [vmem:[%s27 + $0x174] sm:$0xff]
    %v3099 = vld [vmem:[%s27 + $0x17c] sm:$0xf]
    %v3100 = vld [vmem:[%s27 + $0x180] sm:$0xff]
    %v3101 = vld [vmem:[%s27 + $0x188] sm:$0xf]
    %v3102 = vld [vmem:[%s27 + $0x18c] sm:$0xff]
    %v3103 = vld [vmem:[%s27 + $0x194] sm:$0xf]
    %v3104 = vld [vmem:[%s27 + $0x198] sm:$0xff]
    %v3105 = vld [vmem:[%s27 + $0x1a0] sm:$0xf]
    %v3106 = vld [vmem:[%s27 + $0x1a4] sm:$0xff]
    %v3107 = vld [vmem:[%s27 + $0x1ac] sm:$0xf]
    %v3108 = vld [vmem:[%s27 + $0x1b0] sm:$0xff]
    %v3109 = vld [vmem:[%s27 + $0x1b8] sm:$0xf]
    %v3110 = vld [vmem:[%s27 + $0x1bc] sm:$0xff]
    %v3111 = vld [vmem:[%s27 + $0x1c4] sm:$0xf]
    %v3112 = vld [vmem:[%s27 + $0x1c8] sm:$0xff]
    %v3113 = vld [vmem:[%s27 + $0x1d0] sm:$0xf]
    %v3114 = vld [vmem:[%s27 + $0x1d4] sm:$0xff]
    %v3115 = vld [vmem:[%s27 + $0x1dc] sm:$0xf]
    %v3116 = vld [vmem:[%s27 + $0x1e0] sm:$0xff]
    %v3117 = vld [vmem:[%s27 + $0x1e8] sm:$0xf]
    %v3118 = vld [vmem:[%s27 + $0x1ec] sm:$0xff]
    %v3119 = vld [vmem:[%s27 + $0x1f4] sm:$0xf]
    %v3120 = vld [vmem:[%s27 + $0x1f8] sm:$0xff]
    %v3121 = vld [vmem:[%s27 + $0x200] sm:$0xf]
    %v3122 = vld [vmem:[%s27 + $0x204] sm:$0xff]
    %v3123 = vld [vmem:[%s27 + $0x20c] sm:$0xf]
    %v3124 = vld [vmem:[%s27 + $0x210] sm:$0xff]
    %v3125 = vld [vmem:[%s27 + $0x218] sm:$0xf]
    %v3126 = vld [vmem:[%s27 + $0x21c] sm:$0xff]
    %v3127 = vld [vmem:[%s27 + $0x224] sm:$0xf]
    %v3128 = vld [vmem:[%s27 + $0x228] sm:$0xff]
    %v3129 = vld [vmem:[%s27 + $0x230] sm:$0xf]
    %v3130 = vld [vmem:[%s27 + $0x234] sm:$0xff]
    %v3131 = vld [vmem:[%s27 + $0x23c] sm:$0xf]
    %v3132 = vld [vmem:[%s27 + $0x240] sm:$0xff]
    %v3133 = vld [vmem:[%s27 + $0x248] sm:$0xf]
    %v3134 = vld [vmem:[%s27 + $0x24c] sm:$0xff]
    %v3135 = vld [vmem:[%s27 + $0x254] sm:$0xf]
    %v3136 = vld [vmem:[%s27 + $0x258] sm:$0xff]
    %v3137 = vld [vmem:[%s27 + $0x260] sm:$0xf]
    %v3138 = vld [vmem:[%s27 + $0x264] sm:$0xff]
    %v3139 = vld [vmem:[%s27 + $0x26c] sm:$0xf]
    %v3140 = vld [vmem:[%s27 + $0x270] sm:$0xff]
    %v3141 = vld [vmem:[%s27 + $0x278] sm:$0xf]
    %v3142 = vld [vmem:[%s27 + $0x27c] sm:$0xff]
    %v3143 = vld [vmem:[%s27 + $0x284] sm:$0xf]
    %v3144 = vld [vmem:[%s27 + $0x288] sm:$0xff]
    %v3145 = vld [vmem:[%s27 + $0x290] sm:$0xf]
    %v3146 = vld [vmem:[%s27 + $0x294] sm:$0xff]
    %v3147 = vld [vmem:[%s27 + $0x29c] sm:$0xf]
    %v3148 = vld [vmem:[%s27 + $0x2a0] sm:$0xff]
    %v3149 = vld [vmem:[%s27 + $0x2a8] sm:$0xf]
    %v3150 = vld [vmem:[%s27 + $0x2ac] sm:$0xff]
    %v3151 = vld [vmem:[%s27 + $0x2b4] sm:$0xf]
    %v3152 = vld [vmem:[%s27 + $0x2b8] sm:$0xff]
    %v3153 = vld [vmem:[%s27 + $0x2c0] sm:$0xf]
    %v3154 = vld [vmem:[%s27 + $0x2c4] sm:$0xff]
    %v3155 = vld [vmem:[%s27 + $0x2cc] sm:$0xf]
    %v3156 = vld [vmem:[%s27 + $0x2d0] sm:$0xff]
    %v3157 = vld [vmem:[%s27 + $0x2d8] sm:$0xf]
    %v3158 = vld [vmem:[%s27 + $0x2dc] sm:$0xff]
    %v3159 = vld [vmem:[%s27 + $0x2e4] sm:$0xf]
    %v3160 = vld [vmem:[%s27 + $0x2e8] sm:$0xff]
    %v3161 = vld [vmem:[%s27 + $0x2f0] sm:$0xf]
    %v3162 = vld [vmem:[%s27 + $0x2f4] sm:$0xff]
    %v3163 = vld [vmem:[%s27 + $0x2fc] sm:$0xf]
    %v3164 = vld [vmem:[%s27 + $0x300] sm:$0xff]
    %v3165 = vld [vmem:[%s27 + $0x308] sm:$0xf]
    %v3166 = vld [vmem:[%s27 + $0x30c] sm:$0xff]
    %v3167 = vld [vmem:[%s27 + $0x314] sm:$0xf]
    %v3168 = vld [vmem:[%s27 + $0x318] sm:$0xff]
    %v3169 = vld [vmem:[%s27 + $0x320] sm:$0xf]
    %v3170 = vld [vmem:[%s27 + $0x324] sm:$0xff]
    %v3171 = vld [vmem:[%s27 + $0x32c] sm:$0xf]
    %v3172 = vld [vmem:[%s27 + $0x330] sm:$0xff]
    %v3173 = vld [vmem:[%s27 + $0x338] sm:$0xf]
    %v3174 = vld [vmem:[%s27 + $0x33c] sm:$0xff]
    %v3175 = vld [vmem:[%s27 + $0x344] sm:$0xf]
    %v3176 = vpack.c.bf16 %v3003, %v3002
    %v3177 = vpack.c.bf16 %v3005, %v3004
    %v3178 = vpack.c.bf16 %v3007, %v3006
    %v3179 = vpack.c.bf16 %v3009, %v3008
    %v3180 = vpack.c.bf16 %v3011, %v3010
    %v3181 = vpack.c.bf16 %v3013, %v3012
    %v3182 = vpack.c.bf16 %v3015, %v3014
    %v3183 = vpack.c.bf16 %v3017, %v3016
    %v3184 = vpack.c.bf16 %v3019, %v3018
    %v3185 = vpack.c.bf16 %v3021, %v3020
    %v3186 = vpack.c.bf16 %v3023, %v3022
    %v3187 = vpack.c.bf16 %v3025, %v3024
    %v3188 = vpack.c.bf16 %v3027, %v3026
    %v3189 = vpack.c.bf16 %v3029, %v3028
    %v3190 = vpack.c.bf16 %v3031, %v3030
    %v3191 = vpack.c.bf16 %v3033, %v3032
    %v3192 = vpack.c.bf16 %v3035, %v3034
    %v3333 = vunpack.c.l.b16 %v3036
    %v3334 = vunpack.c.h.b16 %v3036
    %v3335 = vunpack.c.l.b16 %v3037
    %v3336 = vunpack.c.l.b16 %v3038
    %v3337 = vunpack.c.h.b16 %v3038
    %v3338 = vunpack.c.l.b16 %v3039
    %v3339 = vunpack.c.l.b16 %v3040
    %v3340 = vunpack.c.h.b16 %v3040
    %v3341 = vunpack.c.l.b16 %v3041
    %v3342 = vunpack.c.l.b16 %v3042
    %v3343 = vunpack.c.h.b16 %v3042
    %v3344 = vunpack.c.l.b16 %v3043
    %v3345 = vunpack.c.l.b16 %v3044
    %v3346 = vunpack.c.h.b16 %v3044
    %v3347 = vunpack.c.l.b16 %v3045
    %v3348 = vunpack.c.l.b16 %v3046
    %v3349 = vunpack.c.h.b16 %v3046
    %v3350 = vunpack.c.l.b16 %v3047
    %v3351 = vunpack.c.l.b16 %v3048
    %v3352 = vunpack.c.h.b16 %v3048
    %v3353 = vunpack.c.l.b16 %v3049
    %v3354 = vunpack.c.l.b16 %v3050
    %v3355 = vunpack.c.h.b16 %v3050
    %v3356 = vunpack.c.l.b16 %v3051
    %v3357 = vunpack.c.l.b16 %v3052
    %v3358 = vunpack.c.h.b16 %v3052
    %v3359 = vunpack.c.l.b16 %v3053
    %v3360 = vunpack.c.l.b16 %v3054
    %v3361 = vunpack.c.h.b16 %v3054
    %v3362 = vunpack.c.l.b16 %v3055
    %v3363 = vunpack.c.l.b16 %v3056
    %v3364 = vunpack.c.h.b16 %v3056
    %v3365 = vunpack.c.l.b16 %v3057
    %v3366 = vunpack.c.l.b16 %v3058
    %v3367 = vunpack.c.h.b16 %v3058
    %v3368 = vunpack.c.l.b16 %v3059
    %v3369 = vunpack.c.l.b16 %v3060
    %v3370 = vunpack.c.h.b16 %v3060
    %v3371 = vunpack.c.l.b16 %v3061
    %v3372 = vunpack.c.l.b16 %v3062
    %v3373 = vunpack.c.h.b16 %v3062
    %v3374 = vunpack.c.l.b16 %v3063
    %v3375 = vunpack.c.l.b16 %v3064
    %v3376 = vunpack.c.h.b16 %v3064
    %v3377 = vunpack.c.l.b16 %v3065
    %v3378 = vunpack.c.l.b16 %v3066
    %v3379 = vunpack.c.h.b16 %v3066
    %v3380 = vunpack.c.l.b16 %v3067
    %v3381 = vunpack.c.l.b16 %v3068
    %v3382 = vunpack.c.h.b16 %v3068
    %v3383 = vunpack.c.l.b16 %v3069
    %v3384 = vunpack.c.l.b16 %v3070
    %v3385 = vunpack.c.h.b16 %v3070
    %v3386 = vunpack.c.l.b16 %v3071
    %v3387 = vunpack.c.l.b16 %v3072
    %v3388 = vunpack.c.h.b16 %v3072
    %v3389 = vunpack.c.l.b16 %v3073
    %v3390 = vunpack.c.l.b16 %v3074
    %v3391 = vunpack.c.h.b16 %v3074
    %v3392 = vunpack.c.l.b16 %v3075
    %v3393 = vunpack.c.l.b16 %v3076
    %v3394 = vunpack.c.h.b16 %v3076
    %v3395 = vunpack.c.l.b16 %v3077
    %v3396 = vunpack.c.l.b16 %v3078
    %v3397 = vunpack.c.h.b16 %v3078
    %v3398 = vunpack.c.l.b16 %v3079
    %v3399 = vunpack.c.l.b16 %v3080
    %v3400 = vunpack.c.h.b16 %v3080
    %v3401 = vunpack.c.l.b16 %v3081
    %v3402 = vunpack.c.l.b16 %v3082
    %v3403 = vunpack.c.h.b16 %v3082
    %v3404 = vunpack.c.l.b16 %v3083
    %v3405 = vunpack.c.l.b16 %v3084
    %v3406 = vunpack.c.h.b16 %v3084
    %v3407 = vunpack.c.l.b16 %v3085
    %v3408 = vunpack.c.l.b16 %v3086
    %v3409 = vunpack.c.h.b16 %v3086
    %v3410 = vunpack.c.l.b16 %v3087
    %v3411 = vunpack.c.l.b16 %v3088
    %v3412 = vunpack.c.h.b16 %v3088
    %v3413 = vunpack.c.l.b16 %v3089
    %v3414 = vunpack.c.l.b16 %v3090
    %v3415 = vunpack.c.h.b16 %v3090
    %v3416 = vunpack.c.l.b16 %v3091
    %v3417 = vunpack.c.l.b16 %v3092
    %v3418 = vunpack.c.h.b16 %v3092
    %v3419 = vunpack.c.l.b16 %v3093
    %v3420 = vunpack.c.l.b16 %v3094
    %v3421 = vunpack.c.h.b16 %v3094
    %v3422 = vunpack.c.l.b16 %v3095
    %v3423 = vunpack.c.l.b16 %v3096
    %v3424 = vunpack.c.h.b16 %v3096
    %v3425 = vunpack.c.l.b16 %v3097
    %v3426 = vunpack.c.l.b16 %v3098
    %v3427 = vunpack.c.h.b16 %v3098
    %v3428 = vunpack.c.l.b16 %v3099
    %v3429 = vunpack.c.l.b16 %v3100
    %v3430 = vunpack.c.h.b16 %v3100
    %v3431 = vunpack.c.l.b16 %v3101
    %v3432 = vunpack.c.l.b16 %v3102
    %v3433 = vunpack.c.h.b16 %v3102
    %v3434 = vunpack.c.l.b16 %v3103
    %v3435 = vunpack.c.l.b16 %v3104
    %v3436 = vunpack.c.h.b16 %v3104
    %v3437 = vunpack.c.l.b16 %v3105
    %v3438 = vunpack.c.l.b16 %v3106
    %v3439 = vunpack.c.h.b16 %v3106
    %v3440 = vunpack.c.l.b16 %v3107
    %v3441 = vunpack.c.l.b16 %v3108
    %v3442 = vunpack.c.h.b16 %v3108
    %v3443 = vunpack.c.l.b16 %v3109
    %v3444 = vunpack.c.l.b16 %v3110
    %v3445 = vunpack.c.h.b16 %v3110
    %v3446 = vunpack.c.l.b16 %v3111
    %v3447 = vunpack.c.l.b16 %v3112
    %v3448 = vunpack.c.h.b16 %v3112
    %v3449 = vunpack.c.l.b16 %v3113
    %v3450 = vunpack.c.l.b16 %v3114
    %v3451 = vunpack.c.h.b16 %v3114
    %v3452 = vunpack.c.l.b16 %v3115
    %v3453 = vunpack.c.l.b16 %v3116
    %v3454 = vunpack.c.h.b16 %v3116
    %v3455 = vunpack.c.l.b16 %v3117
    %v3456 = vunpack.c.l.b16 %v3118
    %v3457 = vunpack.c.h.b16 %v3118
    %v3458 = vunpack.c.l.b16 %v3119
    %v3459 = vunpack.c.l.b16 %v3120
    %v3460 = vunpack.c.h.b16 %v3120
    %v3461 = vunpack.c.l.b16 %v3121
    %v3462 = vunpack.c.l.b16 %v3122
    %v3463 = vunpack.c.h.b16 %v3122
    %v3464 = vunpack.c.l.b16 %v3123
    %v3465 = vunpack.c.l.b16 %v3124
    %v3466 = vunpack.c.h.b16 %v3124
    %v3467 = vunpack.c.l.b16 %v3125
    %v3468 = vunpack.c.l.b16 %v3126
    %v3469 = vunpack.c.h.b16 %v3126
    %v3470 = vunpack.c.l.b16 %v3127
    %v3471 = vunpack.c.l.b16 %v3128
    %v3472 = vunpack.c.h.b16 %v3128
    %v3473 = vunpack.c.l.b16 %v3129
    %v3474 = vunpack.c.l.b16 %v3130
    %v3475 = vunpack.c.h.b16 %v3130
    %v3476 = vunpack.c.l.b16 %v3131
    %v3477 = vunpack.c.l.b16 %v3132
    %v3478 = vunpack.c.h.b16 %v3132
    %v3479 = vunpack.c.l.b16 %v3133
    %v3480 = vunpack.c.l.b16 %v3134
    %v3481 = vunpack.c.h.b16 %v3134
    %v3482 = vunpack.c.l.b16 %v3135
    %v3483 = vunpack.c.l.b16 %v3136
    %v3484 = vunpack.c.h.b16 %v3136
    %v3485 = vunpack.c.l.b16 %v3137
    %v3486 = vunpack.c.l.b16 %v3138
    %v3487 = vunpack.c.h.b16 %v3138
    %v3488 = vunpack.c.l.b16 %v3139
    %v3489 = vunpack.c.l.b16 %v3140
    %v3490 = vunpack.c.h.b16 %v3140
    %v3491 = vunpack.c.l.b16 %v3141
    %v3492 = vunpack.c.l.b16 %v3142
    %v3493 = vunpack.c.h.b16 %v3142
    %v3494 = vunpack.c.l.b16 %v3143
    %v3495 = vunpack.c.l.b16 %v3144
    %v3496 = vunpack.c.h.b16 %v3144
    %v3497 = vunpack.c.l.b16 %v3145
    %v3498 = vunpack.c.l.b16 %v3146
    %v3499 = vunpack.c.h.b16 %v3146
    %v3500 = vunpack.c.l.b16 %v3147
    %v3501 = vunpack.c.l.b16 %v3148
    %v3502 = vunpack.c.h.b16 %v3148
    %v3503 = vunpack.c.l.b16 %v3149
    %v3504 = vunpack.c.l.b16 %v3150
    %v3505 = vunpack.c.h.b16 %v3150
    %v3506 = vunpack.c.l.b16 %v3151
    %v3507 = vunpack.c.l.b16 %v3152
    %v3508 = vunpack.c.h.b16 %v3152
    %v3509 = vunpack.c.l.b16 %v3153
    %v3510 = vunpack.c.l.b16 %v3154
    %v3511 = vunpack.c.h.b16 %v3154
    %v3512 = vunpack.c.l.b16 %v3155
    %v3513 = vunpack.c.l.b16 %v3156
    %v3514 = vunpack.c.h.b16 %v3156
    %v3515 = vunpack.c.l.b16 %v3157
    %v3516 = vunpack.c.l.b16 %v3158
    %v3517 = vunpack.c.h.b16 %v3158
    %v3518 = vunpack.c.l.b16 %v3159
    %v3519 = vunpack.c.l.b16 %v3160
    %v3520 = vunpack.c.h.b16 %v3160
    %v3521 = vunpack.c.l.b16 %v3161
    %v3522 = vunpack.c.l.b16 %v3162
    %v3523 = vunpack.c.h.b16 %v3162
    %v3524 = vunpack.c.l.b16 %v3163
    %v3525 = vunpack.c.l.b16 %v3164
    %v3526 = vunpack.c.h.b16 %v3164
    %v3527 = vunpack.c.l.b16 %v3165
    %v3528 = vunpack.c.l.b16 %v3166
    %v3529 = vunpack.c.h.b16 %v3166
    %v3530 = vunpack.c.l.b16 %v3167
    %v3531 = vunpack.c.l.b16 %v3168
    %v3532 = vunpack.c.h.b16 %v3168
    %v3533 = vunpack.c.l.b16 %v3169
    %v3534 = vunpack.c.l.b16 %v3170
    %v3535 = vunpack.c.h.b16 %v3170
    %v3536 = vunpack.c.l.b16 %v3171
    %v3537 = vunpack.c.l.b16 %v3172
    %v3538 = vunpack.c.h.b16 %v3172
    %v3539 = vunpack.c.l.b16 %v3173
    %v3540 = vunpack.c.l.b16 %v3174
    %v3541 = vunpack.c.h.b16 %v3174
    %v3542 = vunpack.c.l.b16 %v3175
    %v3543 = vpack.c.b16 %v3336, %v3333
    %v3544 = vpack.c.b16 %v3337, %v3334
    %v3545 = vpack.c.b16 %v3338, %v3335
    %v3546 = vpack.c.b16 %v3342, %v3339
    %v3547 = vpack.c.b16 %v3343, %v3340
    %v3548 = vpack.c.b16 %v3344, %v3341
    %v3549 = vpack.c.b16 %v3348, %v3345
    %v3550 = vpack.c.b16 %v3349, %v3346
    %v3551 = vpack.c.b16 %v3350, %v3347
    %v3552 = vpack.c.b16 %v3354, %v3351
    %v3553 = vpack.c.b16 %v3355, %v3352
    %v3554 = vpack.c.b16 %v3356, %v3353
    %v3555 = vpack.c.b16 %v3360, %v3357
    %v3556 = vpack.c.b16 %v3361, %v3358
    %v3557 = vpack.c.b16 %v3362, %v3359
    %v3558 = vpack.c.b16 %v3366, %v3363
    %v3559 = vpack.c.b16 %v3367, %v3364
    %v3560 = vpack.c.b16 %v3368, %v3365
    %v3561 = vpack.c.b16 %v3372, %v3369
    %v3562 = vpack.c.b16 %v3373, %v3370
    %v3563 = vpack.c.b16 %v3374, %v3371
    %v3564 = vpack.c.b16 %v3378, %v3375
    %v3565 = vpack.c.b16 %v3379, %v3376
    %v3566 = vpack.c.b16 %v3380, %v3377
    %v3567 = vpack.c.b16 %v3384, %v3381
    %v3568 = vpack.c.b16 %v3385, %v3382
    %v3569 = vpack.c.b16 %v3386, %v3383
    %v3570 = vpack.c.b16 %v3390, %v3387
    %v3571 = vpack.c.b16 %v3391, %v3388
    %v3572 = vpack.c.b16 %v3392, %v3389
    %v3573 = vpack.c.b16 %v3396, %v3393
    %v3574 = vpack.c.b16 %v3397, %v3394
    %v3575 = vpack.c.b16 %v3398, %v3395
    %v3576 = vpack.c.b16 %v3402, %v3399
    %v3577 = vpack.c.b16 %v3403, %v3400
    %v3578 = vpack.c.b16 %v3404, %v3401
    %v3579 = vpack.c.b16 %v3408, %v3405
    %v3580 = vpack.c.b16 %v3409, %v3406
    %v3581 = vpack.c.b16 %v3410, %v3407
    %v3582 = vpack.c.b16 %v3414, %v3411
    %v3583 = vpack.c.b16 %v3415, %v3412
    %v3584 = vpack.c.b16 %v3416, %v3413
    %v3585 = vpack.c.b16 %v3420, %v3417
    %v3586 = vpack.c.b16 %v3421, %v3418
    %v3587 = vpack.c.b16 %v3422, %v3419
    %v3588 = vpack.c.b16 %v3426, %v3423
    %v3589 = vpack.c.b16 %v3427, %v3424
    %v3590 = vpack.c.b16 %v3428, %v3425
    %v3591 = vpack.c.b16 %v3432, %v3429
    %v3592 = vpack.c.b16 %v3433, %v3430
    %v3593 = vpack.c.b16 %v3434, %v3431
    %v3594 = vpack.c.b16 %v3438, %v3435
    %v3595 = vpack.c.b16 %v3439, %v3436
    %v3596 = vpack.c.b16 %v3440, %v3437
    %v3597 = vpack.c.b16 %v3444, %v3441
    %v3598 = vpack.c.b16 %v3445, %v3442
    %v3599 = vpack.c.b16 %v3446, %v3443
    %v3600 = vpack.c.b16 %v3450, %v3447
    %v3601 = vpack.c.b16 %v3451, %v3448
    %v3602 = vpack.c.b16 %v3452, %v3449
    %v3603 = vpack.c.b16 %v3456, %v3453
    %v3604 = vpack.c.b16 %v3457, %v3454
    %v3605 = vpack.c.b16 %v3458, %v3455
    %v3606 = vpack.c.b16 %v3462, %v3459
    %v3607 = vpack.c.b16 %v3463, %v3460
    %v3608 = vpack.c.b16 %v3464, %v3461
    %v3609 = vpack.c.b16 %v3468, %v3465
    %v3610 = vpack.c.b16 %v3469, %v3466
    %v3611 = vpack.c.b16 %v3470, %v3467
    %v3612 = vpack.c.b16 %v3474, %v3471
    %v3613 = vpack.c.b16 %v3475, %v3472
    %v3614 = vpack.c.b16 %v3476, %v3473
    %v3615 = vpack.c.b16 %v3480, %v3477
    %v3616 = vpack.c.b16 %v3481, %v3478
    %v3617 = vpack.c.b16 %v3482, %v3479
    %v3618 = vpack.c.b16 %v3486, %v3483
    %v3619 = vpack.c.b16 %v3487, %v3484
    %v3620 = vpack.c.b16 %v3488, %v3485
    %v3621 = vpack.c.b16 %v3492, %v3489
    %v3622 = vpack.c.b16 %v3493, %v3490
    %v3623 = vpack.c.b16 %v3494, %v3491
    %v3624 = vpack.c.b16 %v3498, %v3495
    %v3625 = vpack.c.b16 %v3499, %v3496
    %v3626 = vpack.c.b16 %v3500, %v3497
    %v3627 = vpack.c.b16 %v3504, %v3501
    %v3628 = vpack.c.b16 %v3505, %v3502
    %v3629 = vpack.c.b16 %v3506, %v3503
    %v3630 = vpack.c.b16 %v3510, %v3507
    %v3631 = vpack.c.b16 %v3511, %v3508
    %v3632 = vpack.c.b16 %v3512, %v3509
    %v3633 = vpack.c.b16 %v3516, %v3513
    %v3634 = vpack.c.b16 %v3517, %v3514
    %v3635 = vpack.c.b16 %v3518, %v3515
    %v3636 = vpack.c.b16 %v3522, %v3519
    %v3637 = vpack.c.b16 %v3523, %v3520
    %v3638 = vpack.c.b16 %v3524, %v3521
    %v3639 = vpack.c.b16 %v3528, %v3525
    %v3640 = vpack.c.b16 %v3529, %v3526
    %v3641 = vpack.c.b16 %v3530, %v3527
    %v3642 = vpack.c.b16 %v3534, %v3531
    %v3643 = vpack.c.b16 %v3535, %v3532
    %v3644 = vpack.c.b16 %v3536, %v3533
    %v3645 = vpack.c.b16 %v3540, %v3537
    %v3646 = vpack.c.b16 %v3541, %v3538
    %v3647 = vpack.c.b16 %v3542, %v3539
    %v3719 = vsel %vm865, %v3545, 0
    %v3722 = vsel %vm865, %v3548, 0
    %v3725 = vsel %vm865, %v3551, 0
    %v3728 = vsel %vm865, %v3554, 0
    %v3731 = vsel %vm865, %v3557, 0
    %v3734 = vsel %vm865, %v3560, 0
    %v3737 = vsel %vm865, %v3563, 0
    %v3740 = vsel %vm865, %v3566, 0
    %v3743 = vsel %vm865, %v3569, 0
    %v3746 = vsel %vm865, %v3572, 0
    %v3749 = vsel %vm865, %v3575, 0
    %v3752 = vsel %vm865, %v3578, 0
    %v3755 = vsel %vm865, %v3581, 0
    %v3758 = vsel %vm865, %v3584, 0
    %v3761 = vsel %vm865, %v3587, 0
    %v3764 = vsel %vm865, %v3590, 0
    %v3767 = vsel %vm865, %v3593, 0
    %v3770 = vsel %vm865, %v3596, 0
    %v3773 = vsel %vm865, %v3599, 0
    %v3776 = vsel %vm865, %v3602, 0
    %v3779 = vsel %vm865, %v3605, 0
    %v3782 = vsel %vm865, %v3608, 0
    %v3785 = vsel %vm865, %v3611, 0
    %v3788 = vsel %vm865, %v3614, 0
    %v3791 = vsel %vm865, %v3617, 0
    %v3794 = vsel %vm865, %v3620, 0
    %v3797 = vsel %vm865, %v3623, 0
    %v3800 = vsel %vm865, %v3626, 0
    %v3803 = vsel %vm865, %v3629, 0
    %v3806 = vsel %vm865, %v3632, 0
    %v3809 = vsel %vm865, %v3635, 0
    %v3812 = vsel %vm865, %v3638, 0
    %v3815 = vsel %vm865, %v3641, 0
    %v3818 = vsel %vm865, %v3644, 0
    %v3821 = vsel %vm865, %v3647, 0
    %3823 = vmatpush.bf16.msra.mxu0 %v3183
    %3824 = vmatpush.bf16.msra.mxu0 %v3182
    %3825 = vmatpush.bf16.msra.mxu0 %v3181
    %3826 = vmatpush.bf16.msra.mxu0 %v3180
    %3827 = vmatpush.bf16.msra.mxu0 %v3179
    %3828 = vmatpush.bf16.msra.mxu0 %v3178
    %3829 = vmatpush.bf16.msra.mxu0 %v3177
    %3830 = vmatpush.bf16.msra.mxu0 %v3176
    %3831 = vmatmul.bf16.gmra.mxu0 %v3543
    %v3832 = vpop.f32.mrf.mxu0
    %v3833 = vadd.f32 0.0, %v3832
    %v3834 = vpop.f32.mrf.mxu0
    %v3835 = vadd.f32 0.0, %v3834
    %3836 = vmatmul.bf16.gmra.mxu0 %v3546
    %v3837 = vpop.f32.mrf.mxu0
    %v3838 = vadd.f32 0.0, %v3837
    %v3839 = vpop.f32.mrf.mxu0
    %v3840 = vadd.f32 0.0, %v3839
    %3841 = vmatmul.bf16.gmra.mxu0 %v3549
    %v3842 = vpop.f32.mrf.mxu0
    %v3843 = vadd.f32 0.0, %v3842
    %v3844 = vpop.f32.mrf.mxu0
    %v3845 = vadd.f32 0.0, %v3844
    %3846 = vmatmul.bf16.gmra.mxu0 %v3552
    %v3847 = vpop.f32.mrf.mxu0
    %v3848 = vadd.f32 0.0, %v3847
    %v3849 = vpop.f32.mrf.mxu0
    %v3850 = vadd.f32 0.0, %v3849
    %3851 = vmatmul.bf16.gmra.mxu0 %v3555
    %v3852 = vpop.f32.mrf.mxu0
    %v3853 = vadd.f32 0.0, %v3852
    %v3854 = vpop.f32.mrf.mxu0
    %v3855 = vadd.f32 0.0, %v3854
    %3856 = vmatmul.bf16.gmra.mxu0 %v3558
    %v3857 = vpop.f32.mrf.mxu0
    %v3858 = vadd.f32 0.0, %v3857
    %v3859 = vpop.f32.mrf.mxu0
    %v3860 = vadd.f32 0.0, %v3859
    %3861 = vmatmul.bf16.gmra.mxu0 %v3561
    %v3862 = vpop.f32.mrf.mxu0
    %v3863 = vadd.f32 0.0, %v3862
    %v3864 = vpop.f32.mrf.mxu0
    %v3865 = vadd.f32 0.0, %v3864
    %3866 = vmatmul.bf16.gmra.mxu0 %v3564
    %v3867 = vpop.f32.mrf.mxu0
    %v3868 = vadd.f32 0.0, %v3867
    %v3869 = vpop.f32.mrf.mxu0
    %v3870 = vadd.f32 0.0, %v3869
    %3871 = vmatmul.bf16.gmra.mxu0 %v3567
    %v3872 = vpop.f32.mrf.mxu0
    %v3873 = vadd.f32 0.0, %v3872
    %v3874 = vpop.f32.mrf.mxu0
    %v3875 = vadd.f32 0.0, %v3874
    %3876 = vmatmul.bf16.gmra.mxu0 %v3570
    %v3877 = vpop.f32.mrf.mxu0
    %v3878 = vadd.f32 0.0, %v3877
    %v3879 = vpop.f32.mrf.mxu0
    %v3880 = vadd.f32 0.0, %v3879
    %3881 = vmatmul.bf16.gmra.mxu0 %v3573
    %v3882 = vpop.f32.mrf.mxu0
    %v3883 = vadd.f32 0.0, %v3882
    %v3884 = vpop.f32.mrf.mxu0
    %v3885 = vadd.f32 0.0, %v3884
    %3886 = vmatmul.bf16.gmra.mxu0 %v3576
    %v3887 = vpop.f32.mrf.mxu0
    %v3888 = vadd.f32 0.0, %v3887
    %v3889 = vpop.f32.mrf.mxu0
    %v3890 = vadd.f32 0.0, %v3889
    %3891 = vmatmul.bf16.gmra.mxu0 %v3579
    %v3892 = vpop.f32.mrf.mxu0
    %v3893 = vadd.f32 0.0, %v3892
    %v3894 = vpop.f32.mrf.mxu0
    %v3895 = vadd.f32 0.0, %v3894
    %3896 = vmatmul.bf16.gmra.mxu0 %v3582
    %v3897 = vpop.f32.mrf.mxu0
    %v3898 = vadd.f32 0.0, %v3897
    %v3899 = vpop.f32.mrf.mxu0
    %v3900 = vadd.f32 0.0, %v3899
    %3901 = vmatmul.bf16.gmra.mxu0 %v3585
    %v3902 = vpop.f32.mrf.mxu0
    %v3903 = vadd.f32 0.0, %v3902
    %v3904 = vpop.f32.mrf.mxu0
    %v3905 = vadd.f32 0.0, %v3904
    %3906 = vmatmul.bf16.gmra.mxu0 %v3588
    %v3907 = vpop.f32.mrf.mxu0
    %v3908 = vadd.f32 0.0, %v3907
    %v3909 = vpop.f32.mrf.mxu0
    %v3910 = vadd.f32 0.0, %v3909
    %3911 = vmatmul.bf16.gmra.mxu0 %v3591
    %v3912 = vpop.f32.mrf.mxu0
    %v3913 = vadd.f32 0.0, %v3912
    %v3914 = vpop.f32.mrf.mxu0
    %v3915 = vadd.f32 0.0, %v3914
    %3916 = vmatmul.bf16.gmra.mxu0 %v3594
    %v3917 = vpop.f32.mrf.mxu0
    %v3918 = vadd.f32 0.0, %v3917
    %v3919 = vpop.f32.mrf.mxu0
    %v3920 = vadd.f32 0.0, %v3919
    %3921 = vmatmul.bf16.gmra.mxu0 %v3597
    %v3922 = vpop.f32.mrf.mxu0
    %v3923 = vadd.f32 0.0, %v3922
    %v3924 = vpop.f32.mrf.mxu0
    %v3925 = vadd.f32 0.0, %v3924
    %3926 = vmatmul.bf16.gmra.mxu0 %v3600
    %v3927 = vpop.f32.mrf.mxu0
    %v3928 = vadd.f32 0.0, %v3927
    %v3929 = vpop.f32.mrf.mxu0
    %v3930 = vadd.f32 0.0, %v3929
    %3931 = vmatmul.bf16.gmra.mxu0 %v3603
    %v3932 = vpop.f32.mrf.mxu0
    %v3933 = vadd.f32 0.0, %v3932
    %v3934 = vpop.f32.mrf.mxu0
    %v3935 = vadd.f32 0.0, %v3934
    %3936 = vmatmul.bf16.gmra.mxu0 %v3606
    %v3937 = vpop.f32.mrf.mxu0
    %v3938 = vadd.f32 0.0, %v3937
    %v3939 = vpop.f32.mrf.mxu0
    %v3940 = vadd.f32 0.0, %v3939
    %3941 = vmatmul.bf16.gmra.mxu0 %v3609
    %v3942 = vpop.f32.mrf.mxu0
    %v3943 = vadd.f32 0.0, %v3942
    %v3944 = vpop.f32.mrf.mxu0
    %v3945 = vadd.f32 0.0, %v3944
    %3946 = vmatmul.bf16.gmra.mxu0 %v3612
    %v3947 = vpop.f32.mrf.mxu0
    %v3948 = vadd.f32 0.0, %v3947
    %v3949 = vpop.f32.mrf.mxu0
    %v3950 = vadd.f32 0.0, %v3949
    %3951 = vmatmul.bf16.gmra.mxu0 %v3615
    %v3952 = vpop.f32.mrf.mxu0
    %v3953 = vadd.f32 0.0, %v3952
    %v3954 = vpop.f32.mrf.mxu0
    %v3955 = vadd.f32 0.0, %v3954
    %3956 = vmatmul.bf16.gmra.mxu0 %v3618
    %v3957 = vpop.f32.mrf.mxu0
    %v3958 = vadd.f32 0.0, %v3957
    %v3959 = vpop.f32.mrf.mxu0
    %v3960 = vadd.f32 0.0, %v3959
    %3961 = vmatmul.bf16.gmra.mxu0 %v3621
    %v3962 = vpop.f32.mrf.mxu0
    %v3963 = vadd.f32 0.0, %v3962
    %v3964 = vpop.f32.mrf.mxu0
    %v3965 = vadd.f32 0.0, %v3964
    %3966 = vmatmul.bf16.gmra.mxu0 %v3624
    %v3967 = vpop.f32.mrf.mxu0
    %v3968 = vadd.f32 0.0, %v3967
    %v3969 = vpop.f32.mrf.mxu0
    %v3970 = vadd.f32 0.0, %v3969
    %3971 = vmatmul.bf16.gmra.mxu0 %v3627
    %v3972 = vpop.f32.mrf.mxu0
    %v3973 = vadd.f32 0.0, %v3972
    %v3974 = vpop.f32.mrf.mxu0
    %v3975 = vadd.f32 0.0, %v3974
    %3976 = vmatmul.bf16.gmra.mxu0 %v3630
    %v3977 = vpop.f32.mrf.mxu0
    %v3978 = vadd.f32 0.0, %v3977
    %v3979 = vpop.f32.mrf.mxu0
    %v3980 = vadd.f32 0.0, %v3979
    %3981 = vmatmul.bf16.gmra.mxu0 %v3633
    %v3982 = vpop.f32.mrf.mxu0
    %v3983 = vadd.f32 0.0, %v3982
    %v3984 = vpop.f32.mrf.mxu0
    %v3985 = vadd.f32 0.0, %v3984
    %3986 = vmatmul.bf16.gmra.mxu0 %v3636
    %v3987 = vpop.f32.mrf.mxu0
    %v3988 = vadd.f32 0.0, %v3987
    %v3989 = vpop.f32.mrf.mxu0
    %v3990 = vadd.f32 0.0, %v3989
    %3991 = vmatmul.bf16.gmra.mxu0 %v3639
    %v3992 = vpop.f32.mrf.mxu0
    %v3993 = vadd.f32 0.0, %v3992
    %v3994 = vpop.f32.mrf.mxu0
    %v3995 = vadd.f32 0.0, %v3994
    %3996 = vmatmul.bf16.gmra.mxu0 %v3642
    %v3997 = vpop.f32.mrf.mxu0
    %v3998 = vadd.f32 0.0, %v3997
    %v3999 = vpop.f32.mrf.mxu0
    %v4000 = vadd.f32 0.0, %v3999
    %4001 = vmatmul.bf16.gmra.mxu0 %v3645
    %v4002 = vpop.f32.mrf.mxu0
    %v4003 = vadd.f32 0.0, %v4002
    %v4004 = vpop.f32.mrf.mxu0
    %v4005 = vadd.f32 0.0, %v4004
    %4006 = vdwg.mxu0
    %4007 = vmatpush.bf16.msra.mxu0 %v3191
    %4008 = vmatpush.bf16.msra.mxu0 %v3190
    %4009 = vmatpush.bf16.msra.mxu0 %v3189
    %4010 = vmatpush.bf16.msra.mxu0 %v3188
    %4011 = vmatpush.bf16.msra.mxu0 %v3187
    %4012 = vmatpush.bf16.msra.mxu0 %v3186
    %4013 = vmatpush.bf16.msra.mxu0 %v3185
    %4014 = vmatpush.bf16.msra.mxu0 %v3184
    %4015 = vmatmul.bf16.gmra.mxu0 %v3544
    %v4016 = vpop.f32.mrf.mxu0
    %v4017 = vadd.f32 %v3833, %v4016
    %v4018 = vpop.f32.mrf.mxu0
    %v4019 = vadd.f32 %v3835, %v4018
    %4020 = vmatmul.bf16.gmra.mxu0 %v3547
    %v4021 = vpop.f32.mrf.mxu0
    %v4022 = vadd.f32 %v3838, %v4021
    %v4023 = vpop.f32.mrf.mxu0
    %v4024 = vadd.f32 %v3840, %v4023
    %4025 = vmatmul.bf16.gmra.mxu0 %v3550
    %v4026 = vpop.f32.mrf.mxu0
    %v4027 = vadd.f32 %v3843, %v4026
    %v4028 = vpop.f32.mrf.mxu0
    %v4029 = vadd.f32 %v3845, %v4028
    %4030 = vmatmul.bf16.gmra.mxu0 %v3553
    %v4031 = vpop.f32.mrf.mxu0
    %v4032 = vadd.f32 %v3848, %v4031
    %v4033 = vpop.f32.mrf.mxu0
    %v4034 = vadd.f32 %v3850, %v4033
    %4035 = vmatmul.bf16.gmra.mxu0 %v3556
    %v4036 = vpop.f32.mrf.mxu0
    %v4037 = vadd.f32 %v3853, %v4036
    %v4038 = vpop.f32.mrf.mxu0
    %v4039 = vadd.f32 %v3855, %v4038
    %4040 = vmatmul.bf16.gmra.mxu0 %v3559
    %v4041 = vpop.f32.mrf.mxu0
    %v4042 = vadd.f32 %v3858, %v4041
    %v4043 = vpop.f32.mrf.mxu0
    %v4044 = vadd.f32 %v3860, %v4043
    %4045 = vmatmul.bf16.gmra.mxu0 %v3562
    %v4046 = vpop.f32.mrf.mxu0
    %v4047 = vadd.f32 %v3863, %v4046
    %v4048 = vpop.f32.mrf.mxu0
    %v4049 = vadd.f32 %v3865, %v4048
    %4050 = vmatmul.bf16.gmra.mxu0 %v3565
    %v4051 = vpop.f32.mrf.mxu0
    %v4052 = vadd.f32 %v3868, %v4051
    %v4053 = vpop.f32.mrf.mxu0
    %v4054 = vadd.f32 %v3870, %v4053
    %4055 = vmatmul.bf16.gmra.mxu0 %v3568
    %v4056 = vpop.f32.mrf.mxu0
    %v4057 = vadd.f32 %v3873, %v4056
    %v4058 = vpop.f32.mrf.mxu0
    %v4059 = vadd.f32 %v3875, %v4058
    %4060 = vmatmul.bf16.gmra.mxu0 %v3571
    %v4061 = vpop.f32.mrf.mxu0
    %v4062 = vadd.f32 %v3878, %v4061
    %v4063 = vpop.f32.mrf.mxu0
    %v4064 = vadd.f32 %v3880, %v4063
    %4065 = vmatmul.bf16.gmra.mxu0 %v3574
    %v4066 = vpop.f32.mrf.mxu0
    %v4067 = vadd.f32 %v3883, %v4066
    %v4068 = vpop.f32.mrf.mxu0
    %v4069 = vadd.f32 %v3885, %v4068
    %4070 = vmatmul.bf16.gmra.mxu0 %v3577
    %v4071 = vpop.f32.mrf.mxu0
    %v4072 = vadd.f32 %v3888, %v4071
    %v4073 = vpop.f32.mrf.mxu0
    %v4074 = vadd.f32 %v3890, %v4073
    %4075 = vmatmul.bf16.gmra.mxu0 %v3580
    %v4076 = vpop.f32.mrf.mxu0
    %v4077 = vadd.f32 %v3893, %v4076
    %v4078 = vpop.f32.mrf.mxu0
    %v4079 = vadd.f32 %v3895, %v4078
    %4080 = vmatmul.bf16.gmra.mxu0 %v3583
    %v4081 = vpop.f32.mrf.mxu0
    %v4082 = vadd.f32 %v3898, %v4081
    %v4083 = vpop.f32.mrf.mxu0
    %v4084 = vadd.f32 %v3900, %v4083
    %4085 = vmatmul.bf16.gmra.mxu0 %v3586
    %v4086 = vpop.f32.mrf.mxu0
    %v4087 = vadd.f32 %v3903, %v4086
    %v4088 = vpop.f32.mrf.mxu0
    %v4089 = vadd.f32 %v3905, %v4088
    %4090 = vmatmul.bf16.gmra.mxu0 %v3589
    %v4091 = vpop.f32.mrf.mxu0
    %v4092 = vadd.f32 %v3908, %v4091
    %v4093 = vpop.f32.mrf.mxu0
    %v4094 = vadd.f32 %v3910, %v4093
    %4095 = vmatmul.bf16.gmra.mxu0 %v3592
    %v4096 = vpop.f32.mrf.mxu0
    %v4097 = vadd.f32 %v3913, %v4096
    %v4098 = vpop.f32.mrf.mxu0
    %v4099 = vadd.f32 %v3915, %v4098
    %4100 = vmatmul.bf16.gmra.mxu0 %v3595
    %v4101 = vpop.f32.mrf.mxu0
    %v4102 = vadd.f32 %v3918, %v4101
    %v4103 = vpop.f32.mrf.mxu0
    %v4104 = vadd.f32 %v3920, %v4103
    %4105 = vmatmul.bf16.gmra.mxu0 %v3598
    %v4106 = vpop.f32.mrf.mxu0
    %v4107 = vadd.f32 %v3923, %v4106
    %v4108 = vpop.f32.mrf.mxu0
    %v4109 = vadd.f32 %v3925, %v4108
    %4110 = vmatmul.bf16.gmra.mxu0 %v3601
    %v4111 = vpop.f32.mrf.mxu0
    %v4112 = vadd.f32 %v3928, %v4111
    %v4113 = vpop.f32.mrf.mxu0
    %v4114 = vadd.f32 %v3930, %v4113
    %4115 = vmatmul.bf16.gmra.mxu0 %v3604
    %v4116 = vpop.f32.mrf.mxu0
    %v4117 = vadd.f32 %v3933, %v4116
    %v4118 = vpop.f32.mrf.mxu0
    %v4119 = vadd.f32 %v3935, %v4118
    %4120 = vmatmul.bf16.gmra.mxu0 %v3607
    %v4121 = vpop.f32.mrf.mxu0
    %v4122 = vadd.f32 %v3938, %v4121
    %v4123 = vpop.f32.mrf.mxu0
    %v4124 = vadd.f32 %v3940, %v4123
    %4125 = vmatmul.bf16.gmra.mxu0 %v3610
    %v4126 = vpop.f32.mrf.mxu0
    %v4127 = vadd.f32 %v3943, %v4126
    %v4128 = vpop.f32.mrf.mxu0
    %v4129 = vadd.f32 %v3945, %v4128
    %4130 = vmatmul.bf16.gmra.mxu0 %v3613
    %v4131 = vpop.f32.mrf.mxu0
    %v4132 = vadd.f32 %v3948, %v4131
    %v4133 = vpop.f32.mrf.mxu0
    %v4134 = vadd.f32 %v3950, %v4133
    %4135 = vmatmul.bf16.gmra.mxu0 %v3616
    %v4136 = vpop.f32.mrf.mxu0
    %v4137 = vadd.f32 %v3953, %v4136
    %v4138 = vpop.f32.mrf.mxu0
    %v4139 = vadd.f32 %v3955, %v4138
    %4140 = vmatmul.bf16.gmra.mxu0 %v3619
    %v4141 = vpop.f32.mrf.mxu0
    %v4142 = vadd.f32 %v3958, %v4141
    %v4143 = vpop.f32.mrf.mxu0
    %v4144 = vadd.f32 %v3960, %v4143
    %4145 = vmatmul.bf16.gmra.mxu0 %v3622
    %v4146 = vpop.f32.mrf.mxu0
    %v4147 = vadd.f32 %v3963, %v4146
    %v4148 = vpop.f32.mrf.mxu0
    %v4149 = vadd.f32 %v3965, %v4148
    %4150 = vmatmul.bf16.gmra.mxu0 %v3625
    %v4151 = vpop.f32.mrf.mxu0
    %v4152 = vadd.f32 %v3968, %v4151
    %v4153 = vpop.f32.mrf.mxu0
    %v4154 = vadd.f32 %v3970, %v4153
    %4155 = vmatmul.bf16.gmra.mxu0 %v3628
    %v4156 = vpop.f32.mrf.mxu0
    %v4157 = vadd.f32 %v3973, %v4156
    %v4158 = vpop.f32.mrf.mxu0
    %v4159 = vadd.f32 %v3975, %v4158
    %4160 = vmatmul.bf16.gmra.mxu0 %v3631
    %v4161 = vpop.f32.mrf.mxu0
    %v4162 = vadd.f32 %v3978, %v4161
    %v4163 = vpop.f32.mrf.mxu0
    %v4164 = vadd.f32 %v3980, %v4163
    %4165 = vmatmul.bf16.gmra.mxu0 %v3634
    %v4166 = vpop.f32.mrf.mxu0
    %v4167 = vadd.f32 %v3983, %v4166
    %v4168 = vpop.f32.mrf.mxu0
    %v4169 = vadd.f32 %v3985, %v4168
    %4170 = vmatmul.bf16.gmra.mxu0 %v3637
    %v4171 = vpop.f32.mrf.mxu0
    %v4172 = vadd.f32 %v3988, %v4171
    %v4173 = vpop.f32.mrf.mxu0
    %v4174 = vadd.f32 %v3990, %v4173
    %4175 = vmatmul.bf16.gmra.mxu0 %v3640
    %v4176 = vpop.f32.mrf.mxu0
    %v4177 = vadd.f32 %v3993, %v4176
    %v4178 = vpop.f32.mrf.mxu0
    %v4179 = vadd.f32 %v3995, %v4178
    %4180 = vmatmul.bf16.gmra.mxu0 %v3643
    %v4181 = vpop.f32.mrf.mxu0
    %v4182 = vadd.f32 %v3998, %v4181
    %v4183 = vpop.f32.mrf.mxu0
    %v4184 = vadd.f32 %v4000, %v4183
    %4185 = vmatmul.bf16.gmra.mxu0 %v3646
    %v4186 = vpop.f32.mrf.mxu0
    %v4187 = vadd.f32 %v4003, %v4186
    %v4188 = vpop.f32.mrf.mxu0
    %v4189 = vadd.f32 %v4005, %v4188
    %4190 = vdwg.mxu0
    %4191 = vmatpush.bf16.msra.mxu0 0
    %4192 = vmatpush.bf16.msra.mxu0 0
    %4193 = vmatpush.bf16.msra.mxu0 0
    %4194 = vmatpush.bf16.msra.mxu0 0
    %4195 = vmatpush.bf16.msra.mxu0 0
    %4196 = vmatpush.bf16.msra.mxu0 0
    %4197 = vmatpush.bf16.msra.mxu0 0
    %4198 = vmatpush.bf16.msra.mxu0 %v3192
    %4199 = vmatmul.bf16.gmra.mxu0 %v3719
    %v4200 = vpop.f32.mrf.mxu0
    %v4201 = vadd.f32 %v4017, %v4200
    %v4202 = vpop.f32.mrf.mxu0
    %v4203 = vadd.f32 %v4019, %v4202
    %4204 = vmatmul.bf16.gmra.mxu0 %v3722
    %v4205 = vpop.f32.mrf.mxu0
    %v4206 = vadd.f32 %v4022, %v4205
    %v4207 = vpop.f32.mrf.mxu0
    %v4208 = vadd.f32 %v4024, %v4207
    %4209 = vmatmul.bf16.gmra.mxu0 %v3725
    %v4210 = vpop.f32.mrf.mxu0
    %v4211 = vadd.f32 %v4027, %v4210
    %v4212 = vpop.f32.mrf.mxu0
    %v4213 = vadd.f32 %v4029, %v4212
    %4214 = vmatmul.bf16.gmra.mxu0 %v3728
    %v4215 = vpop.f32.mrf.mxu0
    %v4216 = vadd.f32 %v4032, %v4215
    %v4217 = vpop.f32.mrf.mxu0
    %v4218 = vadd.f32 %v4034, %v4217
    %4219 = vmatmul.bf16.gmra.mxu0 %v3731
    %v4220 = vpop.f32.mrf.mxu0
    %v4221 = vadd.f32 %v4037, %v4220
    %v4222 = vpop.f32.mrf.mxu0
    %v4223 = vadd.f32 %v4039, %v4222
    %4224 = vmatmul.bf16.gmra.mxu0 %v3734
    %v4225 = vpop.f32.mrf.mxu0
    %v4226 = vadd.f32 %v4042, %v4225
    %v4227 = vpop.f32.mrf.mxu0
    %v4228 = vadd.f32 %v4044, %v4227
    %4229 = vmatmul.bf16.gmra.mxu0 %v3737
    %v4230 = vpop.f32.mrf.mxu0
    %v4231 = vadd.f32 %v4047, %v4230
    %v4232 = vpop.f32.mrf.mxu0
    %v4233 = vadd.f32 %v4049, %v4232
    %4234 = vmatmul.bf16.gmra.mxu0 %v3740
    %v4235 = vpop.f32.mrf.mxu0
    %v4236 = vadd.f32 %v4052, %v4235
    %v4237 = vpop.f32.mrf.mxu0
    %v4238 = vadd.f32 %v4054, %v4237
    %4239 = vmatmul.bf16.gmra.mxu0 %v3743
    %v4240 = vpop.f32.mrf.mxu0
    %v4241 = vadd.f32 %v4057, %v4240
    %v4242 = vpop.f32.mrf.mxu0
    %v4243 = vadd.f32 %v4059, %v4242
    %4244 = vmatmul.bf16.gmra.mxu0 %v3746
    %v4245 = vpop.f32.mrf.mxu0
    %v4246 = vadd.f32 %v4062, %v4245
    %v4247 = vpop.f32.mrf.mxu0
    %v4248 = vadd.f32 %v4064, %v4247
    %4249 = vmatmul.bf16.gmra.mxu0 %v3749
    %v4250 = vpop.f32.mrf.mxu0
    %v4251 = vadd.f32 %v4067, %v4250
    %v4252 = vpop.f32.mrf.mxu0
    %v4253 = vadd.f32 %v4069, %v4252
    %4254 = vmatmul.bf16.gmra.mxu0 %v3752
    %v4255 = vpop.f32.mrf.mxu0
    %v4256 = vadd.f32 %v4072, %v4255
    %v4257 = vpop.f32.mrf.mxu0
    %v4258 = vadd.f32 %v4074, %v4257
    %4259 = vmatmul.bf16.gmra.mxu0 %v3755
    %v4260 = vpop.f32.mrf.mxu0
    %v4261 = vadd.f32 %v4077, %v4260
    %v4262 = vpop.f32.mrf.mxu0
    %v4263 = vadd.f32 %v4079, %v4262
    %4264 = vmatmul.bf16.gmra.mxu0 %v3758
    %v4265 = vpop.f32.mrf.mxu0
    %v4266 = vadd.f32 %v4082, %v4265
    %v4267 = vpop.f32.mrf.mxu0
    %v4268 = vadd.f32 %v4084, %v4267
    %4269 = vmatmul.bf16.gmra.mxu0 %v3761
    %v4270 = vpop.f32.mrf.mxu0
    %v4271 = vadd.f32 %v4087, %v4270
    %v4272 = vpop.f32.mrf.mxu0
    %v4273 = vadd.f32 %v4089, %v4272
    %4274 = vmatmul.bf16.gmra.mxu0 %v3764
    %v4275 = vpop.f32.mrf.mxu0
    %v4276 = vadd.f32 %v4092, %v4275
    %v4277 = vpop.f32.mrf.mxu0
    %v4278 = vadd.f32 %v4094, %v4277
    %4279 = vmatmul.bf16.gmra.mxu0 %v3767
    %v4280 = vpop.f32.mrf.mxu0
    %v4281 = vadd.f32 %v4097, %v4280
    %v4282 = vpop.f32.mrf.mxu0
    %v4283 = vadd.f32 %v4099, %v4282
    %4284 = vmatmul.bf16.gmra.mxu0 %v3770
    %v4285 = vpop.f32.mrf.mxu0
    %v4286 = vadd.f32 %v4102, %v4285
    %v4287 = vpop.f32.mrf.mxu0
    %v4288 = vadd.f32 %v4104, %v4287
    %4289 = vmatmul.bf16.gmra.mxu0 %v3773
    %v4290 = vpop.f32.mrf.mxu0
    %v4291 = vadd.f32 %v4107, %v4290
    %v4292 = vpop.f32.mrf.mxu0
    %v4293 = vadd.f32 %v4109, %v4292
    %4294 = vmatmul.bf16.gmra.mxu0 %v3776
    %v4295 = vpop.f32.mrf.mxu0
    %v4296 = vadd.f32 %v4112, %v4295
    %v4297 = vpop.f32.mrf.mxu0
    %v4298 = vadd.f32 %v4114, %v4297
    %4299 = vmatmul.bf16.gmra.mxu0 %v3779
    %v4300 = vpop.f32.mrf.mxu0
    %v4301 = vadd.f32 %v4117, %v4300
    %v4302 = vpop.f32.mrf.mxu0
    %v4303 = vadd.f32 %v4119, %v4302
    %4304 = vmatmul.bf16.gmra.mxu0 %v3782
    %v4305 = vpop.f32.mrf.mxu0
    %v4306 = vadd.f32 %v4122, %v4305
    %v4307 = vpop.f32.mrf.mxu0
    %v4308 = vadd.f32 %v4124, %v4307
    %4309 = vmatmul.bf16.gmra.mxu0 %v3785
    %v4310 = vpop.f32.mrf.mxu0
    %v4311 = vadd.f32 %v4127, %v4310
    %v4312 = vpop.f32.mrf.mxu0
    %v4313 = vadd.f32 %v4129, %v4312
    %4314 = vmatmul.bf16.gmra.mxu0 %v3788
    %v4315 = vpop.f32.mrf.mxu0
    %v4316 = vadd.f32 %v4132, %v4315
    %v4317 = vpop.f32.mrf.mxu0
    %v4318 = vadd.f32 %v4134, %v4317
    %4319 = vmatmul.bf16.gmra.mxu0 %v3791
    %v4320 = vpop.f32.mrf.mxu0
    %v4321 = vadd.f32 %v4137, %v4320
    %v4322 = vpop.f32.mrf.mxu0
    %v4323 = vadd.f32 %v4139, %v4322
    %4324 = vmatmul.bf16.gmra.mxu0 %v3794
    %v4325 = vpop.f32.mrf.mxu0
    %v4326 = vadd.f32 %v4142, %v4325
    %v4327 = vpop.f32.mrf.mxu0
    %v4328 = vadd.f32 %v4144, %v4327
    %4329 = vmatmul.bf16.gmra.mxu0 %v3797
    %v4330 = vpop.f32.mrf.mxu0
    %v4331 = vadd.f32 %v4147, %v4330
    %v4332 = vpop.f32.mrf.mxu0
    %v4333 = vadd.f32 %v4149, %v4332
    %4334 = vmatmul.bf16.gmra.mxu0 %v3800
    %v4335 = vpop.f32.mrf.mxu0
    %v4336 = vadd.f32 %v4152, %v4335
    %v4337 = vpop.f32.mrf.mxu0
    %v4338 = vadd.f32 %v4154, %v4337
    %4339 = vmatmul.bf16.gmra.mxu0 %v3803
    %v4340 = vpop.f32.mrf.mxu0
    %v4341 = vadd.f32 %v4157, %v4340
    %v4342 = vpop.f32.mrf.mxu0
    %v4343 = vadd.f32 %v4159, %v4342
    %4344 = vmatmul.bf16.gmra.mxu0 %v3806
    %v4345 = vpop.f32.mrf.mxu0
    %v4346 = vadd.f32 %v4162, %v4345
    %v4347 = vpop.f32.mrf.mxu0
    %v4348 = vadd.f32 %v4164, %v4347
    %4349 = vmatmul.bf16.gmra.mxu0 %v3809
    %v4350 = vpop.f32.mrf.mxu0
    %v4351 = vadd.f32 %v4167, %v4350
    %v4352 = vpop.f32.mrf.mxu0
    %v4353 = vadd.f32 %v4169, %v4352
    %4354 = vmatmul.bf16.gmra.mxu0 %v3812
    %v4355 = vpop.f32.mrf.mxu0
    %v4356 = vadd.f32 %v4172, %v4355
    %v4357 = vpop.f32.mrf.mxu0
    %v4358 = vadd.f32 %v4174, %v4357
    %4359 = vmatmul.bf16.gmra.mxu0 %v3815
    %v4360 = vpop.f32.mrf.mxu0
    %v4361 = vadd.f32 %v4177, %v4360
    %v4362 = vpop.f32.mrf.mxu0
    %v4363 = vadd.f32 %v4179, %v4362
    %4364 = vmatmul.bf16.gmra.mxu0 %v3818
    %v4365 = vpop.f32.mrf.mxu0
    %v4366 = vadd.f32 %v4182, %v4365
    %v4367 = vpop.f32.mrf.mxu0
    %v4368 = vadd.f32 %v4184, %v4367
    %4369 = vmatmul.bf16.gmra.mxu0 %v3821
    %v4370 = vpop.f32.mrf.mxu0
    %v4371 = vadd.f32 %v4187, %v4370
    %v4372 = vpop.f32.mrf.mxu0
    %v4373 = vadd.f32 %v4189, %v4372
    %4374 = vdwg.mxu0
    %v4375 = vmax.f32 %v4201, %v4226
    %v4376 = vmax.f32 %v4203, %v4228
    %v4377 = vmax.f32 %v4206, %v4231
    %v4378 = vmax.f32 %v4208, %v4233
    %v4379 = vmax.f32 %v4211, %v4236
    %v4380 = vmax.f32 %v4213, %v4238
    %v4381 = vmax.f32 %v4216, %v4241
    %v4382 = vmax.f32 %v4218, %v4243
    %v4383 = vmax.f32 %v4221, %v4246
    %v4384 = vmax.f32 %v4223, %v4248
    %v4385 = vmax.f32 %v4251, %v4276
    %v4386 = vmax.f32 %v4253, %v4278
    %v4387 = vmax.f32 %v4256, %v4281
    %v4388 = vmax.f32 %v4258, %v4283
    %v4389 = vmax.f32 %v4261, %v4286
    %v4390 = vmax.f32 %v4263, %v4288
    %v4391 = vmax.f32 %v4266, %v4291
    %v4392 = vmax.f32 %v4268, %v4293
    %v4393 = vmax.f32 %v4271, %v4296
    %v4394 = vmax.f32 %v4273, %v4298
    %v4395 = vmax.f32 %v4301, %v4326
    %v4396 = vmax.f32 %v4303, %v4328
    %v4397 = vmax.f32 %v4306, %v4331
    %v4398 = vmax.f32 %v4308, %v4333
    %v4399 = vmax.f32 %v4311, %v4336
    %v4400 = vmax.f32 %v4313, %v4338
    %v4401 = vmax.f32 %v4316, %v4341
    %v4402 = vmax.f32 %v4318, %v4343
    %v4403 = vmax.f32 %v4321, %v4346
    %v4404 = vmax.f32 %v4323, %v4348
    %v4405 = vmax.f32 %v4375, %v4385
    %v4406 = vmax.f32 %v4376, %v4386
    %v4407 = vmax.f32 %v4377, %v4387
    %v4408 = vmax.f32 %v4378, %v4388
    %v4409 = vmax.f32 %v4379, %v4389
    %v4410 = vmax.f32 %v4380, %v4390
    %v4411 = vmax.f32 %v4381, %v4391
    %v4412 = vmax.f32 %v4382, %v4392
    %v4413 = vmax.f32 %v4383, %v4393
    %v4414 = vmax.f32 %v4384, %v4394
    %v4415 = vmax.f32 %v4395, %v4351
    %v4416 = vmax.f32 %v4396, %v4353
    %v4417 = vmax.f32 %v4397, %v4356
    %v4418 = vmax.f32 %v4398, %v4358
    %v4419 = vmax.f32 %v4399, %v4361
    %v4420 = vmax.f32 %v4400, %v4363
    %v4421 = vmax.f32 %v4401, %v4366
    %v4422 = vmax.f32 %v4402, %v4368
    %v4423 = vmax.f32 %v4403, %v4371
    %v4424 = vmax.f32 %v4404, %v4373
    %v4425 = vmax.f32 %v4405, %v4415
    %v4426 = vmax.f32 %v4406, %v4416
    %v4427 = vmax.f32 %v4407, %v4417
    %v4428 = vmax.f32 %v4408, %v4418
    %v4429 = vmax.f32 %v4409, %v4419
    %v4430 = vmax.f32 %v4410, %v4420
    %v4431 = vmax.f32 %v4411, %v4421
    %v4432 = vmax.f32 %v4412, %v4422
    %v4433 = vmax.f32 %v4413, %v4423
    %v4434 = vmax.f32 %v4414, %v4424
    %v4435 = vpack.c.bf16 %v4426, %v4425
    %v4436 = vpack.c.bf16 %v4428, %v4427
    %v4437 = vpack.c.bf16 %v4430, %v4429
    %v4438 = vpack.c.bf16 %v4432, %v4431
    %v4439 = vpack.c.bf16 %v4434, %v4433
    %v4440 = vld [vmem:[%s31] sm:$0xf]
    %vm4441 = vcmask 64512
    %v4443 = vsel %vm4441, %v4435, 0
    %v4446 = vsel %vm4441, %v4436, 0
    %v4449 = vsel %vm4441, %v4437, 0
    %v4452 = vsel %vm4441, %v4438, 0
    %v4455 = vsel %vm4441, %v4439, 0
    %vm4457 = vcmask 1043456
    %v4459 = vsel %vm4457, %v4440, 0
    %4461 = vmatpush.bf16.msra.mxu0 0
    %4462 = vmatpush.bf16.msra.mxu0 0
    %4463 = vmatpush.bf16.msra.mxu0 0
    %4464 = vmatpush.bf16.msra.mxu0 0
    %4465 = vmatpush.bf16.msra.mxu0 0
    %4466 = vmatpush.bf16.msra.mxu0 0
    %4467 = vmatpush.bf16.msra.mxu0 0
    %4468 = vmatpush.bf16.msra.mxu0 %v4459
    %4469 = vmatmul.bf16.gmra.mxu0 %v4443
    %v4470 = vpop.f32.mrf.mxu0
    %v4471 = vadd.f32 0.0, %v4470
    %v4472 = vpop.f32.mrf.mxu0
    %v4473 = vadd.f32 0.0, %v4472
    %4474 = vmatmul.bf16.gmra.mxu0 %v4446
    %v4475 = vpop.f32.mrf.mxu0
    %v4476 = vadd.f32 0.0, %v4475
    %v4477 = vpop.f32.mrf.mxu0
    %v4478 = vadd.f32 0.0, %v4477
    %4479 = vmatmul.bf16.gmra.mxu0 %v4449
    %v4480 = vpop.f32.mrf.mxu0
    %v4481 = vadd.f32 0.0, %v4480
    %v4482 = vpop.f32.mrf.mxu0
    %v4483 = vadd.f32 0.0, %v4482
    %4484 = vmatmul.bf16.gmra.mxu0 %v4452
    %v4485 = vpop.f32.mrf.mxu0
    %v4486 = vadd.f32 0.0, %v4485
    %v4487 = vpop.f32.mrf.mxu0
    %v4488 = vadd.f32 0.0, %v4487
    %4489 = vmatmul.bf16.gmra.mxu0 %v4455
    %v4490 = vpop.f32.mrf.mxu0
    %v4491 = vadd.f32 0.0, %v4490
    %v4492 = vpop.f32.mrf.mxu0
    %v4493 = vadd.f32 0.0, %v4492
    %4494 = vdwg.mxu0
    %v4495 = vld [vmem:[%s29] sm:$0xf]
    %v4496 = vld [vmem:[%s29 + $0x4] sm:$0xf]
    %v4497 = vld [vmem:[%s29 + $0x8] sm:$0xf]
    %v4498 = vld [vmem:[%s29 + $0xc] sm:$0xf]
    %v4499 = vld [vmem:[%s29 + $0x10] sm:$0xf]
    %v4500 = vld [vmem:[%s29 + $0x14] sm:$0xf]
    %v4501 = vld [vmem:[%s29 + $0x18] sm:$0xf]
    %v4502 = vld [vmem:[%s29 + $0x1c] sm:$0xf]
    %v4503 = vld [vmem:[%s29 + $0x20] sm:$0xf]
    %v4504 = vld [vmem:[%s29 + $0x24] sm:$0xf]
    %v4505 = vpack.c.bf16 %v4473, %v4471
    %v4506 = vpack.c.bf16 %v4478, %v4476
    %v4507 = vpack.c.bf16 %v4483, %v4481
    %v4508 = vpack.c.bf16 %v4488, %v4486
    %v4509 = vpack.c.bf16 %v4493, %v4491
    %s4510 = scalar_lea.vmem %s31, 4
    %v4511 = vld [vmem:[%s4510] sm:$0xf]
    %v4513 = vsel %vm4457, %v4511, 0
    %4515 = vmatpush.bf16.msra.mxu0 0
    %4516 = vmatpush.bf16.msra.mxu0 0
    %4517 = vmatpush.bf16.msra.mxu0 0
    %4518 = vmatpush.bf16.msra.mxu0 0
    %4519 = vmatpush.bf16.msra.mxu0 0
    %4520 = vmatpush.bf16.msra.mxu0 0
    %4521 = vmatpush.bf16.msra.mxu0 0
    %4522 = vmatpush.bf16.msra.mxu0 %v4513
    %4523 = vmatmul.bf16.gmra.mxu0 %v4443
    %v4524 = vpop.f32.mrf.mxu0
    %v4525 = vadd.f32 0.0, %v4524
    %v4526 = vpop.f32.mrf.mxu0
    %v4527 = vadd.f32 0.0, %v4526
    %4528 = vmatmul.bf16.gmra.mxu0 %v4446
    %v4529 = vpop.f32.mrf.mxu0
    %v4530 = vadd.f32 0.0, %v4529
    %v4531 = vpop.f32.mrf.mxu0
    %v4532 = vadd.f32 0.0, %v4531
    %4533 = vmatmul.bf16.gmra.mxu0 %v4449
    %v4534 = vpop.f32.mrf.mxu0
    %v4535 = vadd.f32 0.0, %v4534
    %v4536 = vpop.f32.mrf.mxu0
    %v4537 = vadd.f32 0.0, %v4536
    %4538 = vmatmul.bf16.gmra.mxu0 %v4452
    %v4539 = vpop.f32.mrf.mxu0
    %v4540 = vadd.f32 0.0, %v4539
    %v4541 = vpop.f32.mrf.mxu0
    %v4542 = vadd.f32 0.0, %v4541
    %4543 = vmatmul.bf16.gmra.mxu0 %v4455
    %v4544 = vpop.f32.mrf.mxu0
    %v4545 = vadd.f32 0.0, %v4544
    %v4546 = vpop.f32.mrf.mxu0
    %v4547 = vadd.f32 0.0, %v4546
    %4548 = vdwg.mxu0
    %s4549 = scalar_lea.vmem %s29, 40
    %v4550 = vld [vmem:[%s4549] sm:$0xf]
    %v4551 = vld [vmem:[%s4549 + $0x4] sm:$0xf]
    %v4552 = vld [vmem:[%s4549 + $0x8] sm:$0xf]
    %v4553 = vld [vmem:[%s4549 + $0xc] sm:$0xf]
    %v4554 = vld [vmem:[%s4549 + $0x10] sm:$0xf]
    %v4555 = vld [vmem:[%s4549 + $0x14] sm:$0xf]
    %v4556 = vld [vmem:[%s4549 + $0x18] sm:$0xf]
    %v4557 = vld [vmem:[%s4549 + $0x1c] sm:$0xf]
    %v4558 = vld [vmem:[%s4549 + $0x20] sm:$0xf]
    %v4559 = vld [vmem:[%s4549 + $0x24] sm:$0xf]
    %v4560 = vpack.c.bf16 %v4527, %v4525
    %v4561 = vpack.c.bf16 %v4532, %v4530
    %v4562 = vpack.c.bf16 %v4537, %v4535
    %v4563 = vpack.c.bf16 %v4542, %v4540
    %v4564 = vpack.c.bf16 %v4547, %v4545
    %v4575 = vunpack.c.l.b16 %v4550
    %v4576 = vunpack.c.l.b16 %v4551
    %v4577 = vunpack.c.l.b16 %v4552
    %v4578 = vunpack.c.l.b16 %v4553
    %v4579 = vunpack.c.l.b16 %v4554
    %v4580 = vunpack.c.l.b16 %v4555
    %v4581 = vunpack.c.l.b16 %v4556
    %v4582 = vunpack.c.l.b16 %v4557
    %v4583 = vunpack.c.l.b16 %v4558
    %v4584 = vunpack.c.l.b16 %v4559
    %v4585 = vpack.c.b16 %v4576, %v4575
    %v4586 = vpack.c.b16 %v4578, %v4577
    %v4587 = vpack.c.b16 %v4580, %v4579
    %v4588 = vpack.c.b16 %v4582, %v4581
    %v4589 = vpack.c.b16 %v4584, %v4583
    %vm4590 = vcmask 654336
    %v4592 = vsel %vm4590, %v4585, 0
    %v4595 = vsel %vm4590, %v4586, 0
    %v4598 = vsel %vm4590, %v4587, 0
    %v4601 = vsel %vm4590, %v4588, 0
    %v4604 = vsel %vm4590, %v4589, 0
    %4606 = vmatpush.bf16.msra.mxu0 0
    %4607 = vmatpush.bf16.msra.mxu0 0
    %4608 = vmatpush.bf16.msra.mxu0 0
    %4609 = vmatpush.bf16.msra.mxu0 %v4564
    %4610 = vmatpush.bf16.msra.mxu0 %v4563
    %4611 = vmatpush.bf16.msra.mxu0 %v4562
    %4612 = vmatpush.bf16.msra.mxu0 %v4561
    %4613 = vmatpush.bf16.msra.mxu0 %v4560
    %4614 = vmatmul.bf16.gmra.mxu0 %v4592
    %v4615 = vpop.f32.mrf.mxu0
    %v4616 = vadd.f32 0.0, %v4615
    %v4617 = vpop.f32.mrf.mxu0
    %v4618 = vadd.f32 0.0, %v4617
    %4619 = vmatmul.bf16.gmra.mxu0 %v4595
    %v4620 = vpop.f32.mrf.mxu0
    %v4621 = vadd.f32 0.0, %v4620
    %v4622 = vpop.f32.mrf.mxu0
    %v4623 = vadd.f32 0.0, %v4622
    %4624 = vmatmul.bf16.gmra.mxu0 %v4598
    %v4625 = vpop.f32.mrf.mxu0
    %v4626 = vadd.f32 0.0, %v4625
    %v4627 = vpop.f32.mrf.mxu0
    %v4628 = vadd.f32 0.0, %v4627
    %4629 = vmatmul.bf16.gmra.mxu0 %v4601
    %v4630 = vpop.f32.mrf.mxu0
    %v4631 = vadd.f32 0.0, %v4630
    %v4632 = vpop.f32.mrf.mxu0
    %v4633 = vadd.f32 0.0, %v4632
    %4634 = vmatmul.bf16.gmra.mxu0 %v4604
    %v4635 = vpop.f32.mrf.mxu0
    %v4636 = vadd.f32 0.0, %v4635
    %v4637 = vpop.f32.mrf.mxu0
    %v4638 = vadd.f32 0.0, %v4637
    %4639 = vdwg.mxu0
    %v4650 = vunpack.c.l.b16 %v4495
    %v4651 = vunpack.c.l.b16 %v4496
    %v4652 = vunpack.c.l.b16 %v4497
    %v4653 = vunpack.c.l.b16 %v4498
    %v4654 = vunpack.c.l.b16 %v4499
    %v4655 = vunpack.c.l.b16 %v4500
    %v4656 = vunpack.c.l.b16 %v4501
    %v4657 = vunpack.c.l.b16 %v4502
    %v4658 = vunpack.c.l.b16 %v4503
    %v4659 = vunpack.c.l.b16 %v4504
    %v4660 = vpack.c.b16 %v4651, %v4650
    %v4661 = vpack.c.b16 %v4653, %v4652
    %v4662 = vpack.c.b16 %v4655, %v4654
    %v4663 = vpack.c.b16 %v4657, %v4656
    %v4664 = vpack.c.b16 %v4659, %v4658
    %v4666 = vsel %vm4590, %v4660, 0
    %v4669 = vsel %vm4590, %v4661, 0
    %v4672 = vsel %vm4590, %v4662, 0
    %v4675 = vsel %vm4590, %v4663, 0
    %v4678 = vsel %vm4590, %v4664, 0
    %4680 = vmatpush.bf16.msra.mxu0 0
    %4681 = vmatpush.bf16.msra.mxu0 0
    %4682 = vmatpush.bf16.msra.mxu0 0
    %4683 = vmatpush.bf16.msra.mxu0 %v4509
    %4684 = vmatpush.bf16.msra.mxu0 %v4508
    %4685 = vmatpush.bf16.msra.mxu0 %v4507
    %4686 = vmatpush.bf16.msra.mxu0 %v4506
    %4687 = vmatpush.bf16.msra.mxu0 %v4505
    %4688 = vmatmul.bf16.gmra.mxu0 %v4666
    %v4689 = vpop.f32.mrf.mxu0
    %v4690 = vadd.f32 %v4616, %v4689
    %v4691 = vpop.f32.mrf.mxu0
    %v4692 = vadd.f32 %v4618, %v4691
    %4693 = vmatmul.bf16.gmra.mxu0 %v4669
    %v4694 = vpop.f32.mrf.mxu0
    %v4695 = vadd.f32 %v4621, %v4694
    %v4696 = vpop.f32.mrf.mxu0
    %v4697 = vadd.f32 %v4623, %v4696
    %4698 = vmatmul.bf16.gmra.mxu0 %v4672
    %v4699 = vpop.f32.mrf.mxu0
    %v4700 = vadd.f32 %v4626, %v4699
    %v4701 = vpop.f32.mrf.mxu0
    %v4702 = vadd.f32 %v4628, %v4701
    %4703 = vmatmul.bf16.gmra.mxu0 %v4675
    %v4704 = vpop.f32.mrf.mxu0
    %v4705 = vadd.f32 %v4631, %v4704
    %v4706 = vpop.f32.mrf.mxu0
    %v4707 = vadd.f32 %v4633, %v4706
    %4708 = vmatmul.bf16.gmra.mxu0 %v4678
    %v4709 = vpop.f32.mrf.mxu0
    %v4710 = vadd.f32 %v4636, %v4709
    %v4711 = vpop.f32.mrf.mxu0
    %v4712 = vadd.f32 %v4638, %v4711
    %4713 = vdwg.mxu0
    %s4714 = scalar_lea.vmem %s31, 8
    %v4715 = vld [vmem:[%s4714] sm:$0xf]
    %v4717 = vsel %vm4457, %v4715, 0
    %4719 = vmatpush.bf16.msra.mxu0 0
    %4720 = vmatpush.bf16.msra.mxu0 0
    %4721 = vmatpush.bf16.msra.mxu0 0
    %4722 = vmatpush.bf16.msra.mxu0 0
    %4723 = vmatpush.bf16.msra.mxu0 0
    %4724 = vmatpush.bf16.msra.mxu0 0
    %4725 = vmatpush.bf16.msra.mxu0 0
    %4726 = vmatpush.bf16.msra.mxu0 %v4717
    %4727 = vmatmul.bf16.gmra.mxu0 %v4443
    %v4728 = vpop.f32.mrf.mxu0
    %v4729 = vadd.f32 0.0, %v4728
    %v4730 = vpop.f32.mrf.mxu0
    %v4731 = vadd.f32 0.0, %v4730
    %4732 = vmatmul.bf16.gmra.mxu0 %v4446
    %v4733 = vpop.f32.mrf.mxu0
    %v4734 = vadd.f32 0.0, %v4733
    %v4735 = vpop.f32.mrf.mxu0
    %v4736 = vadd.f32 0.0, %v4735
    %4737 = vmatmul.bf16.gmra.mxu0 %v4449
    %v4738 = vpop.f32.mrf.mxu0
    %v4739 = vadd.f32 0.0, %v4738
    %v4740 = vpop.f32.mrf.mxu0
    %v4741 = vadd.f32 0.0, %v4740
    %4742 = vmatmul.bf16.gmra.mxu0 %v4452
    %v4743 = vpop.f32.mrf.mxu0
    %v4744 = vadd.f32 0.0, %v4743
    %v4745 = vpop.f32.mrf.mxu0
    %v4746 = vadd.f32 0.0, %v4745
    %4747 = vmatmul.bf16.gmra.mxu0 %v4455
    %v4748 = vpop.f32.mrf.mxu0
    %v4749 = vadd.f32 0.0, %v4748
    %v4750 = vpop.f32.mrf.mxu0
    %v4751 = vadd.f32 0.0, %v4750
    %4752 = vdwg.mxu0
    %s4753 = scalar_lea.vmem %s29, 80
    %v4754 = vld [vmem:[%s4753] sm:$0xf]
    %v4755 = vld [vmem:[%s4753 + $0x4] sm:$0xf]
    %v4756 = vld [vmem:[%s4753 + $0x8] sm:$0xf]
    %v4757 = vld [vmem:[%s4753 + $0xc] sm:$0xf]
    %v4758 = vld [vmem:[%s4753 + $0x10] sm:$0xf]
    %v4759 = vld [vmem:[%s4753 + $0x14] sm:$0xf]
    %v4760 = vld [vmem:[%s4753 + $0x18] sm:$0xf]
    %v4761 = vld [vmem:[%s4753 + $0x1c] sm:$0xf]
    %v4762 = vld [vmem:[%s4753 + $0x20] sm:$0xf]
    %v4763 = vld [vmem:[%s4753 + $0x24] sm:$0xf]
    %v4764 = vpack.c.bf16 %v4731, %v4729
    %v4765 = vpack.c.bf16 %v4736, %v4734
    %v4766 = vpack.c.bf16 %v4741, %v4739
    %v4767 = vpack.c.bf16 %v4746, %v4744
    %v4768 = vpack.c.bf16 %v4751, %v4749
    %v4779 = vunpack.c.l.b16 %v4754
    %v4780 = vunpack.c.l.b16 %v4755
    %v4781 = vunpack.c.l.b16 %v4756
    %v4782 = vunpack.c.l.b16 %v4757
    %v4783 = vunpack.c.l.b16 %v4758
    %v4784 = vunpack.c.l.b16 %v4759
    %v4785 = vunpack.c.l.b16 %v4760
    %v4786 = vunpack.c.l.b16 %v4761
    %v4787 = vunpack.c.l.b16 %v4762
    %v4788 = vunpack.c.l.b16 %v4763
    %v4789 = vpack.c.b16 %v4780, %v4779
    %v4790 = vpack.c.b16 %v4782, %v4781
    %v4791 = vpack.c.b16 %v4784, %v4783
    %v4792 = vpack.c.b16 %v4786, %v4785
    %v4793 = vpack.c.b16 %v4788, %v4787
    %v4795 = vsel %vm4590, %v4789, 0
    %v4798 = vsel %vm4590, %v4790, 0
    %v4801 = vsel %vm4590, %v4791, 0
    %v4804 = vsel %vm4590, %v4792, 0
    %v4807 = vsel %vm4590, %v4793, 0
    %4809 = vmatpush.bf16.msra.mxu0 0
    %4810 = vmatpush.bf16.msra.mxu0 0
    %4811 = vmatpush.bf16.msra.mxu0 0
    %4812 = vmatpush.bf16.msra.mxu0 %v4768
    %4813 = vmatpush.bf16.msra.mxu0 %v4767
    %4814 = vmatpush.bf16.msra.mxu0 %v4766
    %4815 = vmatpush.bf16.msra.mxu0 %v4765
    %4816 = vmatpush.bf16.msra.mxu0 %v4764
    %4817 = vmatmul.bf16.gmra.mxu0 %v4795
    %v4818 = vpop.f32.mrf.mxu0
    %v4819 = vadd.f32 0.0, %v4818
    %v4820 = vpop.f32.mrf.mxu0
    %v4821 = vadd.f32 0.0, %v4820
    %4822 = vmatmul.bf16.gmra.mxu0 %v4798
    %v4823 = vpop.f32.mrf.mxu0
    %v4824 = vadd.f32 0.0, %v4823
    %v4825 = vpop.f32.mrf.mxu0
    %v4826 = vadd.f32 0.0, %v4825
    %4827 = vmatmul.bf16.gmra.mxu0 %v4801
    %v4828 = vpop.f32.mrf.mxu0
    %v4829 = vadd.f32 0.0, %v4828
    %v4830 = vpop.f32.mrf.mxu0
    %v4831 = vadd.f32 0.0, %v4830
    %4832 = vmatmul.bf16.gmra.mxu0 %v4804
    %v4833 = vpop.f32.mrf.mxu0
    %v4834 = vadd.f32 0.0, %v4833
    %v4835 = vpop.f32.mrf.mxu0
    %v4836 = vadd.f32 0.0, %v4835
    %4837 = vmatmul.bf16.gmra.mxu0 %v4807
    %v4838 = vpop.f32.mrf.mxu0
    %v4839 = vadd.f32 0.0, %v4838
    %v4840 = vpop.f32.mrf.mxu0
    %v4841 = vadd.f32 0.0, %v4840
    %4842 = vdwg.mxu0
    %v4843 = vadd.f32 %v4690, %v4819
    %v4844 = vadd.f32 %v4692, %v4821
    %v4845 = vadd.f32 %v4695, %v4824
    %v4846 = vadd.f32 %v4697, %v4826
    %v4847 = vadd.f32 %v4700, %v4829
    %v4848 = vadd.f32 %v4702, %v4831
    %v4849 = vadd.f32 %v4705, %v4834
    %v4850 = vadd.f32 %v4707, %v4836
    %v4851 = vadd.f32 %v4710, %v4839
    %v4852 = vadd.f32 %v4712, %v4841
    %v4853 = vld [vmem:[%s37] sm:$0xff]
    %v4854 = vld [vmem:[%s37 + $0x8] sm:$0xff]
    %v4855 = vld [vmem:[%s37 + $0x10] sm:$0xff]
    %v4856 = vld [vmem:[%s37 + $0x18] sm:$0xff]
    %v4857 = vld [vmem:[%s37 + $0x20] sm:$0xff]
    %v4858 = vld [vmem:[%s37 + $0x28] sm:$0xff]
    %v4859 = vld [vmem:[%s37 + $0x30] sm:$0xff]
    %v4860 = vld [vmem:[%s37 + $0x38] sm:$0xff]
    %v4861 = vld [vmem:[%s37 + $0x40] sm:$0xff]
    %v4862 = vld [vmem:[%s37 + $0x48] sm:$0xff]
    %4864 = vset.pattern.permute.xlu0 0
    %4865 = vperm.xlu0 %4864, %v4853
    %v4866 = vpop.permute.xlu0 %4865
    %4869 = vset.pattern.permute.xlu0 0
    %4870 = vperm.xlu0 %4869, %v4854
    %v4871 = vpop.permute.xlu0 %4870
    %4874 = vset.pattern.permute.xlu0 0
    %4875 = vperm.xlu0 %4874, %v4855
    %v4876 = vpop.permute.xlu0 %4875
    %4879 = vset.pattern.permute.xlu0 0
    %4880 = vperm.xlu0 %4879, %v4856
    %v4881 = vpop.permute.xlu0 %4880
    %4884 = vset.pattern.permute.xlu0 0
    %4885 = vperm.xlu0 %4884, %v4857
    %v4886 = vpop.permute.xlu0 %4885
    %4889 = vset.pattern.permute.xlu0 0
    %4890 = vperm.xlu0 %4889, %v4858
    %v4891 = vpop.permute.xlu0 %4890
    %4894 = vset.pattern.permute.xlu0 0
    %4895 = vperm.xlu0 %4894, %v4859
    %v4896 = vpop.permute.xlu0 %4895
    %4899 = vset.pattern.permute.xlu0 0
    %4900 = vperm.xlu0 %4899, %v4860
    %v4901 = vpop.permute.xlu0 %4900
    %4904 = vset.pattern.permute.xlu0 0
    %4905 = vperm.xlu0 %4904, %v4861
    %v4906 = vpop.permute.xlu0 %4905
    %4909 = vset.pattern.permute.xlu0 0
    %4910 = vperm.xlu0 %4909, %v4862
    %v4911 = vpop.permute.xlu0 %4910
    %v4913 = vmul.f32 %v4843, %v4866
    %v4914 = vmul.f32 %v4844, %v4871
    %v4915 = vmul.f32 %v4845, %v4876
    %v4916 = vmul.f32 %v4846, %v4881
    %v4917 = vmul.f32 %v4847, %v4886
    %v4918 = vmul.f32 %v4848, %v4891
    %v4919 = vmul.f32 %v4849, %v4896
    %v4920 = vmul.f32 %v4850, %v4901
    %v4921 = vmul.f32 %v4851, %v4906
    %v4922 = vmul.f32 %v4852, %v4911
    %v4923 = vld [vmem:[%s33] sm:$0xf]
    %v4925 = vsel %vm4457, %v4923, 0
    %4927 = vmatpush.bf16.msra.mxu0 0
    %4928 = vmatpush.bf16.msra.mxu0 0
    %4929 = vmatpush.bf16.msra.mxu0 0
    %4930 = vmatpush.bf16.msra.mxu0 0
    %4931 = vmatpush.bf16.msra.mxu0 0
    %4932 = vmatpush.bf16.msra.mxu0 0
    %4933 = vmatpush.bf16.msra.mxu0 0
    %4934 = vmatpush.bf16.msra.mxu0 %v4925
    %4935 = vmatmul.bf16.gmra.mxu0 %v4443
    %v4936 = vpop.f32.mrf.mxu0
    %v4937 = vadd.f32 0.0, %v4936
    %v4938 = vpop.f32.mrf.mxu0
    %v4939 = vadd.f32 0.0, %v4938
    %4940 = vmatmul.bf16.gmra.mxu0 %v4446
    %v4941 = vpop.f32.mrf.mxu0
    %v4942 = vadd.f32 0.0, %v4941
    %v4943 = vpop.f32.mrf.mxu0
    %v4944 = vadd.f32 0.0, %v4943
    %4945 = vmatmul.bf16.gmra.mxu0 %v4449
    %v4946 = vpop.f32.mrf.mxu0
    %v4947 = vadd.f32 0.0, %v4946
    %v4948 = vpop.f32.mrf.mxu0
    %v4949 = vadd.f32 0.0, %v4948
    %4950 = vmatmul.bf16.gmra.mxu0 %v4452
    %v4951 = vpop.f32.mrf.mxu0
    %v4952 = vadd.f32 0.0, %v4951
    %v4953 = vpop.f32.mrf.mxu0
    %v4954 = vadd.f32 0.0, %v4953
    %4955 = vmatmul.bf16.gmra.mxu0 %v4455
    %v4956 = vpop.f32.mrf.mxu0
    %v4957 = vadd.f32 0.0, %v4956
    %v4958 = vpop.f32.mrf.mxu0
    %v4959 = vadd.f32 0.0, %v4958
    %4960 = vdwg.mxu0
    %v4961 = vadd.f32 %v4913, %v4937
    %v4962 = vadd.f32 %v4914, %v4939
    %v4963 = vadd.f32 %v4915, %v4942
    %v4964 = vadd.f32 %v4916, %v4944
    %v4965 = vadd.f32 %v4917, %v4947
    %v4966 = vadd.f32 %v4918, %v4949
    %v4967 = vadd.f32 %v4919, %v4952
    %v4968 = vadd.f32 %v4920, %v4954
    %v4969 = vadd.f32 %v4921, %v4957
    %v4970 = vadd.f32 %v4922, %v4959
    %v4971 = vld [vmem:[%s35] sm:$0x1]
    %v4973 = vperm.slane %v4971, 0
    %v4975 = vadd.f32 %v4961, %v4973
    %v4976 = vadd.f32 %v4962, %v4973
    %v4977 = vadd.f32 %v4963, %v4973
    %v4978 = vadd.f32 %v4964, %v4973
    %v4979 = vadd.f32 %v4965, %v4973
    %v4980 = vadd.f32 %v4966, %v4973
    %v4981 = vadd.f32 %v4967, %v4973
    %v4982 = vadd.f32 %v4968, %v4973
    %v4983 = vadd.f32 %v4969, %v4973
    %v4984 = vadd.f32 %v4970, %v4973
    %v4985 = vmax.f32 %v4975, 0.0
    %v4986 = vmax.f32 %v4976, 0.0
    %v4987 = vmax.f32 %v4977, 0.0
    %v4988 = vmax.f32 %v4978, 0.0
    %v4989 = vmax.f32 %v4979, 0.0
    %v4990 = vmax.f32 %v4980, 0.0
    %v4991 = vmax.f32 %v4981, 0.0
    %v4992 = vmax.f32 %v4982, 0.0
    %v4993 = vmax.f32 %v4983, 0.0
    %v4994 = vmax.f32 %v4984, 0.0
    %v4995 = vld [vmem:[%s39] sm:$0xf]
    %v4996 = vld [vmem:[%s39 + $0x4] sm:$0xf]
    %v4997 = vld [vmem:[%s39 + $0x8] sm:$0xf]
    %v4998 = vld [vmem:[%s39 + $0xc] sm:$0xf]
    %v4999 = vld [vmem:[%s39 + $0x10] sm:$0xf]
    %v5000 = vld [vmem:[%s39 + $0x14] sm:$0xf]
    %v5001 = vld [vmem:[%s39 + $0x18] sm:$0xf]
    %v5002 = vld [vmem:[%s39 + $0x1c] sm:$0xf]
    %v5003 = vld [vmem:[%s39 + $0x20] sm:$0xf]
    %v5004 = vld [vmem:[%s39 + $0x24] sm:$0xf]
    %v5005 = vld [vmem:[%s39 + $0x28] sm:$0xf]
    %v5006 = vld [vmem:[%s39 + $0x2c] sm:$0xf]
    %v5007 = vld [vmem:[%s39 + $0x30] sm:$0xf]
    %v5008 = vld [vmem:[%s39 + $0x34] sm:$0xf]
    %v5009 = vld [vmem:[%s39 + $0x38] sm:$0xf]
    %v5010 = vld [vmem:[%s39 + $0x3c] sm:$0xf]
    %v5011 = vld [vmem:[%s39 + $0x40] sm:$0xf]
    %v5012 = vld [vmem:[%s39 + $0x44] sm:$0xf]
    %v5013 = vld [vmem:[%s39 + $0x48] sm:$0xf]
    %v5014 = vld [vmem:[%s39 + $0x4c] sm:$0xf]
    %v5015 = vld [vmem:[%s39 + $0x50] sm:$0xf]
    %v5016 = vld [vmem:[%s39 + $0x54] sm:$0xf]
    %v5017 = vld [vmem:[%s39 + $0x58] sm:$0xf]
    %v5018 = vld [vmem:[%s39 + $0x5c] sm:$0xf]
    %v5019 = vld [vmem:[%s39 + $0x60] sm:$0xf]
    %v5020 = vld [vmem:[%s39 + $0x64] sm:$0xf]
    %v5021 = vld [vmem:[%s39 + $0x68] sm:$0xf]
    %v5022 = vld [vmem:[%s39 + $0x6c] sm:$0xf]
    %v5023 = vpack.c.bf16 %v4986, %v4985
    %v5024 = vpack.c.bf16 %v4988, %v4987
    %v5025 = vpack.c.bf16 %v4990, %v4989
    %v5026 = vpack.c.bf16 %v4992, %v4991
    %v5027 = vpack.c.bf16 %v4994, %v4993
    %v5056 = vunpack.c.l.b16 %v4995
    %v5057 = vunpack.c.l.b16 %v4996
    %v5058 = vunpack.c.l.b16 %v4997
    %v5059 = vunpack.c.l.b16 %v4998
    %v5060 = vunpack.c.l.b16 %v4999
    %v5061 = vunpack.c.l.b16 %v5000
    %v5062 = vunpack.c.l.b16 %v5001
    %v5063 = vunpack.c.l.b16 %v5002
    %v5064 = vunpack.c.l.b16 %v5003
    %v5065 = vunpack.c.l.b16 %v5004
    %v5066 = vunpack.c.l.b16 %v5005
    %v5067 = vunpack.c.l.b16 %v5006
    %v5068 = vunpack.c.l.b16 %v5007
    %v5069 = vunpack.c.l.b16 %v5008
    %v5070 = vunpack.c.l.b16 %v5009
    %v5071 = vunpack.c.l.b16 %v5010
    %v5072 = vunpack.c.l.b16 %v5011
    %v5073 = vunpack.c.l.b16 %v5012
    %v5074 = vunpack.c.l.b16 %v5013
    %v5075 = vunpack.c.l.b16 %v5014
    %v5076 = vunpack.c.l.b16 %v5015
    %v5077 = vunpack.c.l.b16 %v5016
    %v5078 = vunpack.c.l.b16 %v5017
    %v5079 = vunpack.c.l.b16 %v5018
    %v5080 = vunpack.c.l.b16 %v5019
    %v5081 = vunpack.c.l.b16 %v5020
    %v5082 = vunpack.c.l.b16 %v5021
    %v5083 = vunpack.c.l.b16 %v5022
    %v5084 = vpack.c.b16 %v5057, %v5056
    %v5085 = vpack.c.b16 %v5059, %v5058
    %v5086 = vpack.c.b16 %v5061, %v5060
    %v5087 = vpack.c.b16 %v5063, %v5062
    %v5088 = vpack.c.b16 %v5065, %v5064
    %v5089 = vpack.c.b16 %v5067, %v5066
    %v5090 = vpack.c.b16 %v5069, %v5068
    %v5091 = vpack.c.b16 %v5071, %v5070
    %v5092 = vpack.c.b16 %v5073, %v5072
    %v5093 = vpack.c.b16 %v5075, %v5074
    %v5094 = vpack.c.b16 %v5077, %v5076
    %v5095 = vpack.c.b16 %v5079, %v5078
    %v5096 = vpack.c.b16 %v5081, %v5080
    %v5097 = vpack.c.b16 %v5083, %v5082
    %v5099 = vsel %vm4590, %v5084, 0
    %v5102 = vsel %vm4590, %v5085, 0
    %v5105 = vsel %vm4590, %v5086, 0
    %v5108 = vsel %vm4590, %v5087, 0
    %v5111 = vsel %vm4590, %v5088, 0
    %v5114 = vsel %vm4590, %v5089, 0
    %v5117 = vsel %vm4590, %v5090, 0
    %v5120 = vsel %vm4590, %v5091, 0
    %v5123 = vsel %vm4590, %v5092, 0
    %v5126 = vsel %vm4590, %v5093, 0
    %v5129 = vsel %vm4590, %v5094, 0
    %v5132 = vsel %vm4590, %v5095, 0
    %v5135 = vsel %vm4590, %v5096, 0
    %v5138 = vsel %vm4590, %v5097, 0
    %5140 = vmatpush.bf16.msra.mxu0 0
    %5141 = vmatpush.bf16.msra.mxu0 0
    %5142 = vmatpush.bf16.msra.mxu0 0
    %5143 = vmatpush.bf16.msra.mxu0 %v5027
    %5144 = vmatpush.bf16.msra.mxu0 %v5026
    %5145 = vmatpush.bf16.msra.mxu0 %v5025
    %5146 = vmatpush.bf16.msra.mxu0 %v5024
    %5147 = vmatpush.bf16.msra.mxu0 %v5023
    %5148 = vmatmul.bf16.gmra.mxu0 %v5099
    %v5149 = vpop.f32.mrf.mxu0
    %v5150 = vadd.f32 0.0, %v5149
    %v5151 = vpop.f32.mrf.mxu0
    %v5152 = vadd.f32 0.0, %v5151
    %5153 = vmatmul.bf16.gmra.mxu0 %v5102
    %v5154 = vpop.f32.mrf.mxu0
    %v5155 = vadd.f32 0.0, %v5154
    %v5156 = vpop.f32.mrf.mxu0
    %v5157 = vadd.f32 0.0, %v5156
    %5158 = vmatmul.bf16.gmra.mxu0 %v5105
    %v5159 = vpop.f32.mrf.mxu0
    %v5160 = vadd.f32 0.0, %v5159
    %v5161 = vpop.f32.mrf.mxu0
    %v5162 = vadd.f32 0.0, %v5161
    %5163 = vmatmul.bf16.gmra.mxu0 %v5108
    %v5164 = vpop.f32.mrf.mxu0
    %v5165 = vadd.f32 0.0, %v5164
    %v5166 = vpop.f32.mrf.mxu0
    %v5167 = vadd.f32 0.0, %v5166
    %5168 = vmatmul.bf16.gmra.mxu0 %v5111
    %v5169 = vpop.f32.mrf.mxu0
    %v5170 = vadd.f32 0.0, %v5169
    %v5171 = vpop.f32.mrf.mxu0
    %v5172 = vadd.f32 0.0, %v5171
    %5173 = vmatmul.bf16.gmra.mxu0 %v5114
    %v5174 = vpop.f32.mrf.mxu0
    %v5175 = vadd.f32 0.0, %v5174
    %v5176 = vpop.f32.mrf.mxu0
    %v5177 = vadd.f32 0.0, %v5176
    %5178 = vmatmul.bf16.gmra.mxu0 %v5117
    %v5179 = vpop.f32.mrf.mxu0
    %v5180 = vadd.f32 0.0, %v5179
    %v5181 = vpop.f32.mrf.mxu0
    %v5182 = vadd.f32 0.0, %v5181
    %5183 = vmatmul.bf16.gmra.mxu0 %v5120
    %v5184 = vpop.f32.mrf.mxu0
    %v5185 = vadd.f32 0.0, %v5184
    %v5186 = vpop.f32.mrf.mxu0
    %v5187 = vadd.f32 0.0, %v5186
    %5188 = vmatmul.bf16.gmra.mxu0 %v5123
    %v5189 = vpop.f32.mrf.mxu0
    %v5190 = vadd.f32 0.0, %v5189
    %v5191 = vpop.f32.mrf.mxu0
    %v5192 = vadd.f32 0.0, %v5191
    %5193 = vmatmul.bf16.gmra.mxu0 %v5126
    %v5194 = vpop.f32.mrf.mxu0
    %v5195 = vadd.f32 0.0, %v5194
    %v5196 = vpop.f32.mrf.mxu0
    %v5197 = vadd.f32 0.0, %v5196
    %5198 = vmatmul.bf16.gmra.mxu0 %v5129
    %v5199 = vpop.f32.mrf.mxu0
    %v5200 = vadd.f32 0.0, %v5199
    %v5201 = vpop.f32.mrf.mxu0
    %v5202 = vadd.f32 0.0, %v5201
    %5203 = vmatmul.bf16.gmra.mxu0 %v5132
    %v5204 = vpop.f32.mrf.mxu0
    %v5205 = vadd.f32 0.0, %v5204
    %v5206 = vpop.f32.mrf.mxu0
    %v5207 = vadd.f32 0.0, %v5206
    %5208 = vmatmul.bf16.gmra.mxu0 %v5135
    %v5209 = vpop.f32.mrf.mxu0
    %v5210 = vadd.f32 0.0, %v5209
    %v5211 = vpop.f32.mrf.mxu0
    %v5212 = vadd.f32 0.0, %v5211
    %5213 = vmatmul.bf16.gmra.mxu0 %v5138
    %v5214 = vpop.f32.mrf.mxu0
    %v5215 = vadd.f32 0.0, %v5214
    %v5216 = vpop.f32.mrf.mxu0
    %v5217 = vadd.f32 0.0, %v5216
    %5218 = vdwg.mxu0
    %v5219 = vmax.f32 %v5150, %v5160
    %v5220 = vmax.f32 %v5152, %v5162
    %v5221 = vmax.f32 %v5155, %v5165
    %v5222 = vmax.f32 %v5157, %v5167
    %v5223 = vmax.f32 %v5170, %v5180
    %v5224 = vmax.f32 %v5172, %v5182
    %v5225 = vmax.f32 %v5175, %v5185
    %v5226 = vmax.f32 %v5177, %v5187
    %v5227 = vmax.f32 %v5190, %v5200
    %v5228 = vmax.f32 %v5192, %v5202
    %v5229 = vmax.f32 %v5195, %v5205
    %v5230 = vmax.f32 %v5197, %v5207
    %v5231 = vmax.f32 %v5219, %v5223
    %v5232 = vmax.f32 %v5220, %v5224
    %v5233 = vmax.f32 %v5221, %v5225
    %v5234 = vmax.f32 %v5222, %v5226
    %v5235 = vmax.f32 %v5227, %v5210
    %v5236 = vmax.f32 %v5228, %v5212
    %v5237 = vmax.f32 %v5229, %v5215
    %v5238 = vmax.f32 %v5230, %v5217
    %v5239 = vmax.f32 %v5231, %v5235
    %v5240 = vmax.f32 %v5232, %v5236
    %v5241 = vmax.f32 %v5233, %v5237
    %v5242 = vmax.f32 %v5234, %v5238
    %v5243 = vpack.c.bf16 %v5240, %v5239
    %v5244 = vpack.c.bf16 %v5242, %v5241
    %v5245 = vld [vmem:[%s43] sm:$0xf]
    %v5246 = vld [vmem:[%s43 + $0x4] sm:$0xf]
    %v5249 = vunpack.c.l.b16 %v5245
    %v5250 = vunpack.c.l.b16 %v5246
    %v5251 = vpack.c.b16 %v5250, %v5249
    %v5254 = vsel %vm865, %v5243, 0
    %v5257 = vsel %vm865, %v5244, 0
    %5259 = vmatpush.bf16.msra.mxu0 0
    %5260 = vmatpush.bf16.msra.mxu0 0
    %5261 = vmatpush.bf16.msra.mxu0 0
    %5262 = vmatpush.bf16.msra.mxu0 0
    %5263 = vmatpush.bf16.msra.mxu0 0
    %5264 = vmatpush.bf16.msra.mxu0 0
    %5265 = vmatpush.bf16.msra.mxu0 0
    %5266 = vmatpush.bf16.msra.mxu0 %v5251
    %5267 = vmatmul.bf16.gmra.mxu0 %v5254
    %v5268 = vpop.f32.mrf.mxu0
    %v5269 = vadd.f32 0.0, %v5268
    %v5270 = vpop.f32.mrf.mxu0
    %v5271 = vadd.f32 0.0, %v5270
    %5272 = vmatmul.bf16.gmra.mxu0 %v5257
    %v5273 = vpop.f32.mrf.mxu0
    %v5274 = vadd.f32 0.0, %v5273
    %v5275 = vpop.f32.mrf.mxu0
    %v5276 = vadd.f32 0.0, %v5275
    %5277 = vdwg.mxu0
    %v5278 = vld [vmem:[%s41] sm:$0xf]
    %v5279 = vld [vmem:[%s41 + $0x4] sm:$0xf]
    %v5280 = vld [vmem:[%s41 + $0x8] sm:$0xf]
    %v5281 = vld [vmem:[%s41 + $0xc] sm:$0xf]
    %v5282 = vpack.c.bf16 %v5271, %v5269
    %v5283 = vpack.c.bf16 %v5276, %v5274
    %s5284 = scalar_lea.vmem %s43, 8
    %v5285 = vld [vmem:[%s5284] sm:$0xf]
    %v5286 = vld [vmem:[%s5284 + $0x4] sm:$0xf]
    %v5289 = vunpack.c.l.b16 %v5285
    %v5290 = vunpack.c.l.b16 %v5286
    %v5291 = vpack.c.b16 %v5290, %v5289
    %5293 = vmatpush.bf16.msra.mxu0 0
    %5294 = vmatpush.bf16.msra.mxu0 0
    %5295 = vmatpush.bf16.msra.mxu0 0
    %5296 = vmatpush.bf16.msra.mxu0 0
    %5297 = vmatpush.bf16.msra.mxu0 0
    %5298 = vmatpush.bf16.msra.mxu0 0
    %5299 = vmatpush.bf16.msra.mxu0 0
    %5300 = vmatpush.bf16.msra.mxu0 %v5291
    %5301 = vmatmul.bf16.gmra.mxu0 %v5254
    %v5302 = vpop.f32.mrf.mxu0
    %v5303 = vadd.f32 0.0, %v5302
    %v5304 = vpop.f32.mrf.mxu0
    %v5305 = vadd.f32 0.0, %v5304
    %5306 = vmatmul.bf16.gmra.mxu0 %v5257
    %v5307 = vpop.f32.mrf.mxu0
    %v5308 = vadd.f32 0.0, %v5307
    %v5309 = vpop.f32.mrf.mxu0
    %v5310 = vadd.f32 0.0, %v5309
    %5311 = vdwg.mxu0
    %s5312 = scalar_lea.vmem %s41, 16
    %v5313 = vld [vmem:[%s5312] sm:$0xf]
    %v5314 = vld [vmem:[%s5312 + $0x4] sm:$0xf]
    %v5315 = vld [vmem:[%s5312 + $0x8] sm:$0xf]
    %v5316 = vld [vmem:[%s5312 + $0xc] sm:$0xf]
    %v5317 = vpack.c.bf16 %v5305, %v5303
    %v5318 = vpack.c.bf16 %v5310, %v5308
    %v5323 = vunpack.c.l.b16 %v5313
    %v5324 = vunpack.c.l.b16 %v5314
    %v5325 = vunpack.c.l.b16 %v5315
    %v5326 = vunpack.c.l.b16 %v5316
    %v5327 = vpack.c.b16 %v5324, %v5323
    %v5328 = vpack.c.b16 %v5326, %v5325
    %vm5329 = vcmask 261120
    %v5331 = vsel %vm5329, %v5327, 0
    %v5334 = vsel %vm5329, %v5328, 0
    %5336 = vmatpush.bf16.msra.mxu0 0
    %5337 = vmatpush.bf16.msra.mxu0 0
    %5338 = vmatpush.bf16.msra.mxu0 0
    %5339 = vmatpush.bf16.msra.mxu0 0
    %5340 = vmatpush.bf16.msra.mxu0 0
    %5341 = vmatpush.bf16.msra.mxu0 0
    %5342 = vmatpush.bf16.msra.mxu0 %v5318
    %5343 = vmatpush.bf16.msra.mxu0 %v5317
    %5344 = vmatmul.bf16.gmra.mxu0 %v5331
    %v5345 = vpop.f32.mrf.mxu0
    %v5346 = vadd.f32 0.0, %v5345
    %v5347 = vpop.f32.mrf.mxu0
    %v5348 = vadd.f32 0.0, %v5347
    %5349 = vmatmul.bf16.gmra.mxu0 %v5334
    %v5350 = vpop.f32.mrf.mxu0
    %v5351 = vadd.f32 0.0, %v5350
    %v5352 = vpop.f32.mrf.mxu0
    %v5353 = vadd.f32 0.0, %v5352
    %5354 = vdwg.mxu0
    %v5359 = vunpack.c.l.b16 %v5278
    %v5360 = vunpack.c.l.b16 %v5279
    %v5361 = vunpack.c.l.b16 %v5280
    %v5362 = vunpack.c.l.b16 %v5281
    %v5363 = vpack.c.b16 %v5360, %v5359
    %v5364 = vpack.c.b16 %v5362, %v5361
    %v5366 = vsel %vm5329, %v5363, 0
    %v5369 = vsel %vm5329, %v5364, 0
    %5371 = vmatpush.bf16.msra.mxu0 0
    %5372 = vmatpush.bf16.msra.mxu0 0
    %5373 = vmatpush.bf16.msra.mxu0 0
    %5374 = vmatpush.bf16.msra.mxu0 0
    %5375 = vmatpush.bf16.msra.mxu0 0
    %5376 = vmatpush.bf16.msra.mxu0 0
    %5377 = vmatpush.bf16.msra.mxu0 %v5283
    %5378 = vmatpush.bf16.msra.mxu0 %v5282
    %5379 = vmatmul.bf16.gmra.mxu0 %v5366
    %v5380 = vpop.f32.mrf.mxu0
    %v5381 = vadd.f32 %v5346, %v5380
    %v5382 = vpop.f32.mrf.mxu0
    %v5383 = vadd.f32 %v5348, %v5382
    %5384 = vmatmul.bf16.gmra.mxu0 %v5369
    %v5385 = vpop.f32.mrf.mxu0
    %v5386 = vadd.f32 %v5351, %v5385
    %v5387 = vpop.f32.mrf.mxu0
    %v5388 = vadd.f32 %v5353, %v5387
    %5389 = vdwg.mxu0
    %s5390 = scalar_lea.vmem %s43, 16
    %v5391 = vld [vmem:[%s5390] sm:$0xf]
    %v5392 = vld [vmem:[%s5390 + $0x4] sm:$0xf]
    %v5395 = vunpack.c.l.b16 %v5391
    %v5396 = vunpack.c.l.b16 %v5392
    %v5397 = vpack.c.b16 %v5396, %v5395
    %5399 = vmatpush.bf16.msra.mxu0 0
    %5400 = vmatpush.bf16.msra.mxu0 0
    %5401 = vmatpush.bf16.msra.mxu0 0
    %5402 = vmatpush.bf16.msra.mxu0 0
    %5403 = vmatpush.bf16.msra.mxu0 0
    %5404 = vmatpush.bf16.msra.mxu0 0
    %5405 = vmatpush.bf16.msra.mxu0 0
    %5406 = vmatpush.bf16.msra.mxu0 %v5397
    %5407 = vmatmul.bf16.gmra.mxu0 %v5254
    %v5408 = vpop.f32.mrf.mxu0
    %v5409 = vadd.f32 0.0, %v5408
    %v5410 = vpop.f32.mrf.mxu0
    %v5411 = vadd.f32 0.0, %v5410
    %5412 = vmatmul.bf16.gmra.mxu0 %v5257
    %v5413 = vpop.f32.mrf.mxu0
    %v5414 = vadd.f32 0.0, %v5413
    %v5415 = vpop.f32.mrf.mxu0
    %v5416 = vadd.f32 0.0, %v5415
    %5417 = vdwg.mxu0
    %s5418 = scalar_lea.vmem %s41, 32
    %v5419 = vld [vmem:[%s5418] sm:$0xf]
    %v5420 = vld [vmem:[%s5418 + $0x4] sm:$0xf]
    %v5421 = vld [vmem:[%s5418 + $0x8] sm:$0xf]
    %v5422 = vld [vmem:[%s5418 + $0xc] sm:$0xf]
    %v5423 = vpack.c.bf16 %v5411, %v5409
    %v5424 = vpack.c.bf16 %v5416, %v5414
    %v5429 = vunpack.c.l.b16 %v5419
    %v5430 = vunpack.c.l.b16 %v5420
    %v5431 = vunpack.c.l.b16 %v5421
    %v5432 = vunpack.c.l.b16 %v5422
    %v5433 = vpack.c.b16 %v5430, %v5429
    %v5434 = vpack.c.b16 %v5432, %v5431
    %v5436 = vsel %vm5329, %v5433, 0
    %v5439 = vsel %vm5329, %v5434, 0
    %5441 = vmatpush.bf16.msra.mxu0 0
    %5442 = vmatpush.bf16.msra.mxu0 0
    %5443 = vmatpush.bf16.msra.mxu0 0
    %5444 = vmatpush.bf16.msra.mxu0 0
    %5445 = vmatpush.bf16.msra.mxu0 0
    %5446 = vmatpush.bf16.msra.mxu0 0
    %5447 = vmatpush.bf16.msra.mxu0 %v5424
    %5448 = vmatpush.bf16.msra.mxu0 %v5423
    %5449 = vmatmul.bf16.gmra.mxu0 %v5436
    %v5450 = vpop.f32.mrf.mxu0
    %v5451 = vadd.f32 0.0, %v5450
    %v5452 = vpop.f32.mrf.mxu0
    %v5453 = vadd.f32 0.0, %v5452
    %5454 = vmatmul.bf16.gmra.mxu0 %v5439
    %v5455 = vpop.f32.mrf.mxu0
    %v5456 = vadd.f32 0.0, %v5455
    %v5457 = vpop.f32.mrf.mxu0
    %v5458 = vadd.f32 0.0, %v5457
    %5459 = vdwg.mxu0
    %v5460 = vadd.f32 %v5381, %v5451
    %v5461 = vadd.f32 %v5383, %v5453
    %v5462 = vadd.f32 %v5386, %v5456
    %v5463 = vadd.f32 %v5388, %v5458
    %v5464 = vld [vmem:[%s49] sm:$0xff]
    %v5465 = vld [vmem:[%s49 + $0x8] sm:$0xff]
    %v5466 = vld [vmem:[%s49 + $0x10] sm:$0xff]
    %v5467 = vld [vmem:[%s49 + $0x18] sm:$0xff]
    %5469 = vset.pattern.permute.xlu0 0
    %5470 = vperm.xlu0 %5469, %v5464
    %v5471 = vpop.permute.xlu0 %5470
    %5474 = vset.pattern.permute.xlu0 0
    %5475 = vperm.xlu0 %5474, %v5465
    %v5476 = vpop.permute.xlu0 %5475
    %5479 = vset.pattern.permute.xlu0 0
    %5480 = vperm.xlu0 %5479, %v5466
    %v5481 = vpop.permute.xlu0 %5480
    %5484 = vset.pattern.permute.xlu0 0
    %5485 = vperm.xlu0 %5484, %v5467
    %v5486 = vpop.permute.xlu0 %5485
    %v5488 = vmul.f32 %v5460, %v5471
    %v5489 = vmul.f32 %v5461, %v5476
    %v5490 = vmul.f32 %v5462, %v5481
    %v5491 = vmul.f32 %v5463, %v5486
    %v5492 = vld [vmem:[%s45] sm:$0xf]
    %v5493 = vld [vmem:[%s45 + $0x4] sm:$0xf]
    %v5496 = vunpack.c.l.b16 %v5492
    %v5497 = vunpack.c.l.b16 %v5493
    %v5498 = vpack.c.b16 %v5497, %v5496
    %5500 = vmatpush.bf16.msra.mxu0 0
    %5501 = vmatpush.bf16.msra.mxu0 0
    %5502 = vmatpush.bf16.msra.mxu0 0
    %5503 = vmatpush.bf16.msra.mxu0 0
    %5504 = vmatpush.bf16.msra.mxu0 0
    %5505 = vmatpush.bf16.msra.mxu0 0
    %5506 = vmatpush.bf16.msra.mxu0 0
    %5507 = vmatpush.bf16.msra.mxu0 %v5498
    %5508 = vmatmul.bf16.gmra.mxu0 %v5254
    %v5509 = vpop.f32.mrf.mxu0
    %v5510 = vadd.f32 0.0, %v5509
    %v5511 = vpop.f32.mrf.mxu0
    %v5512 = vadd.f32 0.0, %v5511
    %5513 = vmatmul.bf16.gmra.mxu0 %v5257
    %v5514 = vpop.f32.mrf.mxu0
    %v5515 = vadd.f32 0.0, %v5514
    %v5516 = vpop.f32.mrf.mxu0
    %v5517 = vadd.f32 0.0, %v5516
    %5518 = vdwg.mxu0
    %v5519 = vadd.f32 %v5488, %v5510
    %v5520 = vadd.f32 %v5489, %v5512
    %v5521 = vadd.f32 %v5490, %v5515
    %v5522 = vadd.f32 %v5491, %v5517
    %v5523 = vld [vmem:[%s47] sm:$0x1]
    %v5525 = vperm.slane %v5523, 0
    %v5527 = vadd.f32 %v5519, %v5525
    %v5528 = vadd.f32 %v5520, %v5525
    %v5529 = vadd.f32 %v5521, %v5525
    %v5530 = vadd.f32 %v5522, %v5525
    %v5531 = vmax.f32 %v5527, 0.0
    %v5532 = vmax.f32 %v5528, 0.0
    %v5533 = vmax.f32 %v5529, 0.0
    %v5534 = vmax.f32 %v5530, 0.0
    %v5535 = vld [vmem:[%s51] sm:$0xf]
    %v5536 = vld [vmem:[%s51 + $0x4] sm:$0xf]
    %v5537 = vld [vmem:[%s51 + $0x8] sm:$0xf]
    %v5538 = vld [vmem:[%s51 + $0xc] sm:$0xf]
    %v5539 = vld [vmem:[%s51 + $0x10] sm:$0xf]
    %v5540 = vld [vmem:[%s51 + $0x14] sm:$0xf]
    %v5541 = vld [vmem:[%s51 + $0x18] sm:$0xf]
    %v5542 = vld [vmem:[%s51 + $0x1c] sm:$0xf]
    %v5543 = vld [vmem:[%s51 + $0x20] sm:$0xf]
    %v5544 = vld [vmem:[%s51 + $0x24] sm:$0xf]
    %v5545 = vld [vmem:[%s51 + $0x28] sm:$0xf]
    %v5546 = vld [vmem:[%s51 + $0x2c] sm:$0xf]
    %v5547 = vld [vmem:[%s51 + $0x30] sm:$0xf]
    %v5548 = vld [vmem:[%s51 + $0x34] sm:$0xf]
    %v5549 = vpack.c.bf16 %v5532, %v5531
    %v5550 = vpack.c.bf16 %v5534, %v5533
    %v5565 = vunpack.c.l.b16 %v5535
    %v5566 = vunpack.c.l.b16 %v5536
    %v5567 = vunpack.c.l.b16 %v5537
    %v5568 = vunpack.c.l.b16 %v5538
    %v5569 = vunpack.c.l.b16 %v5539
    %v5570 = vunpack.c.l.b16 %v5540
    %v5571 = vunpack.c.l.b16 %v5541
    %v5572 = vunpack.c.l.b16 %v5542
    %v5573 = vunpack.c.l.b16 %v5543
    %v5574 = vunpack.c.l.b16 %v5544
    %v5575 = vunpack.c.l.b16 %v5545
    %v5576 = vunpack.c.l.b16 %v5546
    %v5577 = vunpack.c.l.b16 %v5547
    %v5578 = vunpack.c.l.b16 %v5548
    %v5579 = vpack.c.b16 %v5566, %v5565
    %v5580 = vpack.c.b16 %v5568, %v5567
    %v5581 = vpack.c.b16 %v5570, %v5569
    %v5582 = vpack.c.b16 %v5572, %v5571
    %v5583 = vpack.c.b16 %v5574, %v5573
    %v5584 = vpack.c.b16 %v5576, %v5575
    %v5585 = vpack.c.b16 %v5578, %v5577
    %v5587 = vsel %vm5329, %v5579, 0
    %v5590 = vsel %vm5329, %v5580, 0
    %v5593 = vsel %vm5329, %v5581, 0
    %v5596 = vsel %vm5329, %v5582, 0
    %v5599 = vsel %vm5329, %v5583, 0
    %v5602 = vsel %vm5329, %v5584, 0
    %v5605 = vsel %vm5329, %v5585, 0
    %5607 = vmatpush.bf16.msra.mxu0 0
    %5608 = vmatpush.bf16.msra.mxu0 0
    %5609 = vmatpush.bf16.msra.mxu0 0
    %5610 = vmatpush.bf16.msra.mxu0 0
    %5611 = vmatpush.bf16.msra.mxu0 0
    %5612 = vmatpush.bf16.msra.mxu0 0
    %5613 = vmatpush.bf16.msra.mxu0 %v5550
    %5614 = vmatpush.bf16.msra.mxu0 %v5549
    %5615 = vmatmul.bf16.gmra.mxu0 %v5587
    %v5616 = vpop.f32.mrf.mxu0
    %v5617 = vadd.f32 0.0, %v5616
    %v5618 = vpop.f32.mrf.mxu0
    %v5619 = vadd.f32 0.0, %v5618
    %5620 = vmatmul.bf16.gmra.mxu0 %v5590
    %v5621 = vpop.f32.mrf.mxu0
    %v5622 = vadd.f32 0.0, %v5621
    %v5623 = vpop.f32.mrf.mxu0
    %v5624 = vadd.f32 0.0, %v5623
    %5625 = vmatmul.bf16.gmra.mxu0 %v5593
    %v5626 = vpop.f32.mrf.mxu0
    %v5627 = vadd.f32 0.0, %v5626
    %v5628 = vpop.f32.mrf.mxu0
    %v5629 = vadd.f32 0.0, %v5628
    %5630 = vmatmul.bf16.gmra.mxu0 %v5596
    %v5631 = vpop.f32.mrf.mxu0
    %v5632 = vadd.f32 0.0, %v5631
    %v5633 = vpop.f32.mrf.mxu0
    %v5634 = vadd.f32 0.0, %v5633
    %5635 = vmatmul.bf16.gmra.mxu0 %v5599
    %v5636 = vpop.f32.mrf.mxu0
    %v5637 = vadd.f32 0.0, %v5636
    %v5638 = vpop.f32.mrf.mxu0
    %v5639 = vadd.f32 0.0, %v5638
    %5640 = vmatmul.bf16.gmra.mxu0 %v5602
    %v5641 = vpop.f32.mrf.mxu0
    %v5642 = vadd.f32 0.0, %v5641
    %v5643 = vpop.f32.mrf.mxu0
    %v5644 = vadd.f32 0.0, %v5643
    %5645 = vmatmul.bf16.gmra.mxu0 %v5605
    %v5646 = vpop.f32.mrf.mxu0
    %v5647 = vadd.f32 0.0, %v5646
    %v5648 = vpop.f32.mrf.mxu0
    %v5649 = vadd.f32 0.0, %v5648
    %5650 = vdwg.mxu0
    %v5651 = vmax.f32 %v5617, %v5622
    %v5652 = vmax.f32 %v5619, %v5624
    %v5653 = vmax.f32 %v5627, %v5632
    %v5654 = vmax.f32 %v5629, %v5634
    %v5655 = vmax.f32 %v5637, %v5642
    %v5656 = vmax.f32 %v5639, %v5644
    %v5657 = vmax.f32 %v5651, %v5653
    %v5658 = vmax.f32 %v5652, %v5654
    %v5659 = vmax.f32 %v5655, %v5647
    %v5660 = vmax.f32 %v5656, %v5649
    %v5661 = vmax.f32 %v5657, %v5659
    %v5662 = vmax.f32 %v5658, %v5660
    %v5663 = vpack.c.bf16 %v5662, %v5661
    %v5664 = vld [vmem:[%s55] sm:$0xf]
    %v5665 = vld [vmem:[%s55 + $0x4] sm:$0xf]
    %v5666 = vld [vmem:[%s55 + $0x8] sm:$0xf]
    %v5667 = vld [vmem:[%s55 + $0xc] sm:$0xf]
    %v5672 = vunpack.c.l.b16 %v5664
    %v5673 = vunpack.c.l.b16 %v5665
    %v5674 = vunpack.c.l.b16 %v5666
    %v5675 = vunpack.c.l.b16 %v5667
    %v5676 = vpack.c.b16 %v5673, %v5672
    %v5677 = vpack.c.b16 %v5675, %v5674
    %v5681 = vsel %vm5329, %v5663, 0
    %5683 = vmatpush.bf16.msra.mxu0 0
    %5684 = vmatpush.bf16.msra.mxu0 0
    %5685 = vmatpush.bf16.msra.mxu0 0
    %5686 = vmatpush.bf16.msra.mxu0 0
    %5687 = vmatpush.bf16.msra.mxu0 0
    %5688 = vmatpush.bf16.msra.mxu0 0
    %5689 = vmatpush.bf16.msra.mxu0 %v5677
    %5690 = vmatpush.bf16.msra.mxu0 %v5676
    %5691 = vmatmul.bf16.gmra.mxu0 %v5681
    %v5692 = vpop.f32.mrf.mxu0
    %v5693 = vadd.f32 0.0, %v5692
    %v5694 = vpop.f32.mrf.mxu0
    %v5695 = vadd.f32 0.0, %v5694
    %5696 = vdwg.mxu0
    %v5697 = vld [vmem:[%s53] sm:$0xf]
    %v5698 = vld [vmem:[%s53 + $0x4] sm:$0xf]
    %v5699 = vpack.c.bf16 %v5695, %v5693
    %s5700 = scalar_lea.vmem %s55, 16
    %v5701 = vld [vmem:[%s5700] sm:$0xf]
    %v5702 = vld [vmem:[%s5700 + $0x4] sm:$0xf]
    %v5703 = vld [vmem:[%s5700 + $0x8] sm:$0xf]
    %v5704 = vld [vmem:[%s5700 + $0xc] sm:$0xf]
    %v5709 = vunpack.c.l.b16 %v5701
    %v5710 = vunpack.c.l.b16 %v5702
    %v5711 = vunpack.c.l.b16 %v5703
    %v5712 = vunpack.c.l.b16 %v5704
    %v5713 = vpack.c.b16 %v5710, %v5709
    %v5714 = vpack.c.b16 %v5712, %v5711
    %5717 = vmatpush.bf16.msra.mxu0 0
    %5718 = vmatpush.bf16.msra.mxu0 0
    %5719 = vmatpush.bf16.msra.mxu0 0
    %5720 = vmatpush.bf16.msra.mxu0 0
    %5721 = vmatpush.bf16.msra.mxu0 0
    %5722 = vmatpush.bf16.msra.mxu0 0
    %5723 = vmatpush.bf16.msra.mxu0 %v5714
    %5724 = vmatpush.bf16.msra.mxu0 %v5713
    %5725 = vmatmul.bf16.gmra.mxu0 %v5681
    %v5726 = vpop.f32.mrf.mxu0
    %v5727 = vadd.f32 0.0, %v5726
    %v5728 = vpop.f32.mrf.mxu0
    %v5729 = vadd.f32 0.0, %v5728
    %5730 = vdwg.mxu0
    %s5731 = scalar_lea.vmem %s53, 8
    %v5732 = vld [vmem:[%s5731] sm:$0xf]
    %v5733 = vld [vmem:[%s5731 + $0x4] sm:$0xf]
    %v5734 = vpack.c.bf16 %v5729, %v5727
    %v5737 = vunpack.c.l.b16 %v5732
    %v5738 = vunpack.c.l.b16 %v5733
    %v5739 = vpack.c.b16 %v5738, %v5737
    %v5741 = vsel %vm865, %v5739, 0
    %5743 = vmatpush.bf16.msra.mxu0 0
    %5744 = vmatpush.bf16.msra.mxu0 0
    %5745 = vmatpush.bf16.msra.mxu0 0
    %5746 = vmatpush.bf16.msra.mxu0 0
    %5747 = vmatpush.bf16.msra.mxu0 0
    %5748 = vmatpush.bf16.msra.mxu0 0
    %5749 = vmatpush.bf16.msra.mxu0 0
    %5750 = vmatpush.bf16.msra.mxu0 %v5734
    %5751 = vmatmul.bf16.gmra.mxu0 %v5741
    %v5752 = vpop.f32.mrf.mxu0
    %v5753 = vadd.f32 0.0, %v5752
    %v5754 = vpop.f32.mrf.mxu0
    %v5755 = vadd.f32 0.0, %v5754
    %5756 = vdwg.mxu0
    %v5759 = vunpack.c.l.b16 %v5697
    %v5760 = vunpack.c.l.b16 %v5698
    %v5761 = vpack.c.b16 %v5760, %v5759
    %v5763 = vsel %vm865, %v5761, 0
    %5765 = vmatpush.bf16.msra.mxu0 0
    %5766 = vmatpush.bf16.msra.mxu0 0
    %5767 = vmatpush.bf16.msra.mxu0 0
    %5768 = vmatpush.bf16.msra.mxu0 0
    %5769 = vmatpush.bf16.msra.mxu0 0
    %5770 = vmatpush.bf16.msra.mxu0 0
    %5771 = vmatpush.bf16.msra.mxu0 0
    %5772 = vmatpush.bf16.msra.mxu0 %v5699
    %5773 = vmatmul.bf16.gmra.mxu0 %v5763
    %v5774 = vpop.f32.mrf.mxu0
    %v5775 = vadd.f32 %v5753, %v5774
    %v5776 = vpop.f32.mrf.mxu0
    %v5777 = vadd.f32 %v5755, %v5776
    %5778 = vdwg.mxu0
    %s5779 = scalar_lea.vmem %s55, 32
    %v5780 = vld [vmem:[%s5779] sm:$0xf]
    %v5781 = vld [vmem:[%s5779 + $0x4] sm:$0xf]
    %v5782 = vld [vmem:[%s5779 + $0x8] sm:$0xf]
    %v5783 = vld [vmem:[%s5779 + $0xc] sm:$0xf]
    %v5788 = vunpack.c.l.b16 %v5780
    %v5789 = vunpack.c.l.b16 %v5781
    %v5790 = vunpack.c.l.b16 %v5782
    %v5791 = vunpack.c.l.b16 %v5783
    %v5792 = vpack.c.b16 %v5789, %v5788
    %v5793 = vpack.c.b16 %v5791, %v5790
    %5796 = vmatpush.bf16.msra.mxu0 0
    %5797 = vmatpush.bf16.msra.mxu0 0
    %5798 = vmatpush.bf16.msra.mxu0 0
    %5799 = vmatpush.bf16.msra.mxu0 0
    %5800 = vmatpush.bf16.msra.mxu0 0
    %5801 = vmatpush.bf16.msra.mxu0 0
    %5802 = vmatpush.bf16.msra.mxu0 %v5793
    %5803 = vmatpush.bf16.msra.mxu0 %v5792
    %5804 = vmatmul.bf16.gmra.mxu0 %v5681
    %v5805 = vpop.f32.mrf.mxu0
    %v5806 = vadd.f32 0.0, %v5805
    %v5807 = vpop.f32.mrf.mxu0
    %v5808 = vadd.f32 0.0, %v5807
    %5809 = vdwg.mxu0
    %s5810 = scalar_lea.vmem %s53, 16
    %v5811 = vld [vmem:[%s5810] sm:$0xf]
    %v5812 = vld [vmem:[%s5810 + $0x4] sm:$0xf]
    %v5813 = vpack.c.bf16 %v5808, %v5806
    %v5816 = vunpack.c.l.b16 %v5811
    %v5817 = vunpack.c.l.b16 %v5812
    %v5818 = vpack.c.b16 %v5817, %v5816
    %v5820 = vsel %vm865, %v5818, 0
    %5822 = vmatpush.bf16.msra.mxu0 0
    %5823 = vmatpush.bf16.msra.mxu0 0
    %5824 = vmatpush.bf16.msra.mxu0 0
    %5825 = vmatpush.bf16.msra.mxu0 0
    %5826 = vmatpush.bf16.msra.mxu0 0
    %5827 = vmatpush.bf16.msra.mxu0 0
    %5828 = vmatpush.bf16.msra.mxu0 0
    %5829 = vmatpush.bf16.msra.mxu0 %v5813
    %5830 = vmatmul.bf16.gmra.mxu0 %v5820
    %v5831 = vpop.f32.mrf.mxu0
    %v5832 = vadd.f32 0.0, %v5831
    %v5833 = vpop.f32.mrf.mxu0
    %v5834 = vadd.f32 0.0, %v5833
    %5835 = vdwg.mxu0
    %v5836 = vadd.f32 %v5775, %v5832
    %v5837 = vadd.f32 %v5777, %v5834
    %v5838 = vld [vmem:[%s61] sm:$0xff]
    %v5839 = vld [vmem:[%s61 + $0x8] sm:$0xff]
    %5841 = vset.pattern.permute.xlu0 0
    %5842 = vperm.xlu0 %5841, %v5838
    %v5843 = vpop.permute.xlu0 %5842
    %5846 = vset.pattern.permute.xlu0 0
    %5847 = vperm.xlu0 %5846, %v5839
    %v5848 = vpop.permute.xlu0 %5847
    %v5850 = vmul.f32 %v5836, %v5843
    %v5851 = vmul.f32 %v5837, %v5848
    %v5852 = vld [vmem:[%s57] sm:$0xf]
    %v5853 = vld [vmem:[%s57 + $0x4] sm:$0xf]
    %v5854 = vld [vmem:[%s57 + $0x8] sm:$0xf]
    %v5855 = vld [vmem:[%s57 + $0xc] sm:$0xf]
    %v5860 = vunpack.c.l.b16 %v5852
    %v5861 = vunpack.c.l.b16 %v5853
    %v5862 = vunpack.c.l.b16 %v5854
    %v5863 = vunpack.c.l.b16 %v5855
    %v5864 = vpack.c.b16 %v5861, %v5860
    %v5865 = vpack.c.b16 %v5863, %v5862
    %5868 = vmatpush.bf16.msra.mxu0 0
    %5869 = vmatpush.bf16.msra.mxu0 0
    %5870 = vmatpush.bf16.msra.mxu0 0
    %5871 = vmatpush.bf16.msra.mxu0 0
    %5872 = vmatpush.bf16.msra.mxu0 0
    %5873 = vmatpush.bf16.msra.mxu0 0
    %5874 = vmatpush.bf16.msra.mxu0 %v5865
    %5875 = vmatpush.bf16.msra.mxu0 %v5864
    %5876 = vmatmul.bf16.gmra.mxu0 %v5681
    %v5877 = vpop.f32.mrf.mxu0
    %v5878 = vadd.f32 0.0, %v5877
    %v5879 = vpop.f32.mrf.mxu0
    %v5880 = vadd.f32 0.0, %v5879
    %5881 = vdwg.mxu0
    %v5882 = vadd.f32 %v5850, %v5878
    %v5883 = vadd.f32 %v5851, %v5880
    %v5884 = vld [vmem:[%s59] sm:$0x1]
    %v5886 = vperm.slane %v5884, 0
    %v5888 = vadd.f32 %v5882, %v5886
    %v5889 = vadd.f32 %v5883, %v5886
    %v5890 = vmax.f32 %v5888, 0.0
    %v5891 = vmax.f32 %v5889, 0.0
    %v5892 = vld [vmem:[%s63] sm:$0xf]
    %v5893 = vld [vmem:[%s63 + $0x4] sm:$0xf]
    %v5894 = vld [vmem:[%s63 + $0x8] sm:$0xf]
    %v5895 = vld [vmem:[%s63 + $0xc] sm:$0xf]
    %v5896 = vld [vmem:[%s63 + $0x10] sm:$0xf]
    %v5897 = vld [vmem:[%s63 + $0x14] sm:$0xf]
    %v5898 = vld [vmem:[%s63 + $0x18] sm:$0xf]
    %v5899 = vld [vmem:[%s63 + $0x1c] sm:$0xf]
    %v5900 = vld [vmem:[%s63 + $0x20] sm:$0xf]
    %v5901 = vld [vmem:[%s63 + $0x24] sm:$0xf]
    %v5902 = vld [vmem:[%s63 + $0x28] sm:$0xf]
    %v5903 = vld [vmem:[%s63 + $0x2c] sm:$0xf]
    %v5904 = vld [vmem:[%s63 + $0x30] sm:$0xf]
    %v5905 = vld [vmem:[%s63 + $0x34] sm:$0xf]
    %v5906 = vpack.c.bf16 %v5891, %v5890
    %v5921 = vunpack.c.l.b16 %v5892
    %v5922 = vunpack.c.l.b16 %v5893
    %v5923 = vunpack.c.l.b16 %v5894
    %v5924 = vunpack.c.l.b16 %v5895
    %v5925 = vunpack.c.l.b16 %v5896
    %v5926 = vunpack.c.l.b16 %v5897
    %v5927 = vunpack.c.l.b16 %v5898
    %v5928 = vunpack.c.l.b16 %v5899
    %v5929 = vunpack.c.l.b16 %v5900
    %v5930 = vunpack.c.l.b16 %v5901
    %v5931 = vunpack.c.l.b16 %v5902
    %v5932 = vunpack.c.l.b16 %v5903
    %v5933 = vunpack.c.l.b16 %v5904
    %v5934 = vunpack.c.l.b16 %v5905
    %v5935 = vpack.c.b16 %v5922, %v5921
    %v5936 = vpack.c.b16 %v5924, %v5923
    %v5937 = vpack.c.b16 %v5926, %v5925
    %v5938 = vpack.c.b16 %v5928, %v5927
    %v5939 = vpack.c.b16 %v5930, %v5929
    %v5940 = vpack.c.b16 %v5932, %v5931
    %v5941 = vpack.c.b16 %v5934, %v5933
    %v5943 = vsel %vm865, %v5935, 0
    %v5946 = vsel %vm865, %v5936, 0
    %v5949 = vsel %vm865, %v5937, 0
    %v5952 = vsel %vm865, %v5938, 0
    %v5955 = vsel %vm865, %v5939, 0
    %v5958 = vsel %vm865, %v5940, 0
    %v5961 = vsel %vm865, %v5941, 0
    %5963 = vmatpush.bf16.msra.mxu0 0
    %5964 = vmatpush.bf16.msra.mxu0 0
    %5965 = vmatpush.bf16.msra.mxu0 0
    %5966 = vmatpush.bf16.msra.mxu0 0
    %5967 = vmatpush.bf16.msra.mxu0 0
    %5968 = vmatpush.bf16.msra.mxu0 0
    %5969 = vmatpush.bf16.msra.mxu0 0
    %5970 = vmatpush.bf16.msra.mxu0 %v5906
    %5971 = vmatmul.bf16.gmra.mxu0 %v5943
    %v5972 = vpop.f32.mrf.mxu0
    %v5973 = vadd.f32 0.0, %v5972
    %v5974 = vpop.f32.mrf.mxu0
    %v5975 = vadd.f32 0.0, %v5974
    %5976 = vmatmul.bf16.gmra.mxu0 %v5946
    %v5977 = vpop.f32.mrf.mxu0
    %v5978 = vadd.f32 0.0, %v5977
    %v5979 = vpop.f32.mrf.mxu0
    %v5980 = vadd.f32 0.0, %v5979
    %5981 = vmatmul.bf16.gmra.mxu0 %v5949
    %v5982 = vpop.f32.mrf.mxu0
    %v5983 = vadd.f32 0.0, %v5982
    %v5984 = vpop.f32.mrf.mxu0
    %v5985 = vadd.f32 0.0, %v5984
    %5986 = vmatmul.bf16.gmra.mxu0 %v5952
    %v5987 = vpop.f32.mrf.mxu0
    %v5988 = vadd.f32 0.0, %v5987
    %v5989 = vpop.f32.mrf.mxu0
    %v5990 = vadd.f32 0.0, %v5989
    %5991 = vmatmul.bf16.gmra.mxu0 %v5955
    %v5992 = vpop.f32.mrf.mxu0
    %v5993 = vadd.f32 0.0, %v5992
    %v5994 = vpop.f32.mrf.mxu0
    %v5995 = vadd.f32 0.0, %v5994
    %5996 = vmatmul.bf16.gmra.mxu0 %v5958
    %v5997 = vpop.f32.mrf.mxu0
    %v5998 = vadd.f32 0.0, %v5997
    %v5999 = vpop.f32.mrf.mxu0
    %v6000 = vadd.f32 0.0, %v5999
    %6001 = vmatmul.bf16.gmra.mxu0 %v5961
    %v6002 = vpop.f32.mrf.mxu0
    %v6003 = vadd.f32 0.0, %v6002
    %v6004 = vpop.f32.mrf.mxu0
    %v6005 = vadd.f32 0.0, %v6004
    %6006 = vdwg.mxu0
    %v6007 = vmax.f32 %v5973, %v5978
    %v6008 = vmax.f32 %v5975, %v5980
    %v6009 = vmax.f32 %v5983, %v5988
    %v6010 = vmax.f32 %v5985, %v5990
    %v6011 = vmax.f32 %v5993, %v5998
    %v6012 = vmax.f32 %v5995, %v6000
    %v6013 = vmax.f32 %v6007, %v6009
    %v6014 = vmax.f32 %v6008, %v6010
    %v6015 = vmax.f32 %v6011, %v6003
    %v6016 = vmax.f32 %v6012, %v6005
    %v6017 = vmax.f32 %v6013, %v6015
    %v6018 = vmax.f32 %v6014, %v6016
    %v6019 = vld [vmem:[%s3] sm:$0x1]
    %v6020 = vld [vmem:[%s5] sm:$0x1]
    %v6022 = vsel %vm865, %v6020, 0
    %6024 = vmatpush.msra.mxu0 0.0
    %6025 = vmatpush.msra.mxu0 0.0
    %6026 = vmatpush.msra.mxu0 0.0
    %6027 = vmatpush.msra.mxu0 0.0
    %6028 = vmatpush.msra.mxu0 0.0
    %6029 = vmatpush.msra.mxu0 0.0
    %6030 = vmatpush.msra.mxu0 0.0
    %6031 = vmatpush.msra.mxu0 0.0
    %6032 = vmatpush.msra.mxu0 0.0
    %6033 = vmatpush.msra.mxu0 0.0
    %6034 = vmatpush.msra.mxu0 0.0
    %6035 = vmatpush.msra.mxu0 0.0
    %6036 = vmatpush.msra.mxu0 0.0
    %6037 = vmatpush.msra.mxu0 0.0
    %6038 = vmatpush.msra.mxu0 %v6018
    %6039 = vmatpush.msra.mxu0 %v6017
    %6040 = vmatmul.f32.gmra.mxu0 %v6022
    %v6041 = vpop.f32.mrf.mxu0
    %v6042 = vadd.f32 0.0, %v6041
    %6043 = vdwg.mxu0
    %v6044 = vperm.slane %v6019, 0
    %v6045 = vlaneseq
    %v6046 = vshrl.u32 %v6045, 7
    %6048 = vset.pattern.permute.xlu0 %v6046
    %6049 = vperm.xlu0 %6048, %v6044
    %v6050 = vpop.permute.xlu0 %6049
    %v6051 = vlaneseq
    %v6052 = vshrl.u32 %v6051, 7
    %v6053 = vadd.s32 %v6052, 8
    %6054 = vset.pattern.permute.xlu0 %v6053
    %6055 = vperm.xlu0 %6054, %v6044
    %v6056 = vpop.permute.xlu0 %6055
    %vm6057 = vcmp.gt.f32.partialorder %v6050, 0.5
    %vm6058 = vcmp.gt.f32.partialorder %v6056, 0.5
    %v6059 = vsel %vm6057, 1, 0
    %v6060 = vsel %vm6058, 1, 0
    %vm6061 = vcmp.eq.s32.totalorder %v6059, 1
    %vm6062 = vcmp.eq.s32.totalorder %v6060, 1
    %v6063 = vsel %vm6061, %v6017, -3e+38
    %v6064 = vsel %vm6062, %v6018, -3e+38
    %v6065 = vsel %vm5329, %v6063, -inf
    %v6066 = vsel %vm5329, %v6064, -inf
    %v6067 = vmax.f32 %v6065, %v6066
    %v6068 = vrot.slane %v6067, 4
    %v6069 = vmax.f32 %v6067, %v6068
    %v6070 = vrot.slane %v6069, 2
    %v6071 = vmax.f32 %v6069, %v6070
    %v6072 = vrot.slane %v6071, 1
    %v6073 = vmax.f32 %v6071, %v6072
    %v6074 = vld [vmem:[%s7] sm:$0xff]
    %v6075 = vld [vmem:[%s7 + $0x8] sm:$0xff]
    %v6076 = vld [vmem:[%s7 + $0x10] sm:$0xff]
    %v6077 = vld [vmem:[%s7 + $0x18] sm:$0xff]
    %v6078 = vld [vmem:[%s9] sm:$0xff]
    %v6079 = vld [vmem:[%s9 + $0x8] sm:$0xff]
    %v6080 = vld [vmem:[%s9 + $0x10] sm:$0xff]
    %v6081 = vld [vmem:[%s9 + $0x18] sm:$0xff]
    %v6083 = vsel %vm5329, %v6042, 0
    %6085 = vmatpush.msra.mxu0 0.0
    %6086 = vmatpush.msra.mxu0 0.0
    %6087 = vmatpush.msra.mxu0 0.0
    %6088 = vmatpush.msra.mxu0 0.0
    %6089 = vmatpush.msra.mxu0 0.0
    %6090 = vmatpush.msra.mxu0 0.0
    %6091 = vmatpush.msra.mxu0 0.0
    %6092 = vmatpush.msra.mxu0 0.0
    %6093 = vmatpush.msra.mxu0 0.0
    %6094 = vmatpush.msra.mxu0 0.0
    %6095 = vmatpush.msra.mxu0 0.0
    %6096 = vmatpush.msra.mxu0 0.0
    %6097 = vmatpush.msra.mxu0 %v6081
    %6098 = vmatpush.msra.mxu0 %v6080
    %6099 = vmatpush.msra.mxu0 %v6079
    %6100 = vmatpush.msra.mxu0 %v6078
    %6101 = vmatmul.f32.gmra.mxu0 %v6083
    %v6102 = vpop.f32.mrf.mxu0
    %v6103 = vadd.f32 0.0, %v6102
    %6104 = vdwg.mxu0
    %v6106 = vsel %vm5329, %v6073, 0
    %6108 = vmatpush.msra.mxu0 0.0
    %6109 = vmatpush.msra.mxu0 0.0
    %6110 = vmatpush.msra.mxu0 0.0
    %6111 = vmatpush.msra.mxu0 0.0
    %6112 = vmatpush.msra.mxu0 0.0
    %6113 = vmatpush.msra.mxu0 0.0
    %6114 = vmatpush.msra.mxu0 0.0
    %6115 = vmatpush.msra.mxu0 0.0
    %6116 = vmatpush.msra.mxu0 0.0
    %6117 = vmatpush.msra.mxu0 0.0
    %6118 = vmatpush.msra.mxu0 0.0
    %6119 = vmatpush.msra.mxu0 0.0
    %6120 = vmatpush.msra.mxu0 %v6077
    %6121 = vmatpush.msra.mxu0 %v6076
    %6122 = vmatpush.msra.mxu0 %v6075
    %6123 = vmatpush.msra.mxu0 %v6074
    %6124 = vmatmul.f32.gmra.mxu0 %v6106
    %v6125 = vpop.f32.mrf.mxu0
    %v6126 = vadd.f32 %v6103, %v6125
    %6127 = vdwg.mxu0
    %v6128 = vld [vmem:[%s11] sm:$0x1]
    %v6129 = vadd.f32 %v6126, %v6128
    %v6130 = vmax.f32 %v6129, 0.0
    %v6131 = vld [vmem:[%s13] sm:$0xff]
    %v6132 = vld [vmem:[%s13 + $0x8] sm:$0xff]
    %v6133 = vld [vmem:[%s13 + $0x10] sm:$0xff]
    %v6134 = vld [vmem:[%s13 + $0x18] sm:$0xff]
    %v6135 = vld [vmem:[#allocation2] sm:$0x1]
    %v6137 = vsel %vm5329, %v6130, 0
    %6139 = vmatpush.msra.mxu0 0.0
    %6140 = vmatpush.msra.mxu0 0.0
    %6141 = vmatpush.msra.mxu0 0.0
    %6142 = vmatpush.msra.mxu0 0.0
    %6143 = vmatpush.msra.mxu0 0.0
    %6144 = vmatpush.msra.mxu0 0.0
    %6145 = vmatpush.msra.mxu0 0.0
    %6146 = vmatpush.msra.mxu0 0.0
    %6147 = vmatpush.msra.mxu0 0.0
    %6148 = vmatpush.msra.mxu0 0.0
    %6149 = vmatpush.msra.mxu0 0.0
    %6150 = vmatpush.msra.mxu0 0.0
    %6151 = vmatpush.msra.mxu0 %v6134
    %6152 = vmatpush.msra.mxu0 %v6133
    %6153 = vmatpush.msra.mxu0 %v6132
    %6154 = vmatpush.msra.mxu0 %v6131
    %6155 = vmatmul.f32.gmra.mxu0 %v6137
    %v6156 = vpop.f32.mrf.mxu0
    %v6157 = vadd.f32 %v6135, %v6156
    %6158 = vdwg.mxu0
    %vm6159 = vcmask 0
    %6160 = vst.msk [vmem:[#allocation3] sm:$0x1] %vm6159, %v6157
    // Predicated region
    $region130: #{monet_polar_regression_forward.1} parent=1 // pred_check
      _
    $region131: #{monet_polar_regression_forward.1} parent=1 // pred_check_branch
      %6162 = sbr.rel (0) target = $region133
    $region132: #{monet_polar_regression_forward.1} parent=1 // pred_region
      %6164 = vsyncadd [#allocation4], 0
      %s6166 = sshll.u32 [#allocation3], 4
      %s6167 = int_to_ptr.vmem [resolvable:$true] %s6166
      %s6168 = sshll.u32 %s65, 4
      %s6169 = int_to_ptr.hbm [resolvable:$true] %s6168
      %6171 = dma.vmem_to_hbm [thread:$0]  %s6167, 16, %s6169, [#allocation4]
    $region133: #{monet_polar_regression_forward.1} parent=1 // pred_fallthru
      _
    // Predicated region
    $region134: #{monet_polar_regression_forward.1} parent=1 // pred_check
      _
    $region135: #{monet_polar_regression_forward.1} parent=1 // pred_check_branch
      %6173 = sbr.rel (0) target = $region137
    $region136: #{monet_polar_regression_forward.1} parent=1 // pred_region
      %6175 = dma.done [#allocation4], 16
    $region137: #{monet_polar_regression_forward.1} parent=1 // pred_fallthru
      _
    %6176 = vsyncpa [#allocation4], 1

</llo_original>
